<compile_context>
chip_gen: v7x
topology: tpu7x:2x2x1
jax: 0.10.0
libtpu: 0.0.40
codegen_flags: <defaults>
</compile_context>

<pallas_src>
import jax
import jax.numpy as jnp
from jax.experimental import pallas as pl
from jax.experimental.pallas import tpu as pltpu


def vrnn_kernel(tmax_ref,            # SMEM (1,) int32  : max(lengths)  (scalar prefetch)
                len_ref,             # VMEM (B, 1) int32
                x_ref,               # VMEM (B, TC, D) bf16   -- current time chunk
                w_ih_ref,            # VMEM (D, 4H) bf16      -- gate cols (i, f, o, g)
                w_hh_ref,            # VMEM (H, 4H) bf16      -- gate cols (i, f, o, g)
                b_ref,               # VMEM (1, 4H) f32       -- b_ih + b_hh, reordered
                fc_wa_ref,           # VMEM (H, C) f32        -- fc weight, avg-pool half
                fc_wm_ref,           # VMEM (H, C) f32        -- fc weight, max-pool half
                fc_b_ref,            # VMEM (1, C) f32
                out_ref,             # VMEM (B, C) f32
                h_ref, c_ref, sum_ref, max_ref):   # VMEM (B, H) f32 persistent carries
    chunk = pl.program_id(0)
    n_chunks = pl.num_programs(0)
    B, TC, D = x_ref.shape
    H = w_hh_ref.shape[0]

    @pl.when(chunk == 0)
    def _init():
        h_ref[...] = jnp.zeros_like(h_ref)
        c_ref[...] = jnp.zeros_like(c_ref)
        sum_ref[...] = jnp.zeros_like(sum_ref)
        max_ref[...] = jnp.full_like(max_ref, -jnp.inf)

    t_max = tmax_ref[0]              # scalar (SMEM): padded length after pad_packed
    t0 = chunk * TC

    @pl.when(t0 < t_max)             # skip chunks entirely past max(lengths)
    def _recurrence():
        # One bf16 MXU matmul for the whole chunk's input projection (f32 acc),
        # bias folded in once -- all off the serial path.
        x_bf = x_ref[...].reshape(B * TC, D)
        gx = jnp.dot(x_bf, w_ih_ref[...], preferred_element_type=jnp.float32)
        gx = gx.reshape(B, TC, 4 * H) + b_ref[...]

        w_hh = w_hh_ref[...]         # (H, 4H) bf16, hoisted loop-invariant load
        lengths = len_ref[...]       # (B, 1) int32, hoisted

        # Loop-carried state: read the VMEM carries once, write them once.
        h = h_ref[...]
        c = c_ref[...]
        s = sum_ref[...]
        mx = max_ref[...]

        # Fully-unrolled serial LSTM recurrence. gx slices and validity masks
        # are independent of the h/c chain, so they overlap with it.
        for t in range(TC):
            # (B,H)@(H,4H) is far below MXU granularity; explicit bf16 keeps it
            # a single MXU pass (same numerics as DEFAULT-precision f32).
            g = gx[:, t, :] + jnp.dot(h.astype(jnp.bfloat16), w_hh,
                                      preferred_element_type=jnp.float32)
            sig = jax.nn.sigmoid(g[:, :3 * H])   # reordered gates: (i, f, o | g)
            i_g = sig[:, 0 * H:1 * H]
            f_g = sig[:, 1 * H:2 * H]
            o_g = sig[:, 2 * H:3 * H]
            g_g = jnp.tanh(g[:, 3 * H:4 * H])
            c_new = f_g * c + i_g * g_g
            h_new = o_g * jnp.tanh(c_new)

            gt = t0 + t
            valid = gt < lengths                 # (B, 1) packed-sequence mask
            h = jnp.where(valid, h_new, h)       # state freezes past length
            c = jnp.where(valid, c_new, c)

            s = s + jnp.where(valid, h_new, 0.0)     # pad_packed zero-fills past length
            # gt < t_max but past a sequence's length -> zeros in the padded
            # tensor (max pools over them); gt >= t_max does not exist in the
            # padded tensor -> excluded via -inf.
            pad_val = jnp.where(gt < t_max, 0.0, -jnp.inf)
            mx = jnp.maximum(mx, jnp.where(valid, h_new, pad_val))

        h_ref[...] = h
        c_ref[...] = c
        sum_ref[...] = s
        max_ref[...] = mx

    @pl.when(chunk == n_chunks - 1)
    def _finalize():
        # adaptive_avg_pool1d(., 1) over the padded length; guard t_max == 0
        # (PyTorch pack_padded also rejects zero-length batches).
        denom = jnp.maximum(t_max, 1).astype(jnp.float32)
        avg = sum_ref[...] * (1.0 / denom)
        # Dropout() is identity in eval mode. fc weight pre-split into avg/max
        # halves -> two small matmuls, no in-kernel concat.
        out = (jnp.dot(avg, fc_wa_ref[...], preferred_element_type=jnp.float32)
               + jnp.dot(max_ref[...], fc_wm_ref[...], preferred_element_type=jnp.float32)
               + fc_b_ref[...])
        out_ref[...] = out.astype(out_ref.dtype)


def _reorder_gate_cols(w, H):
    """Permute the last (4H) axis from PyTorch LSTM order (i, f, g, o) to (i, f, o, g)."""
    return jnp.concatenate(
        [w[..., 0:H], w[..., H:2 * H], w[..., 3 * H:4 * H], w[..., 2 * H:3 * H]],
        axis=-1)


def vrnn_forward(x, lengths, params, *, t_chunk=64):
    """x: (B, T, D) batch-first; lengths: (B,) int32."""
    B, T, D = x.shape
    H = params["w_hh"].shape[1]
    C = params["fc_w"].shape[0]

    TC = min(int(t_chunk), T)
    if TC < T:
        # bf16 sublane granule on the T axis + exact chunking of the grid.
        assert T % TC == 0 and TC % 16 == 0, (T, TC)
    n_chunks = T // TC

    x_bf = x.astype(jnp.bfloat16)                              # only O(T) HBM stream
    len_2d = lengths.astype(jnp.int32).reshape(B, 1)
    t_max = jnp.max(lengths).astype(jnp.int32).reshape(1)      # scalar prefetch -> SMEM

    w_ih_t = _reorder_gate_cols(jnp.transpose(params["w_ih"]), H).astype(jnp.bfloat16)
    w_hh_t = _reorder_gate_cols(jnp.transpose(params["w_hh"]), H).astype(jnp.bfloat16)
    b_2d = _reorder_gate_cols(
        (params["b_ih"] + params["b_hh"]).reshape(1, 4 * H), H).astype(jnp.float32)
    fc_w_t = jnp.transpose(params["fc_w"]).astype(jnp.float32)    # (2H, C)
    fc_w_avg = fc_w_t[:H, :]
    fc_w_max = fc_w_t[H:, :]
    fc_b_2d = params["fc_b"].reshape(1, C).astype(jnp.float32)

    grid_spec = pltpu.PrefetchScalarGridSpec(
        num_scalar_prefetch=1,
        grid=(n_chunks,),
        in_specs=[
            pl.BlockSpec((B, 1), lambda c, tm: (0, 0)),          # lengths
            pl.BlockSpec((B, TC, D), lambda c, tm: (0, c, 0)),   # x time chunk (bf16)
            pl.BlockSpec((D, 4 * H), lambda c, tm: (0, 0)),      # w_ih (bf16)
            pl.BlockSpec((H, 4 * H), lambda c, tm: (0, 0)),      # w_hh (bf16)
            pl.BlockSpec((1, 4 * H), lambda c, tm: (0, 0)),      # bias
            pl.BlockSpec((H, C), lambda c, tm: (0, 0)),          # fc weight (avg half)
            pl.BlockSpec((H, C), lambda c, tm: (0, 0)),          # fc weight (max half)
            pl.BlockSpec((1, C), lambda c, tm: (0, 0)),          # fc bias
        ],
        out_specs=pl.BlockSpec((B, C), lambda c, tm: (0, 0)),
        scratch_shapes=[
            pltpu.VMEM((B, H), jnp.float32),        # h
            pltpu.VMEM((B, H), jnp.float32),        # c
            pltpu.VMEM((B, H), jnp.float32),        # sum-pool accumulator
            pltpu.VMEM((B, H), jnp.float32),        # max-pool accumulator
        ],
    )
    return pl.pallas_call(
        vrnn_kernel,
        out_shape=jax.ShapeDtypeStruct((B, C), jnp.float32),
        grid_spec=grid_spec,
        compiler_params=pltpu.CompilerParams(
            dimension_semantics=("arbitrary",),      # time recurrence is serial
            vmem_limit_bytes=32 * 1024 * 1024,
        ),
    )(t_max, len_2d, x_bf, w_ih_t, w_hh_t, b_2d, fc_w_avg, fc_w_max, fc_b_2d)


def vrnn_reference(x, lengths, params):
    """Pure-JAX f32 reference of the PyTorch forward (eval mode)."""
    B, T, D = x.shape
    H = params["w_hh"].shape[1]
    w_ih_t = params["w_ih"].T
    w_hh_t = params["w_hh"].T
    b = params["b_ih"] + params["b_hh"]
    h = jnp.zeros((B, H), jnp.float32)
    c = jnp.zeros((B, H), jnp.float32)
    outs = []
    for t in range(T):
        gates = x[:, t, :] @ w_ih_t + h @ w_hh_t + b
        i_g = jax.nn.sigmoid(gates[:, 0 * H:1 * H])
        f_g = jax.nn.sigmoid(gates[:, 1 * H:2 * H])
        g_g = jnp.tanh(gates[:, 2 * H:3 * H])
        o_g = jax.nn.sigmoid(gates[:, 3 * H:4 * H])
        c_new = f_g * c + i_g * g_g
        h_new = o_g * jnp.tanh(c_new)
        valid = (t < lengths)[:, None]
        h = jnp.where(valid, h_new, h)
        c = jnp.where(valid, c_new, c)
        outs.append(jnp.where(valid, h_new, 0.0))
    t_max = int(jnp.max(lengths))
    o = jnp.stack(outs, axis=1)[:, :t_max, :]          # pad_packed -> max(lengths)
    avg_pool = o.mean(axis=1)
    max_pool = o.max(axis=1)
    pooled = jnp.concatenate([avg_pool, max_pool], axis=1)
    return pooled @ params["fc_w"].T + params["fc_b"]


def init_params(key, input_size, hidden_size, num_classes):
    k = 1.0 / jnp.sqrt(hidden_size)
    ks = jax.random.split(key, 6)
    params = {
        "w_ih": jax.random.uniform(ks[0], (4 * hidden_size, input_size),
                                   jnp.float32, -k, k),
        "w_hh": jax.random.uniform(ks[1], (4 * hidden_size, hidden_size),
                                   jnp.float32, -k, k),
        "b_ih": jax.random.uniform(ks[2], (4 * hidden_size,), jnp.float32, -k, k),
        "b_hh": jax.random.uniform(ks[3], (4 * hidden_size,), jnp.float32, -k, k),
    }
    kf = 1.0 / jnp.sqrt(2 * hidden_size)
    params["fc_w"] = jax.random.uniform(ks[4], (num_classes, 2 * hidden_size),
                                        jnp.float32, -kf, kf)
    params["fc_b"] = jax.random.uniform(ks[5], (num_classes,), jnp.float32, -kf, kf)
    return params


if __name__ == "__main__":
    # Small shapes consistent with the module (input_size reduced 2048 -> 128).
    # T=32 with t_chunk=16 exercises the two-chunk pipelined grid, cross-chunk
    # carry of h/c and pooling accumulators, and the partially-valid tail chunk.
    B, T, D, H, C = 2, 32, 128, 32, 2

    key = jax.random.PRNGKey(0)
    k_x, k_p = jax.random.split(key)
    x = jax.random.normal(k_x, (B, T, D), jnp.float32)
    lengths = jnp.array([27, 13], jnp.int32)    # variable lengths (packed-seq masking)
    params = init_params(k_p, D, H, C)

    out = vrnn_forward(x, lengths, params, t_chunk=16)
    out = jax.block_until_ready(out)

    ref = vrnn_reference(x, lengths, params)
    assert out.shape == (B, C)
    # Tolerance covers bf16 x / bf16 MXU matmuls (f32 accumulate, f32 gate math).
    assert jnp.allclose(out, ref, rtol=5e-2, atol=5e-2), (out, ref)

    print("KERNEL_OK")
</pallas_src>

<mosaic_0001>
module attributes {stable_mosaic.version = 11 : i64} {
  func.func @vrnn_kernel(%arg0: i32, %arg1: memref<1xi32, #tpu.memory_space<smem>>, %arg2: memref<2x1xi32, #tpu.memory_space<vmem>>, %arg3: memref<2x16x128xbf16, #tpu.memory_space<vmem>>, %arg4: memref<128x128xbf16, #tpu.memory_space<vmem>>, %arg5: memref<32x128xbf16, #tpu.memory_space<vmem>>, %arg6: memref<1x128xf32, #tpu.memory_space<vmem>>, %arg7: memref<32x2xf32, #tpu.memory_space<vmem>>, %arg8: memref<32x2xf32, #tpu.memory_space<vmem>>, %arg9: memref<1x2xf32, #tpu.memory_space<vmem>>, %arg10: memref<2x2xf32, #tpu.memory_space<vmem>>, %arg11: memref<2x32xf32, #tpu.memory_space<vmem>>, %arg12: memref<2x32xf32, #tpu.memory_space<vmem>>, %arg13: memref<2x32xf32, #tpu.memory_space<vmem>>, %arg14: memref<2x32xf32, #tpu.memory_space<vmem>>) attributes {dimension_semantics = [#tpu.dimension_semantics<arbitrary>], iteration_bounds = array<i64: 2>, scalar_prefetch = 1 : i64, scratch_operands = 4 : i64, tpu.core_type = #tpu.core_type<tc>, window_params = [{pipeline_mode = #tpu.pipeline_mode<synchronous>, transform_indices = @transform_0, window_bounds = array<i64: 2, 1>}, {transform_indices = @transform_1, window_bounds = array<i64: 2, 16, 128>}, {pipeline_mode = #tpu.pipeline_mode<synchronous>, transform_indices = @transform_2, window_bounds = array<i64: 128, 128>}, {pipeline_mode = #tpu.pipeline_mode<synchronous>, transform_indices = @transform_3, window_bounds = array<i64: 32, 128>}, {pipeline_mode = #tpu.pipeline_mode<synchronous>, transform_indices = @transform_4, window_bounds = array<i64: 1, 128>}, {pipeline_mode = #tpu.pipeline_mode<synchronous>, transform_indices = @transform_5, window_bounds = array<i64: 32, 2>}, {pipeline_mode = #tpu.pipeline_mode<synchronous>, transform_indices = @transform_6, window_bounds = array<i64: 32, 2>}, {pipeline_mode = #tpu.pipeline_mode<synchronous>, transform_indices = @transform_7, window_bounds = array<i64: 1, 2>}, {pipeline_mode = #tpu.pipeline_mode<synchronous>, transform_indices = @transform_8, window_bounds = array<i64: 2, 2>}]} {
    %c0_i32 = arith.constant 0 : i32
    %0 = arith.cmpi eq, %arg0, %c0_i32 : i32
    %1 = arith.extui %0 : i1 to i32
    %c0_i32_0 = arith.constant 0 : i32
    %2 = arith.cmpi ne, %1, %c0_i32_0 : i32
    scf.if %2 {
      %cst = arith.constant 0.000000e+00 : f32
      %11 = vector.broadcast %cst : f32 to vector<2x32xf32>
      %c0_3 = arith.constant 0 : index
      %c0_4 = arith.constant 0 : index
      %12 = vector.load %arg11[%c0_3, %c0_4] : memref<2x32xf32, #tpu.memory_space<vmem>>, vector<2x32xf32>
      tpu.vector_store %arg11[%c0_3, %c0_4], %11 {strides = array<i32>} : memref<2x32xf32, #tpu.memory_space<vmem>>, vector<2x32xf32>,
      %cst_5 = arith.constant 0.000000e+00 : f32
      %13 = vector.broadcast %cst_5 : f32 to vector<2x32xf32>
      %c0_6 = arith.constant 0 : index
      %c0_7 = arith.constant 0 : index
      %14 = vector.load %arg12[%c0_6, %c0_7] : memref<2x32xf32, #tpu.memory_space<vmem>>, vector<2x32xf32>
      tpu.vector_store %arg12[%c0_6, %c0_7], %13 {strides = array<i32>} : memref<2x32xf32, #tpu.memory_space<vmem>>, vector<2x32xf32>,
      %cst_8 = arith.constant 0.000000e+00 : f32
      %15 = vector.broadcast %cst_8 : f32 to vector<2x32xf32>
      %c0_9 = arith.constant 0 : index
      %c0_10 = arith.constant 0 : index
      %16 = vector.load %arg13[%c0_9, %c0_10] : memref<2x32xf32, #tpu.memory_space<vmem>>, vector<2x32xf32>
      tpu.vector_store %arg13[%c0_9, %c0_10], %15 {strides = array<i32>} : memref<2x32xf32, #tpu.memory_space<vmem>>, vector<2x32xf32>,
      %cst_11 = arith.constant 0xFF800000 : f32
      %17 = vector.broadcast %cst_11 : f32 to vector<2x32xf32>
      %c0_12 = arith.constant 0 : index
      %c0_13 = arith.constant 0 : index
      %18 = vector.load %arg14[%c0_12, %c0_13] : memref<2x32xf32, #tpu.memory_space<vmem>>, vector<2x32xf32>
      tpu.vector_store %arg14[%c0_12, %c0_13], %17 {strides = array<i32>} : memref<2x32xf32, #tpu.memory_space<vmem>>, vector<2x32xf32>,
    } else {
    }
    %c0 = arith.constant 0 : index
    %3 = memref.load %arg1[%c0] : memref<1xi32, #tpu.memory_space<smem>>
    %c16_i32 = arith.constant 16 : i32
    %4 = arith.muli %arg0, %c16_i32 : i32
    %5 = arith.cmpi slt, %4, %3 : i32
    %6 = arith.extui %5 : i1 to i32
    %c0_i32_1 = arith.constant 0 : i32
    %7 = arith.cmpi ne, %6, %c0_i32_1 : i32
    scf.if %7 {
      %c0_3 = arith.constant 0 : index
      %c0_4 = arith.constant 0 : index
      %c0_5 = arith.constant 0 : index
      %11 = vector.load %arg3[%c0_3, %c0_4, %c0_5] : memref<2x16x128xbf16, #tpu.memory_space<vmem>>, vector<2x16x128xbf16>
      %12 = vector.shape_cast %11 : vector<2x16x128xbf16> to vector<32x128xbf16>
      %c0_6 = arith.constant 0 : index
      %c0_7 = arith.constant 0 : index
      %13 = vector.load %arg4[%c0_6, %c0_7] : memref<128x128xbf16, #tpu.memory_space<vmem>>, vector<128x128xbf16>
      %cst = arith.constant dense<0.000000e+00> : vector<32x128xf32>
      %14 = tpu.matmul %12, %13, %cst {dimension_numbers = #tpu.dot_dimension_numbers<[1], [0], [0], [1], [0, 0, 1, 1], [], []>} : vector<32x128xbf16>, vector<128x128xbf16>, vector<32x128xf32> -> vector<32x128xf32>
      %15 = vector.shape_cast %14 : vector<32x128xf32> to vector<2x16x128xf32>
      %c0_8 = arith.constant 0 : index
      %c0_9 = arith.constant 0 : index
      %16 = vector.load %arg6[%c0_8, %c0_9] : memref<1x128xf32, #tpu.memory_space<vmem>>, vector<1x128xf32>
      %17 = vector.shape_cast %16 : vector<1x128xf32> to vector<1x1x128xf32>
      %18 = vector.broadcast %17 : vector<1x1x128xf32> to vector<2x16x128xf32>
      %19 = arith.addf %15, %18 : vector<2x16x128xf32>
      %c0_10 = arith.constant 0 : index
      %c0_11 = arith.constant 0 : index
      %20 = vector.load %arg5[%c0_10, %c0_11] : memref<32x128xbf16, #tpu.memory_space<vmem>>, vector<32x128xbf16>
      %c0_12 = arith.constant 0 : index
      %c0_13 = arith.constant 0 : index
      %21 = vector.load %arg2[%c0_12, %c0_13] : memref<2x1xi32, #tpu.memory_space<vmem>>, vector<2x1xi32>
      %c0_14 = arith.constant 0 : index
      %c0_15 = arith.constant 0 : index
      %22 = vector.load %arg11[%c0_14, %c0_15] : memref<2x32xf32, #tpu.memory_space<vmem>>, vector<2x32xf32>
      %c0_16 = arith.constant 0 : index
      %c0_17 = arith.constant 0 : index
      %23 = vector.load %arg12[%c0_16, %c0_17] : memref<2x32xf32, #tpu.memory_space<vmem>>, vector<2x32xf32>
      %c0_18 = arith.constant 0 : index
      %c0_19 = arith.constant 0 : index
      %24 = vector.load %arg13[%c0_18, %c0_19] : memref<2x32xf32, #tpu.memory_space<vmem>>, vector<2x32xf32>
      %c0_20 = arith.constant 0 : index
      %c0_21 = arith.constant 0 : index
      %25 = vector.load %arg14[%c0_20, %c0_21] : memref<2x32xf32, #tpu.memory_space<vmem>>, vector<2x32xf32>
      %26 = vector.extract_strided_slice %19 {offsets = [0, 0, 0], sizes = [2, 1, 128], strides = [1, 1, 1]} : vector<2x16x128xf32> to vector<2x1x128xf32>
      %27 = vector.shape_cast %26 : vector<2x1x128xf32> to vector<2x128xf32>
      %28 = arith.truncf %22 : vector<2x32xf32> to vector<2x32xbf16>
      %cst_22 = arith.constant dense<0.000000e+00> : vector<2x128xf32>
      %29 = tpu.matmul %28, %20, %cst_22 {dimension_numbers = #tpu.dot_dimension_numbers<[1], [0], [0], [1], [0, 0, 1, 1], [], []>} : vector<2x32xbf16>, vector<32x128xbf16>, vector<2x128xf32> -> vector<2x128xf32>
      %30 = arith.addf %27, %29 : vector<2x128xf32>
      %31 = vector.extract_strided_slice %30 {offsets = [0, 0], sizes = [2, 96], strides = [1, 1]} : vector<2x128xf32> to vector<2x96xf32>
      %32 = arith.negf %31 : vector<2x96xf32>
      %33 = math.exp %32 : vector<2x96xf32>
      %cst_23 = arith.constant 1.000000e+00 : f32
      %34 = vector.broadcast %cst_23 : f32 to vector<2x96xf32>
      %35 = arith.addf %34, %33 : vector<2x96xf32>
      %36 = arith.divf %34, %35 : vector<2x96xf32>
      %37 = vector.extract_strided_slice %36 {offsets = [0, 0], sizes = [2, 32], strides = [1, 1]} : vector<2x96xf32> to vector<2x32xf32>
      %38 = vector.extract_strided_slice %36 {offsets = [0, 32], sizes = [2, 32], strides = [1, 1]} : vector<2x96xf32> to vector<2x32xf32>
      %39 = vector.extract_strided_slice %36 {offsets = [0, 64], sizes = [2, 32], strides = [1, 1]} : vector<2x96xf32> to vector<2x32xf32>
      %40 = vector.extract_strided_slice %30 {offsets = [0, 96], sizes = [2, 32], strides = [1, 1]} : vector<2x128xf32> to vector<2x32xf32>
      %41 = math.tanh %40 : vector<2x32xf32>
      %42 = arith.mulf %38, %23 : vector<2x32xf32>
      %43 = arith.mulf %37, %41 : vector<2x32xf32>
      %44 = arith.addf %42, %43 : vector<2x32xf32>
      %45 = math.tanh %44 : vector<2x32xf32>
      %46 = arith.mulf %39, %45 : vector<2x32xf32>
      %c0_i32_24 = arith.constant 0 : i32
      %47 = arith.addi %4, %c0_i32_24 : i32
      %48 = vector.broadcast %47 : i32 to vector<2x1xi32>
      %49 = arith.cmpi slt, %48, %21 : vector<2x1xi32>
      %50 = vector.shape_cast %49 : vector<2x1xi1> to vector<2x1xi1>
      %51 = vector.broadcast %50 : vector<2x1xi1> to vector<2x32xi1>
      %52 = arith.select %51, %46, %22 : vector<2x32xi1>, vector<2x32xf32>
      %53 = vector.shape_cast %49 : vector<2x1xi1> to vector<2x1xi1>
      %54 = vector.broadcast %53 : vector<2x1xi1> to vector<2x32xi1>
      %55 = arith.select %54, %44, %23 : vector<2x32xi1>, vector<2x32xf32>
      %cst_25 = arith.constant 0.000000e+00 : f32
      %56 = vector.shape_cast %49 : vector<2x1xi1> to vector<2x1xi1>
      %57 = vector.broadcast %56 : vector<2x1xi1> to vector<2x32xi1>
      %58 = vector.broadcast %cst_25 : f32 to vector<2x32xf32>
      %59 = arith.select %57, %46, %58 : vector<2x32xi1>, vector<2x32xf32>
      %60 = arith.addf %24, %59 : vector<2x32xf32>
      %61 = arith.cmpi slt, %47, %3 : i32
      %cst_26 = arith.constant 0.000000e+00 : f32
      %cst_27 = arith.constant 0xFF800000 : f32
      %62 = arith.select %61, %cst_26, %cst_27 : f32
      %63 = vector.shape_cast %49 : vector<2x1xi1> to vector<2x1xi1>
      %64 = vector.broadcast %63 : vector<2x1xi1> to vector<2x32xi1>
      %65 = vector.broadcast %62 : f32 to vector<2x32xf32>
      %66 = arith.select %64, %46, %65 : vector<2x32xi1>, vector<2x32xf32>
      %67 = arith.maximumf %25, %66 : vector<2x32xf32>
      %68 = vector.extract_strided_slice %19 {offsets = [0, 1, 0], sizes = [2, 1, 128], strides = [1, 1, 1]} : vector<2x16x128xf32> to vector<2x1x128xf32>
      %69 = vector.shape_cast %68 : vector<2x1x128xf32> to vector<2x128xf32>
      %70 = arith.truncf %52 : vector<2x32xf32> to vector<2x32xbf16>
      %cst_28 = arith.constant dense<0.000000e+00> : vector<2x128xf32>
      %71 = tpu.matmul %70, %20, %cst_28 {dimension_numbers = #tpu.dot_dimension_numbers<[1], [0], [0], [1], [0, 0, 1, 1], [], []>} : vector<2x32xbf16>, vector<32x128xbf16>, vector<2x128xf32> -> vector<2x128xf32>
      %72 = arith.addf %69, %71 : vector<2x128xf32>
      %73 = vector.extract_strided_slice %72 {offsets = [0, 0], sizes = [2, 96], strides = [1, 1]} : vector<2x128xf32> to vector<2x96xf32>
      %74 = arith.negf %73 : vector<2x96xf32>
      %75 = math.exp %74 : vector<2x96xf32>
      %cst_29 = arith.constant 1.000000e+00 : f32
      %76 = vector.broadcast %cst_29 : f32 to vector<2x96xf32>
      %77 = arith.addf %76, %75 : vector<2x96xf32>
      %78 = arith.divf %76, %77 : vector<2x96xf32>
      %79 = vector.extract_strided_slice %78 {offsets = [0, 0], sizes = [2, 32], strides = [1, 1]} : vector<2x96xf32> to vector<2x32xf32>
      %80 = vector.extract_strided_slice %78 {offsets = [0, 32], sizes = [2, 32], strides = [1, 1]} : vector<2x96xf32> to vector<2x32xf32>
      %81 = vector.extract_strided_slice %78 {offsets = [0, 64], sizes = [2, 32], strides = [1, 1]} : vector<2x96xf32> to vector<2x32xf32>
      %82 = vector.extract_strided_slice %72 {offsets = [0, 96], sizes = [2, 32], strides = [1, 1]} : vector<2x128xf32> to vector<2x32xf32>
      %83 = math.tanh %82 : vector<2x32xf32>
      %84 = arith.mulf %80, %55 : vector<2x32xf32>
      %85 = arith.mulf %79, %83 : vector<2x32xf32>
      %86 = arith.addf %84, %85 : vector<2x32xf32>
      %87 = math.tanh %86 : vector<2x32xf32>
      %88 = arith.mulf %81, %87 : vector<2x32xf32>
      %c1_i32_30 = arith.constant 1 : i32
      %89 = arith.addi %4, %c1_i32_30 : i32
      %90 = vector.broadcast %89 : i32 to vector<2x1xi32>
      %91 = arith.cmpi slt, %90, %21 : vector<2x1xi32>
      %92 = vector.shape_cast %91 : vector<2x1xi1> to vector<2x1xi1>
      %93 = vector.broadcast %92 : vector<2x1xi1> to vector<2x32xi1>
      %94 = arith.select %93, %88, %52 : vector<2x32xi1>, vector<2x32xf32>
      %95 = vector.shape_cast %91 : vector<2x1xi1> to vector<2x1xi1>
      %96 = vector.broadcast %95 : vector<2x1xi1> to vector<2x32xi1>
      %97 = arith.select %96, %86, %55 : vector<2x32xi1>, vector<2x32xf32>
      %cst_31 = arith.constant 0.000000e+00 : f32
      %98 = vector.shape_cast %91 : vector<2x1xi1> to vector<2x1xi1>
      %99 = vector.broadcast %98 : vector<2x1xi1> to vector<2x32xi1>
      %100 = vector.broadcast %cst_31 : f32 to vector<2x32xf32>
      %101 = arith.select %99, %88, %100 : vector<2x32xi1>, vector<2x32xf32>
      %102 = arith.addf %60, %101 : vector<2x32xf32>
      %103 = arith.cmpi slt, %89, %3 : i32
      %cst_32 = arith.constant 0.000000e+00 : f32
      %cst_33 = arith.constant 0xFF800000 : f32
      %104 = arith.select %103, %cst_32, %cst_33 : f32
      %105 = vector.shape_cast %91 : vector<2x1xi1> to vector<2x1xi1>
      %106 = vector.broadcast %105 : vector<2x1xi1> to vector<2x32xi1>
      %107 = vector.broadcast %104 : f32 to vector<2x32xf32>
      %108 = arith.select %106, %88, %107 : vector<2x32xi1>, vector<2x32xf32>
      %109 = arith.maximumf %67, %108 : vector<2x32xf32>
      %110 = vector.extract_strided_slice %19 {offsets = [0, 2, 0], sizes = [2, 1, 128], strides = [1, 1, 1]} : vector<2x16x128xf32> to vector<2x1x128xf32>
      %111 = vector.shape_cast %110 : vector<2x1x128xf32> to vector<2x128xf32>
      %112 = arith.truncf %94 : vector<2x32xf32> to vector<2x32xbf16>
      %cst_34 = arith.constant dense<0.000000e+00> : vector<2x128xf32>
      %113 = tpu.matmul %112, %20, %cst_34 {dimension_numbers = #tpu.dot_dimension_numbers<[1], [0], [0], [1], [0, 0, 1, 1], [], []>} : vector<2x32xbf16>, vector<32x128xbf16>, vector<2x128xf32> -> vector<2x128xf32>
      %114 = arith.addf %111, %113 : vector<2x128xf32>
      %115 = vector.extract_strided_slice %114 {offsets = [0, 0], sizes = [2, 96], strides = [1, 1]} : vector<2x128xf32> to vector<2x96xf32>
      %116 = arith.negf %115 : vector<2x96xf32>
      %117 = math.exp %116 : vector<2x96xf32>
      %cst_35 = arith.constant 1.000000e+00 : f32
      %118 = vector.broadcast %cst_35 : f32 to vector<2x96xf32>
      %119 = arith.addf %118, %117 : vector<2x96xf32>
      %120 = arith.divf %118, %119 : vector<2x96xf32>
      %121 = vector.extract_strided_slice %120 {offsets = [0, 0], sizes = [2, 32], strides = [1, 1]} : vector<2x96xf32> to vector<2x32xf32>
      %122 = vector.extract_strided_slice %120 {offsets = [0, 32], sizes = [2, 32], strides = [1, 1]} : vector<2x96xf32> to vector<2x32xf32>
      %123 = vector.extract_strided_slice %120 {offsets = [0, 64], sizes = [2, 32], strides = [1, 1]} : vector<2x96xf32> to vector<2x32xf32>
      %124 = vector.extract_strided_slice %114 {offsets = [0, 96], sizes = [2, 32], strides = [1, 1]} : vector<2x128xf32> to vector<2x32xf32>
      %125 = math.tanh %124 : vector<2x32xf32>
      %126 = arith.mulf %122, %97 : vector<2x32xf32>
      %127 = arith.mulf %121, %125 : vector<2x32xf32>
      %128 = arith.addf %126, %127 : vector<2x32xf32>
      %129 = math.tanh %128 : vector<2x32xf32>
      %130 = arith.mulf %123, %129 : vector<2x32xf32>
      %c2_i32 = arith.constant 2 : i32
      %131 = arith.addi %4, %c2_i32 : i32
      %132 = vector.broadcast %131 : i32 to vector<2x1xi32>
      %133 = arith.cmpi slt, %132, %21 : vector<2x1xi32>
      %134 = vector.shape_cast %133 : vector<2x1xi1> to vector<2x1xi1>
      %135 = vector.broadcast %134 : vector<2x1xi1> to vector<2x32xi1>
      %136 = arith.select %135, %130, %94 : vector<2x32xi1>, vector<2x32xf32>
      %137 = vector.shape_cast %133 : vector<2x1xi1> to vector<2x1xi1>
      %138 = vector.broadcast %137 : vector<2x1xi1> to vector<2x32xi1>
      %139 = arith.select %138, %128, %97 : vector<2x32xi1>, vector<2x32xf32>
      %cst_36 = arith.constant 0.000000e+00 : f32
      %140 = vector.shape_cast %133 : vector<2x1xi1> to vector<2x1xi1>
      %141 = vector.broadcast %140 : vector<2x1xi1> to vector<2x32xi1>
      %142 = vector.broadcast %cst_36 : f32 to vector<2x32xf32>
      %143 = arith.select %141, %130, %142 : vector<2x32xi1>, vector<2x32xf32>
      %144 = arith.addf %102, %143 : vector<2x32xf32>
      %145 = arith.cmpi slt, %131, %3 : i32
      %cst_37 = arith.constant 0.000000e+00 : f32
      %cst_38 = arith.constant 0xFF800000 : f32
      %146 = arith.select %145, %cst_37, %cst_38 : f32
      %147 = vector.shape_cast %133 : vector<2x1xi1> to vector<2x1xi1>
      %148 = vector.broadcast %147 : vector<2x1xi1> to vector<2x32xi1>
      %149 = vector.broadcast %146 : f32 to vector<2x32xf32>
      %150 = arith.select %148, %130, %149 : vector<2x32xi1>, vector<2x32xf32>
      %151 = arith.maximumf %109, %150 : vector<2x32xf32>
      %152 = vector.extract_strided_slice %19 {offsets = [0, 3, 0], sizes = [2, 1, 128], strides = [1, 1, 1]} : vector<2x16x128xf32> to vector<2x1x128xf32>
      %153 = vector.shape_cast %152 : vector<2x1x128xf32> to vector<2x128xf32>
      %154 = arith.truncf %136 : vector<2x32xf32> to vector<2x32xbf16>
      %cst_39 = arith.constant dense<0.000000e+00> : vector<2x128xf32>
      %155 = tpu.matmul %154, %20, %cst_39 {dimension_numbers = #tpu.dot_dimension_numbers<[1], [0], [0], [1], [0, 0, 1, 1], [], []>} : vector<2x32xbf16>, vector<32x128xbf16>, vector<2x128xf32> -> vector<2x128xf32>
      %156 = arith.addf %153, %155 : vector<2x128xf32>
      %157 = vector.extract_strided_slice %156 {offsets = [0, 0], sizes = [2, 96], strides = [1, 1]} : vector<2x128xf32> to vector<2x96xf32>
      %158 = arith.negf %157 : vector<2x96xf32>
      %159 = math.exp %158 : vector<2x96xf32>
      %cst_40 = arith.constant 1.000000e+00 : f32
      %160 = vector.broadcast %cst_40 : f32 to vector<2x96xf32>
      %161 = arith.addf %160, %159 : vector<2x96xf32>
      %162 = arith.divf %160, %161 : vector<2x96xf32>
      %163 = vector.extract_strided_slice %162 {offsets = [0, 0], sizes = [2, 32], strides = [1, 1]} : vector<2x96xf32> to vector<2x32xf32>
      %164 = vector.extract_strided_slice %162 {offsets = [0, 32], sizes = [2, 32], strides = [1, 1]} : vector<2x96xf32> to vector<2x32xf32>
      %165 = vector.extract_strided_slice %162 {offsets = [0, 64], sizes = [2, 32], strides = [1, 1]} : vector<2x96xf32> to vector<2x32xf32>
      %166 = vector.extract_strided_slice %156 {offsets = [0, 96], sizes = [2, 32], strides = [1, 1]} : vector<2x128xf32> to vector<2x32xf32>
      %167 = math.tanh %166 : vector<2x32xf32>
      %168 = arith.mulf %164, %139 : vector<2x32xf32>
      %169 = arith.mulf %163, %167 : vector<2x32xf32>
      %170 = arith.addf %168, %169 : vector<2x32xf32>
      %171 = math.tanh %170 : vector<2x32xf32>
      %172 = arith.mulf %165, %171 : vector<2x32xf32>
      %c3_i32 = arith.constant 3 : i32
      %173 = arith.addi %4, %c3_i32 : i32
      %174 = vector.broadcast %173 : i32 to vector<2x1xi32>
      %175 = arith.cmpi slt, %174, %21 : vector<2x1xi32>
      %176 = vector.shape_cast %175 : vector<2x1xi1> to vector<2x1xi1>
      %177 = vector.broadcast %176 : vector<2x1xi1> to vector<2x32xi1>
      %178 = arith.select %177, %172, %136 : vector<2x32xi1>, vector<2x32xf32>
      %179 = vector.shape_cast %175 : vector<2x1xi1> to vector<2x1xi1>
      %180 = vector.broadcast %179 : vector<2x1xi1> to vector<2x32xi1>
      %181 = arith.select %180, %170, %139 : vector<2x32xi1>, vector<2x32xf32>
      %cst_41 = arith.constant 0.000000e+00 : f32
      %182 = vector.shape_cast %175 : vector<2x1xi1> to vector<2x1xi1>
      %183 = vector.broadcast %182 : vector<2x1xi1> to vector<2x32xi1>
      %184 = vector.broadcast %cst_41 : f32 to vector<2x32xf32>
      %185 = arith.select %183, %172, %184 : vector<2x32xi1>, vector<2x32xf32>
      %186 = arith.addf %144, %185 : vector<2x32xf32>
      %187 = arith.cmpi slt, %173, %3 : i32
      %cst_42 = arith.constant 0.000000e+00 : f32
      %cst_43 = arith.constant 0xFF800000 : f32
      %188 = arith.select %187, %cst_42, %cst_43 : f32
      %189 = vector.shape_cast %175 : vector<2x1xi1> to vector<2x1xi1>
      %190 = vector.broadcast %189 : vector<2x1xi1> to vector<2x32xi1>
      %191 = vector.broadcast %188 : f32 to vector<2x32xf32>
      %192 = arith.select %190, %172, %191 : vector<2x32xi1>, vector<2x32xf32>
      %193 = arith.maximumf %151, %192 : vector<2x32xf32>
      %194 = vector.extract_strided_slice %19 {offsets = [0, 4, 0], sizes = [2, 1, 128], strides = [1, 1, 1]} : vector<2x16x128xf32> to vector<2x1x128xf32>
      %195 = vector.shape_cast %194 : vector<2x1x128xf32> to vector<2x128xf32>
      %196 = arith.truncf %178 : vector<2x32xf32> to vector<2x32xbf16>
      %cst_44 = arith.constant dense<0.000000e+00> : vector<2x128xf32>
      %197 = tpu.matmul %196, %20, %cst_44 {dimension_numbers = #tpu.dot_dimension_numbers<[1], [0], [0], [1], [0, 0, 1, 1], [], []>} : vector<2x32xbf16>, vector<32x128xbf16>, vector<2x128xf32> -> vector<2x128xf32>
      %198 = arith.addf %195, %197 : vector<2x128xf32>
      %199 = vector.extract_strided_slice %198 {offsets = [0, 0], sizes = [2, 96], strides = [1, 1]} : vector<2x128xf32> to vector<2x96xf32>
      %200 = arith.negf %199 : vector<2x96xf32>
      %201 = math.exp %200 : vector<2x96xf32>
      %cst_45 = arith.constant 1.000000e+00 : f32
      %202 = vector.broadcast %cst_45 : f32 to vector<2x96xf32>
      %203 = arith.addf %202, %201 : vector<2x96xf32>
      %204 = arith.divf %202, %203 : vector<2x96xf32>
      %205 = vector.extract_strided_slice %204 {offsets = [0, 0], sizes = [2, 32], strides = [1, 1]} : vector<2x96xf32> to vector<2x32xf32>
      %206 = vector.extract_strided_slice %204 {offsets = [0, 32], sizes = [2, 32], strides = [1, 1]} : vector<2x96xf32> to vector<2x32xf32>
      %207 = vector.extract_strided_slice %204 {offsets = [0, 64], sizes = [2, 32], strides = [1, 1]} : vector<2x96xf32> to vector<2x32xf32>
      %208 = vector.extract_strided_slice %198 {offsets = [0, 96], sizes = [2, 32], strides = [1, 1]} : vector<2x128xf32> to vector<2x32xf32>
      %209 = math.tanh %208 : vector<2x32xf32>
      %210 = arith.mulf %206, %181 : vector<2x32xf32>
      %211 = arith.mulf %205, %209 : vector<2x32xf32>
      %212 = arith.addf %210, %211 : vector<2x32xf32>
      %213 = math.tanh %212 : vector<2x32xf32>
      %214 = arith.mulf %207, %213 : vector<2x32xf32>
      %c4_i32 = arith.constant 4 : i32
      %215 = arith.addi %4, %c4_i32 : i32
      %216 = vector.broadcast %215 : i32 to vector<2x1xi32>
      %217 = arith.cmpi slt, %216, %21 : vector<2x1xi32>
      %218 = vector.shape_cast %217 : vector<2x1xi1> to vector<2x1xi1>
      %219 = vector.broadcast %218 : vector<2x1xi1> to vector<2x32xi1>
      %220 = arith.select %219, %214, %178 : vector<2x32xi1>, vector<2x32xf32>
      %221 = vector.shape_cast %217 : vector<2x1xi1> to vector<2x1xi1>
      %222 = vector.broadcast %221 : vector<2x1xi1> to vector<2x32xi1>
      %223 = arith.select %222, %212, %181 : vector<2x32xi1>, vector<2x32xf32>
      %cst_46 = arith.constant 0.000000e+00 : f32
      %224 = vector.shape_cast %217 : vector<2x1xi1> to vector<2x1xi1>
      %225 = vector.broadcast %224 : vector<2x1xi1> to vector<2x32xi1>
      %226 = vector.broadcast %cst_46 : f32 to vector<2x32xf32>
      %227 = arith.select %225, %214, %226 : vector<2x32xi1>, vector<2x32xf32>
      %228 = arith.addf %186, %227 : vector<2x32xf32>
      %229 = arith.cmpi slt, %215, %3 : i32
      %cst_47 = arith.constant 0.000000e+00 : f32
      %cst_48 = arith.constant 0xFF800000 : f32
      %230 = arith.select %229, %cst_47, %cst_48 : f32
      %231 = vector.shape_cast %217 : vector<2x1xi1> to vector<2x1xi1>
      %232 = vector.broadcast %231 : vector<2x1xi1> to vector<2x32xi1>
      %233 = vector.broadcast %230 : f32 to vector<2x32xf32>
      %234 = arith.select %232, %214, %233 : vector<2x32xi1>, vector<2x32xf32>
      %235 = arith.maximumf %193, %234 : vector<2x32xf32>
      %236 = vector.extract_strided_slice %19 {offsets = [0, 5, 0], sizes = [2, 1, 128], strides = [1, 1, 1]} : vector<2x16x128xf32> to vector<2x1x128xf32>
      %237 = vector.shape_cast %236 : vector<2x1x128xf32> to vector<2x128xf32>
      %238 = arith.truncf %220 : vector<2x32xf32> to vector<2x32xbf16>
      %cst_49 = arith.constant dense<0.000000e+00> : vector<2x128xf32>
      %239 = tpu.matmul %238, %20, %cst_49 {dimension_numbers = #tpu.dot_dimension_numbers<[1], [0], [0], [1], [0, 0, 1, 1], [], []>} : vector<2x32xbf16>, vector<32x128xbf16>, vector<2x128xf32> -> vector<2x128xf32>
      %240 = arith.addf %237, %239 : vector<2x128xf32>
      %241 = vector.extract_strided_slice %240 {offsets = [0, 0], sizes = [2, 96], strides = [1, 1]} : vector<2x128xf32> to vector<2x96xf32>
      %242 = arith.negf %241 : vector<2x96xf32>
      %243 = math.exp %242 : vector<2x96xf32>
      %cst_50 = arith.constant 1.000000e+00 : f32
      %244 = vector.broadcast %cst_50 : f32 to vector<2x96xf32>
      %245 = arith.addf %244, %243 : vector<2x96xf32>
      %246 = arith.divf %244, %245 : vector<2x96xf32>
      %247 = vector.extract_strided_slice %246 {offsets = [0, 0], sizes = [2, 32], strides = [1, 1]} : vector<2x96xf32> to vector<2x32xf32>
      %248 = vector.extract_strided_slice %246 {offsets = [0, 32], sizes = [2, 32], strides = [1, 1]} : vector<2x96xf32> to vector<2x32xf32>
      %249 = vector.extract_strided_slice %246 {offsets = [0, 64], sizes = [2, 32], strides = [1, 1]} : vector<2x96xf32> to vector<2x32xf32>
      %250 = vector.extract_strided_slice %240 {offsets = [0, 96], sizes = [2, 32], strides = [1, 1]} : vector<2x128xf32> to vector<2x32xf32>
      %251 = math.tanh %250 : vector<2x32xf32>
      %252 = arith.mulf %248, %223 : vector<2x32xf32>
      %253 = arith.mulf %247, %251 : vector<2x32xf32>
      %254 = arith.addf %252, %253 : vector<2x32xf32>
      %255 = math.tanh %254 : vector<2x32xf32>
      %256 = arith.mulf %249, %255 : vector<2x32xf32>
      %c5_i32 = arith.constant 5 : i32
      %257 = arith.addi %4, %c5_i32 : i32
      %258 = vector.broadcast %257 : i32 to vector<2x1xi32>
      %259 = arith.cmpi slt, %258, %21 : vector<2x1xi32>
      %260 = vector.shape_cast %259 : vector<2x1xi1> to vector<2x1xi1>
      %261 = vector.broadcast %260 : vector<2x1xi1> to vector<2x32xi1>
      %262 = arith.select %261, %256, %220 : vector<2x32xi1>, vector<2x32xf32>
      %263 = vector.shape_cast %259 : vector<2x1xi1> to vector<2x1xi1>
      %264 = vector.broadcast %263 : vector<2x1xi1> to vector<2x32xi1>
      %265 = arith.select %264, %254, %223 : vector<2x32xi1>, vector<2x32xf32>
      %cst_51 = arith.constant 0.000000e+00 : f32
      %266 = vector.shape_cast %259 : vector<2x1xi1> to vector<2x1xi1>
      %267 = vector.broadcast %266 : vector<2x1xi1> to vector<2x32xi1>
      %268 = vector.broadcast %cst_51 : f32 to vector<2x32xf32>
      %269 = arith.select %267, %256, %268 : vector<2x32xi1>, vector<2x32xf32>
      %270 = arith.addf %228, %269 : vector<2x32xf32>
      %271 = arith.cmpi slt, %257, %3 : i32
      %cst_52 = arith.constant 0.000000e+00 : f32
      %cst_53 = arith.constant 0xFF800000 : f32
      %272 = arith.select %271, %cst_52, %cst_53 : f32
      %273 = vector.shape_cast %259 : vector<2x1xi1> to vector<2x1xi1>
      %274 = vector.broadcast %273 : vector<2x1xi1> to vector<2x32xi1>
      %275 = vector.broadcast %272 : f32 to vector<2x32xf32>
      %276 = arith.select %274, %256, %275 : vector<2x32xi1>, vector<2x32xf32>
      %277 = arith.maximumf %235, %276 : vector<2x32xf32>
      %278 = vector.extract_strided_slice %19 {offsets = [0, 6, 0], sizes = [2, 1, 128], strides = [1, 1, 1]} : vector<2x16x128xf32> to vector<2x1x128xf32>
      %279 = vector.shape_cast %278 : vector<2x1x128xf32> to vector<2x128xf32>
      %280 = arith.truncf %262 : vector<2x32xf32> to vector<2x32xbf16>
      %cst_54 = arith.constant dense<0.000000e+00> : vector<2x128xf32>
      %281 = tpu.matmul %280, %20, %cst_54 {dimension_numbers = #tpu.dot_dimension_numbers<[1], [0], [0], [1], [0, 0, 1, 1], [], []>} : vector<2x32xbf16>, vector<32x128xbf16>, vector<2x128xf32> -> vector<2x128xf32>
      %282 = arith.addf %279, %281 : vector<2x128xf32>
      %283 = vector.extract_strided_slice %282 {offsets = [0, 0], sizes = [2, 96], strides = [1, 1]} : vector<2x128xf32> to vector<2x96xf32>
      %284 = arith.negf %283 : vector<2x96xf32>
      %285 = math.exp %284 : vector<2x96xf32>
      %cst_55 = arith.constant 1.000000e+00 : f32
      %286 = vector.broadcast %cst_55 : f32 to vector<2x96xf32>
      %287 = arith.addf %286, %285 : vector<2x96xf32>
      %288 = arith.divf %286, %287 : vector<2x96xf32>
      %289 = vector.extract_strided_slice %288 {offsets = [0, 0], sizes = [2, 32], strides = [1, 1]} : vector<2x96xf32> to vector<2x32xf32>
      %290 = vector.extract_strided_slice %288 {offsets = [0, 32], sizes = [2, 32], strides = [1, 1]} : vector<2x96xf32> to vector<2x32xf32>
      %291 = vector.extract_strided_slice %288 {offsets = [0, 64], sizes = [2, 32], strides = [1, 1]} : vector<2x96xf32> to vector<2x32xf32>
      %292 = vector.extract_strided_slice %282 {offsets = [0, 96], sizes = [2, 32], strides = [1, 1]} : vector<2x128xf32> to vector<2x32xf32>
      %293 = math.tanh %292 : vector<2x32xf32>
      %294 = arith.mulf %290, %265 : vector<2x32xf32>
      %295 = arith.mulf %289, %293 : vector<2x32xf32>
      %296 = arith.addf %294, %295 : vector<2x32xf32>
      %297 = math.tanh %296 : vector<2x32xf32>
      %298 = arith.mulf %291, %297 : vector<2x32xf32>
      %c6_i32 = arith.constant 6 : i32
      %299 = arith.addi %4, %c6_i32 : i32
      %300 = vector.broadcast %299 : i32 to vector<2x1xi32>
      %301 = arith.cmpi slt, %300, %21 : vector<2x1xi32>
      %302 = vector.shape_cast %301 : vector<2x1xi1> to vector<2x1xi1>
      %303 = vector.broadcast %302 : vector<2x1xi1> to vector<2x32xi1>
      %304 = arith.select %303, %298, %262 : vector<2x32xi1>, vector<2x32xf32>
      %305 = vector.shape_cast %301 : vector<2x1xi1> to vector<2x1xi1>
      %306 = vector.broadcast %305 : vector<2x1xi1> to vector<2x32xi1>
      %307 = arith.select %306, %296, %265 : vector<2x32xi1>, vector<2x32xf32>
      %cst_56 = arith.constant 0.000000e+00 : f32
      %308 = vector.shape_cast %301 : vector<2x1xi1> to vector<2x1xi1>
      %309 = vector.broadcast %308 : vector<2x1xi1> to vector<2x32xi1>
      %310 = vector.broadcast %cst_56 : f32 to vector<2x32xf32>
      %311 = arith.select %309, %298, %310 : vector<2x32xi1>, vector<2x32xf32>
      %312 = arith.addf %270, %311 : vector<2x32xf32>
      %313 = arith.cmpi slt, %299, %3 : i32
      %cst_57 = arith.constant 0.000000e+00 : f32
      %cst_58 = arith.constant 0xFF800000 : f32
      %314 = arith.select %313, %cst_57, %cst_58 : f32
      %315 = vector.shape_cast %301 : vector<2x1xi1> to vector<2x1xi1>
      %316 = vector.broadcast %315 : vector<2x1xi1> to vector<2x32xi1>
      %317 = vector.broadcast %314 : f32 to vector<2x32xf32>
      %318 = arith.select %316, %298, %317 : vector<2x32xi1>, vector<2x32xf32>
      %319 = arith.maximumf %277, %318 : vector<2x32xf32>
      %320 = vector.extract_strided_slice %19 {offsets = [0, 7, 0], sizes = [2, 1, 128], strides = [1, 1, 1]} : vector<2x16x128xf32> to vector<2x1x128xf32>
      %321 = vector.shape_cast %320 : vector<2x1x128xf32> to vector<2x128xf32>
      %322 = arith.truncf %304 : vector<2x32xf32> to vector<2x32xbf16>
      %cst_59 = arith.constant dense<0.000000e+00> : vector<2x128xf32>
      %323 = tpu.matmul %322, %20, %cst_59 {dimension_numbers = #tpu.dot_dimension_numbers<[1], [0], [0], [1], [0, 0, 1, 1], [], []>} : vector<2x32xbf16>, vector<32x128xbf16>, vector<2x128xf32> -> vector<2x128xf32>
      %324 = arith.addf %321, %323 : vector<2x128xf32>
      %325 = vector.extract_strided_slice %324 {offsets = [0, 0], sizes = [2, 96], strides = [1, 1]} : vector<2x128xf32> to vector<2x96xf32>
      %326 = arith.negf %325 : vector<2x96xf32>
      %327 = math.exp %326 : vector<2x96xf32>
      %cst_60 = arith.constant 1.000000e+00 : f32
      %328 = vector.broadcast %cst_60 : f32 to vector<2x96xf32>
      %329 = arith.addf %328, %327 : vector<2x96xf32>
      %330 = arith.divf %328, %329 : vector<2x96xf32>
      %331 = vector.extract_strided_slice %330 {offsets = [0, 0], sizes = [2, 32], strides = [1, 1]} : vector<2x96xf32> to vector<2x32xf32>
      %332 = vector.extract_strided_slice %330 {offsets = [0, 32], sizes = [2, 32], strides = [1, 1]} : vector<2x96xf32> to vector<2x32xf32>
      %333 = vector.extract_strided_slice %330 {offsets = [0, 64], sizes = [2, 32], strides = [1, 1]} : vector<2x96xf32> to vector<2x32xf32>
      %334 = vector.extract_strided_slice %324 {offsets = [0, 96], sizes = [2, 32], strides = [1, 1]} : vector<2x128xf32> to vector<2x32xf32>
      %335 = math.tanh %334 : vector<2x32xf32>
      %336 = arith.mulf %332, %307 : vector<2x32xf32>
      %337 = arith.mulf %331, %335 : vector<2x32xf32>
      %338 = arith.addf %336, %337 : vector<2x32xf32>
      %339 = math.tanh %338 : vector<2x32xf32>
      %340 = arith.mulf %333, %339 : vector<2x32xf32>
      %c7_i32 = arith.constant 7 : i32
      %341 = arith.addi %4, %c7_i32 : i32
      %342 = vector.broadcast %341 : i32 to vector<2x1xi32>
      %343 = arith.cmpi slt, %342, %21 : vector<2x1xi32>
      %344 = vector.shape_cast %343 : vector<2x1xi1> to vector<2x1xi1>
      %345 = vector.broadcast %344 : vector<2x1xi1> to vector<2x32xi1>
      %346 = arith.select %345, %340, %304 : vector<2x32xi1>, vector<2x32xf32>
      %347 = vector.shape_cast %343 : vector<2x1xi1> to vector<2x1xi1>
      %348 = vector.broadcast %347 : vector<2x1xi1> to vector<2x32xi1>
      %349 = arith.select %348, %338, %307 : vector<2x32xi1>, vector<2x32xf32>
      %cst_61 = arith.constant 0.000000e+00 : f32
      %350 = vector.shape_cast %343 : vector<2x1xi1> to vector<2x1xi1>
      %351 = vector.broadcast %350 : vector<2x1xi1> to vector<2x32xi1>
      %352 = vector.broadcast %cst_61 : f32 to vector<2x32xf32>
      %353 = arith.select %351, %340, %352 : vector<2x32xi1>, vector<2x32xf32>
      %354 = arith.addf %312, %353 : vector<2x32xf32>
      %355 = arith.cmpi slt, %341, %3 : i32
      %cst_62 = arith.constant 0.000000e+00 : f32
      %cst_63 = arith.constant 0xFF800000 : f32
      %356 = arith.select %355, %cst_62, %cst_63 : f32
      %357 = vector.shape_cast %343 : vector<2x1xi1> to vector<2x1xi1>
      %358 = vector.broadcast %357 : vector<2x1xi1> to vector<2x32xi1>
      %359 = vector.broadcast %356 : f32 to vector<2x32xf32>
      %360 = arith.select %358, %340, %359 : vector<2x32xi1>, vector<2x32xf32>
      %361 = arith.maximumf %319, %360 : vector<2x32xf32>
      %362 = vector.extract_strided_slice %19 {offsets = [0, 8, 0], sizes = [2, 1, 128], strides = [1, 1, 1]} : vector<2x16x128xf32> to vector<2x1x128xf32>
      %363 = vector.shape_cast %362 : vector<2x1x128xf32> to vector<2x128xf32>
      %364 = arith.truncf %346 : vector<2x32xf32> to vector<2x32xbf16>
      %cst_64 = arith.constant dense<0.000000e+00> : vector<2x128xf32>
      %365 = tpu.matmul %364, %20, %cst_64 {dimension_numbers = #tpu.dot_dimension_numbers<[1], [0], [0], [1], [0, 0, 1, 1], [], []>} : vector<2x32xbf16>, vector<32x128xbf16>, vector<2x128xf32> -> vector<2x128xf32>
      %366 = arith.addf %363, %365 : vector<2x128xf32>
      %367 = vector.extract_strided_slice %366 {offsets = [0, 0], sizes = [2, 96], strides = [1, 1]} : vector<2x128xf32> to vector<2x96xf32>
      %368 = arith.negf %367 : vector<2x96xf32>
      %369 = math.exp %368 : vector<2x96xf32>
      %cst_65 = arith.constant 1.000000e+00 : f32
      %370 = vector.broadcast %cst_65 : f32 to vector<2x96xf32>
      %371 = arith.addf %370, %369 : vector<2x96xf32>
      %372 = arith.divf %370, %371 : vector<2x96xf32>
      %373 = vector.extract_strided_slice %372 {offsets = [0, 0], sizes = [2, 32], strides = [1, 1]} : vector<2x96xf32> to vector<2x32xf32>
      %374 = vector.extract_strided_slice %372 {offsets = [0, 32], sizes = [2, 32], strides = [1, 1]} : vector<2x96xf32> to vector<2x32xf32>
      %375 = vector.extract_strided_slice %372 {offsets = [0, 64], sizes = [2, 32], strides = [1, 1]} : vector<2x96xf32> to vector<2x32xf32>
      %376 = vector.extract_strided_slice %366 {offsets = [0, 96], sizes = [2, 32], strides = [1, 1]} : vector<2x128xf32> to vector<2x32xf32>
      %377 = math.tanh %376 : vector<2x32xf32>
      %378 = arith.mulf %374, %349 : vector<2x32xf32>
      %379 = arith.mulf %373, %377 : vector<2x32xf32>
      %380 = arith.addf %378, %379 : vector<2x32xf32>
      %381 = math.tanh %380 : vector<2x32xf32>
      %382 = arith.mulf %375, %381 : vector<2x32xf32>
      %c8_i32 = arith.constant 8 : i32
      %383 = arith.addi %4, %c8_i32 : i32
      %384 = vector.broadcast %383 : i32 to vector<2x1xi32>
      %385 = arith.cmpi slt, %384, %21 : vector<2x1xi32>
      %386 = vector.shape_cast %385 : vector<2x1xi1> to vector<2x1xi1>
      %387 = vector.broadcast %386 : vector<2x1xi1> to vector<2x32xi1>
      %388 = arith.select %387, %382, %346 : vector<2x32xi1>, vector<2x32xf32>
      %389 = vector.shape_cast %385 : vector<2x1xi1> to vector<2x1xi1>
      %390 = vector.broadcast %389 : vector<2x1xi1> to vector<2x32xi1>
      %391 = arith.select %390, %380, %349 : vector<2x32xi1>, vector<2x32xf32>
      %cst_66 = arith.constant 0.000000e+00 : f32
      %392 = vector.shape_cast %385 : vector<2x1xi1> to vector<2x1xi1>
      %393 = vector.broadcast %392 : vector<2x1xi1> to vector<2x32xi1>
      %394 = vector.broadcast %cst_66 : f32 to vector<2x32xf32>
      %395 = arith.select %393, %382, %394 : vector<2x32xi1>, vector<2x32xf32>
      %396 = arith.addf %354, %395 : vector<2x32xf32>
      %397 = arith.cmpi slt, %383, %3 : i32
      %cst_67 = arith.constant 0.000000e+00 : f32
      %cst_68 = arith.constant 0xFF800000 : f32
      %398 = arith.select %397, %cst_67, %cst_68 : f32
      %399 = vector.shape_cast %385 : vector<2x1xi1> to vector<2x1xi1>
      %400 = vector.broadcast %399 : vector<2x1xi1> to vector<2x32xi1>
      %401 = vector.broadcast %398 : f32 to vector<2x32xf32>
      %402 = arith.select %400, %382, %401 : vector<2x32xi1>, vector<2x32xf32>
      %403 = arith.maximumf %361, %402 : vector<2x32xf32>
      %404 = vector.extract_strided_slice %19 {offsets = [0, 9, 0], sizes = [2, 1, 128], strides = [1, 1, 1]} : vector<2x16x128xf32> to vector<2x1x128xf32>
      %405 = vector.shape_cast %404 : vector<2x1x128xf32> to vector<2x128xf32>
      %406 = arith.truncf %388 : vector<2x32xf32> to vector<2x32xbf16>
      %cst_69 = arith.constant dense<0.000000e+00> : vector<2x128xf32>
      %407 = tpu.matmul %406, %20, %cst_69 {dimension_numbers = #tpu.dot_dimension_numbers<[1], [0], [0], [1], [0, 0, 1, 1], [], []>} : vector<2x32xbf16>, vector<32x128xbf16>, vector<2x128xf32> -> vector<2x128xf32>
      %408 = arith.addf %405, %407 : vector<2x128xf32>
      %409 = vector.extract_strided_slice %408 {offsets = [0, 0], sizes = [2, 96], strides = [1, 1]} : vector<2x128xf32> to vector<2x96xf32>
      %410 = arith.negf %409 : vector<2x96xf32>
      %411 = math.exp %410 : vector<2x96xf32>
      %cst_70 = arith.constant 1.000000e+00 : f32
      %412 = vector.broadcast %cst_70 : f32 to vector<2x96xf32>
      %413 = arith.addf %412, %411 : vector<2x96xf32>
      %414 = arith.divf %412, %413 : vector<2x96xf32>
      %415 = vector.extract_strided_slice %414 {offsets = [0, 0], sizes = [2, 32], strides = [1, 1]} : vector<2x96xf32> to vector<2x32xf32>
      %416 = vector.extract_strided_slice %414 {offsets = [0, 32], sizes = [2, 32], strides = [1, 1]} : vector<2x96xf32> to vector<2x32xf32>
      %417 = vector.extract_strided_slice %414 {offsets = [0, 64], sizes = [2, 32], strides = [1, 1]} : vector<2x96xf32> to vector<2x32xf32>
      %418 = vector.extract_strided_slice %408 {offsets = [0, 96], sizes = [2, 32], strides = [1, 1]} : vector<2x128xf32> to vector<2x32xf32>
      %419 = math.tanh %418 : vector<2x32xf32>
      %420 = arith.mulf %416, %391 : vector<2x32xf32>
      %421 = arith.mulf %415, %419 : vector<2x32xf32>
      %422 = arith.addf %420, %421 : vector<2x32xf32>
      %423 = math.tanh %422 : vector<2x32xf32>
      %424 = arith.mulf %417, %423 : vector<2x32xf32>
      %c9_i32 = arith.constant 9 : i32
      %425 = arith.addi %4, %c9_i32 : i32
      %426 = vector.broadcast %425 : i32 to vector<2x1xi32>
      %427 = arith.cmpi slt, %426, %21 : vector<2x1xi32>
      %428 = vector.shape_cast %427 : vector<2x1xi1> to vector<2x1xi1>
      %429 = vector.broadcast %428 : vector<2x1xi1> to vector<2x32xi1>
      %430 = arith.select %429, %424, %388 : vector<2x32xi1>, vector<2x32xf32>
      %431 = vector.shape_cast %427 : vector<2x1xi1> to vector<2x1xi1>
      %432 = vector.broadcast %431 : vector<2x1xi1> to vector<2x32xi1>
      %433 = arith.select %432, %422, %391 : vector<2x32xi1>, vector<2x32xf32>
      %cst_71 = arith.constant 0.000000e+00 : f32
      %434 = vector.shape_cast %427 : vector<2x1xi1> to vector<2x1xi1>
      %435 = vector.broadcast %434 : vector<2x1xi1> to vector<2x32xi1>
      %436 = vector.broadcast %cst_71 : f32 to vector<2x32xf32>
      %437 = arith.select %435, %424, %436 : vector<2x32xi1>, vector<2x32xf32>
      %438 = arith.addf %396, %437 : vector<2x32xf32>
      %439 = arith.cmpi slt, %425, %3 : i32
      %cst_72 = arith.constant 0.000000e+00 : f32
      %cst_73 = arith.constant 0xFF800000 : f32
      %440 = arith.select %439, %cst_72, %cst_73 : f32
      %441 = vector.shape_cast %427 : vector<2x1xi1> to vector<2x1xi1>
      %442 = vector.broadcast %441 : vector<2x1xi1> to vector<2x32xi1>
      %443 = vector.broadcast %440 : f32 to vector<2x32xf32>
      %444 = arith.select %442, %424, %443 : vector<2x32xi1>, vector<2x32xf32>
      %445 = arith.maximumf %403, %444 : vector<2x32xf32>
      %446 = vector.extract_strided_slice %19 {offsets = [0, 10, 0], sizes = [2, 1, 128], strides = [1, 1, 1]} : vector<2x16x128xf32> to vector<2x1x128xf32>
      %447 = vector.shape_cast %446 : vector<2x1x128xf32> to vector<2x128xf32>
      %448 = arith.truncf %430 : vector<2x32xf32> to vector<2x32xbf16>
      %cst_74 = arith.constant dense<0.000000e+00> : vector<2x128xf32>
      %449 = tpu.matmul %448, %20, %cst_74 {dimension_numbers = #tpu.dot_dimension_numbers<[1], [0], [0], [1], [0, 0, 1, 1], [], []>} : vector<2x32xbf16>, vector<32x128xbf16>, vector<2x128xf32> -> vector<2x128xf32>
      %450 = arith.addf %447, %449 : vector<2x128xf32>
      %451 = vector.extract_strided_slice %450 {offsets = [0, 0], sizes = [2, 96], strides = [1, 1]} : vector<2x128xf32> to vector<2x96xf32>
      %452 = arith.negf %451 : vector<2x96xf32>
      %453 = math.exp %452 : vector<2x96xf32>
      %cst_75 = arith.constant 1.000000e+00 : f32
      %454 = vector.broadcast %cst_75 : f32 to vector<2x96xf32>
      %455 = arith.addf %454, %453 : vector<2x96xf32>
      %456 = arith.divf %454, %455 : vector<2x96xf32>
      %457 = vector.extract_strided_slice %456 {offsets = [0, 0], sizes = [2, 32], strides = [1, 1]} : vector<2x96xf32> to vector<2x32xf32>
      %458 = vector.extract_strided_slice %456 {offsets = [0, 32], sizes = [2, 32], strides = [1, 1]} : vector<2x96xf32> to vector<2x32xf32>
      %459 = vector.extract_strided_slice %456 {offsets = [0, 64], sizes = [2, 32], strides = [1, 1]} : vector<2x96xf32> to vector<2x32xf32>
      %460 = vector.extract_strided_slice %450 {offsets = [0, 96], sizes = [2, 32], strides = [1, 1]} : vector<2x128xf32> to vector<2x32xf32>
      %461 = math.tanh %460 : vector<2x32xf32>
      %462 = arith.mulf %458, %433 : vector<2x32xf32>
      %463 = arith.mulf %457, %461 : vector<2x32xf32>
      %464 = arith.addf %462, %463 : vector<2x32xf32>
      %465 = math.tanh %464 : vector<2x32xf32>
      %466 = arith.mulf %459, %465 : vector<2x32xf32>
      %c10_i32 = arith.constant 10 : i32
      %467 = arith.addi %4, %c10_i32 : i32
      %468 = vector.broadcast %467 : i32 to vector<2x1xi32>
      %469 = arith.cmpi slt, %468, %21 : vector<2x1xi32>
      %470 = vector.shape_cast %469 : vector<2x1xi1> to vector<2x1xi1>
      %471 = vector.broadcast %470 : vector<2x1xi1> to vector<2x32xi1>
      %472 = arith.select %471, %466, %430 : vector<2x32xi1>, vector<2x32xf32>
      %473 = vector.shape_cast %469 : vector<2x1xi1> to vector<2x1xi1>
      %474 = vector.broadcast %473 : vector<2x1xi1> to vector<2x32xi1>
      %475 = arith.select %474, %464, %433 : vector<2x32xi1>, vector<2x32xf32>
      %cst_76 = arith.constant 0.000000e+00 : f32
      %476 = vector.shape_cast %469 : vector<2x1xi1> to vector<2x1xi1>
      %477 = vector.broadcast %476 : vector<2x1xi1> to vector<2x32xi1>
      %478 = vector.broadcast %cst_76 : f32 to vector<2x32xf32>
      %479 = arith.select %477, %466, %478 : vector<2x32xi1>, vector<2x32xf32>
      %480 = arith.addf %438, %479 : vector<2x32xf32>
      %481 = arith.cmpi slt, %467, %3 : i32
      %cst_77 = arith.constant 0.000000e+00 : f32
      %cst_78 = arith.constant 0xFF800000 : f32
      %482 = arith.select %481, %cst_77, %cst_78 : f32
      %483 = vector.shape_cast %469 : vector<2x1xi1> to vector<2x1xi1>
      %484 = vector.broadcast %483 : vector<2x1xi1> to vector<2x32xi1>
      %485 = vector.broadcast %482 : f32 to vector<2x32xf32>
      %486 = arith.select %484, %466, %485 : vector<2x32xi1>, vector<2x32xf32>
      %487 = arith.maximumf %445, %486 : vector<2x32xf32>
      %488 = vector.extract_strided_slice %19 {offsets = [0, 11, 0], sizes = [2, 1, 128], strides = [1, 1, 1]} : vector<2x16x128xf32> to vector<2x1x128xf32>
      %489 = vector.shape_cast %488 : vector<2x1x128xf32> to vector<2x128xf32>
      %490 = arith.truncf %472 : vector<2x32xf32> to vector<2x32xbf16>
      %cst_79 = arith.constant dense<0.000000e+00> : vector<2x128xf32>
      %491 = tpu.matmul %490, %20, %cst_79 {dimension_numbers = #tpu.dot_dimension_numbers<[1], [0], [0], [1], [0, 0, 1, 1], [], []>} : vector<2x32xbf16>, vector<32x128xbf16>, vector<2x128xf32> -> vector<2x128xf32>
      %492 = arith.addf %489, %491 : vector<2x128xf32>
      %493 = vector.extract_strided_slice %492 {offsets = [0, 0], sizes = [2, 96], strides = [1, 1]} : vector<2x128xf32> to vector<2x96xf32>
      %494 = arith.negf %493 : vector<2x96xf32>
      %495 = math.exp %494 : vector<2x96xf32>
      %cst_80 = arith.constant 1.000000e+00 : f32
      %496 = vector.broadcast %cst_80 : f32 to vector<2x96xf32>
      %497 = arith.addf %496, %495 : vector<2x96xf32>
      %498 = arith.divf %496, %497 : vector<2x96xf32>
      %499 = vector.extract_strided_slice %498 {offsets = [0, 0], sizes = [2, 32], strides = [1, 1]} : vector<2x96xf32> to vector<2x32xf32>
      %500 = vector.extract_strided_slice %498 {offsets = [0, 32], sizes = [2, 32], strides = [1, 1]} : vector<2x96xf32> to vector<2x32xf32>
      %501 = vector.extract_strided_slice %498 {offsets = [0, 64], sizes = [2, 32], strides = [1, 1]} : vector<2x96xf32> to vector<2x32xf32>
      %502 = vector.extract_strided_slice %492 {offsets = [0, 96], sizes = [2, 32], strides = [1, 1]} : vector<2x128xf32> to vector<2x32xf32>
      %503 = math.tanh %502 : vector<2x32xf32>
      %504 = arith.mulf %500, %475 : vector<2x32xf32>
      %505 = arith.mulf %499, %503 : vector<2x32xf32>
      %506 = arith.addf %504, %505 : vector<2x32xf32>
      %507 = math.tanh %506 : vector<2x32xf32>
      %508 = arith.mulf %501, %507 : vector<2x32xf32>
      %c11_i32 = arith.constant 11 : i32
      %509 = arith.addi %4, %c11_i32 : i32
      %510 = vector.broadcast %509 : i32 to vector<2x1xi32>
      %511 = arith.cmpi slt, %510, %21 : vector<2x1xi32>
      %512 = vector.shape_cast %511 : vector<2x1xi1> to vector<2x1xi1>
      %513 = vector.broadcast %512 : vector<2x1xi1> to vector<2x32xi1>
      %514 = arith.select %513, %508, %472 : vector<2x32xi1>, vector<2x32xf32>
      %515 = vector.shape_cast %511 : vector<2x1xi1> to vector<2x1xi1>
      %516 = vector.broadcast %515 : vector<2x1xi1> to vector<2x32xi1>
      %517 = arith.select %516, %506, %475 : vector<2x32xi1>, vector<2x32xf32>
      %cst_81 = arith.constant 0.000000e+00 : f32
      %518 = vector.shape_cast %511 : vector<2x1xi1> to vector<2x1xi1>
      %519 = vector.broadcast %518 : vector<2x1xi1> to vector<2x32xi1>
      %520 = vector.broadcast %cst_81 : f32 to vector<2x32xf32>
      %521 = arith.select %519, %508, %520 : vector<2x32xi1>, vector<2x32xf32>
      %522 = arith.addf %480, %521 : vector<2x32xf32>
      %523 = arith.cmpi slt, %509, %3 : i32
      %cst_82 = arith.constant 0.000000e+00 : f32
      %cst_83 = arith.constant 0xFF800000 : f32
      %524 = arith.select %523, %cst_82, %cst_83 : f32
      %525 = vector.shape_cast %511 : vector<2x1xi1> to vector<2x1xi1>
      %526 = vector.broadcast %525 : vector<2x1xi1> to vector<2x32xi1>
      %527 = vector.broadcast %524 : f32 to vector<2x32xf32>
      %528 = arith.select %526, %508, %527 : vector<2x32xi1>, vector<2x32xf32>
      %529 = arith.maximumf %487, %528 : vector<2x32xf32>
      %530 = vector.extract_strided_slice %19 {offsets = [0, 12, 0], sizes = [2, 1, 128], strides = [1, 1, 1]} : vector<2x16x128xf32> to vector<2x1x128xf32>
      %531 = vector.shape_cast %530 : vector<2x1x128xf32> to vector<2x128xf32>
      %532 = arith.truncf %514 : vector<2x32xf32> to vector<2x32xbf16>
      %cst_84 = arith.constant dense<0.000000e+00> : vector<2x128xf32>
      %533 = tpu.matmul %532, %20, %cst_84 {dimension_numbers = #tpu.dot_dimension_numbers<[1], [0], [0], [1], [0, 0, 1, 1], [], []>} : vector<2x32xbf16>, vector<32x128xbf16>, vector<2x128xf32> -> vector<2x128xf32>
      %534 = arith.addf %531, %533 : vector<2x128xf32>
      %535 = vector.extract_strided_slice %534 {offsets = [0, 0], sizes = [2, 96], strides = [1, 1]} : vector<2x128xf32> to vector<2x96xf32>
      %536 = arith.negf %535 : vector<2x96xf32>
      %537 = math.exp %536 : vector<2x96xf32>
      %cst_85 = arith.constant 1.000000e+00 : f32
      %538 = vector.broadcast %cst_85 : f32 to vector<2x96xf32>
      %539 = arith.addf %538, %537 : vector<2x96xf32>
      %540 = arith.divf %538, %539 : vector<2x96xf32>
      %541 = vector.extract_strided_slice %540 {offsets = [0, 0], sizes = [2, 32], strides = [1, 1]} : vector<2x96xf32> to vector<2x32xf32>
      %542 = vector.extract_strided_slice %540 {offsets = [0, 32], sizes = [2, 32], strides = [1, 1]} : vector<2x96xf32> to vector<2x32xf32>
      %543 = vector.extract_strided_slice %540 {offsets = [0, 64], sizes = [2, 32], strides = [1, 1]} : vector<2x96xf32> to vector<2x32xf32>
      %544 = vector.extract_strided_slice %534 {offsets = [0, 96], sizes = [2, 32], strides = [1, 1]} : vector<2x128xf32> to vector<2x32xf32>
      %545 = math.tanh %544 : vector<2x32xf32>
      %546 = arith.mulf %542, %517 : vector<2x32xf32>
      %547 = arith.mulf %541, %545 : vector<2x32xf32>
      %548 = arith.addf %546, %547 : vector<2x32xf32>
      %549 = math.tanh %548 : vector<2x32xf32>
      %550 = arith.mulf %543, %549 : vector<2x32xf32>
      %c12_i32 = arith.constant 12 : i32
      %551 = arith.addi %4, %c12_i32 : i32
      %552 = vector.broadcast %551 : i32 to vector<2x1xi32>
      %553 = arith.cmpi slt, %552, %21 : vector<2x1xi32>
      %554 = vector.shape_cast %553 : vector<2x1xi1> to vector<2x1xi1>
      %555 = vector.broadcast %554 : vector<2x1xi1> to vector<2x32xi1>
      %556 = arith.select %555, %550, %514 : vector<2x32xi1>, vector<2x32xf32>
      %557 = vector.shape_cast %553 : vector<2x1xi1> to vector<2x1xi1>
      %558 = vector.broadcast %557 : vector<2x1xi1> to vector<2x32xi1>
      %559 = arith.select %558, %548, %517 : vector<2x32xi1>, vector<2x32xf32>
      %cst_86 = arith.constant 0.000000e+00 : f32
      %560 = vector.shape_cast %553 : vector<2x1xi1> to vector<2x1xi1>
      %561 = vector.broadcast %560 : vector<2x1xi1> to vector<2x32xi1>
      %562 = vector.broadcast %cst_86 : f32 to vector<2x32xf32>
      %563 = arith.select %561, %550, %562 : vector<2x32xi1>, vector<2x32xf32>
      %564 = arith.addf %522, %563 : vector<2x32xf32>
      %565 = arith.cmpi slt, %551, %3 : i32
      %cst_87 = arith.constant 0.000000e+00 : f32
      %cst_88 = arith.constant 0xFF800000 : f32
      %566 = arith.select %565, %cst_87, %cst_88 : f32
      %567 = vector.shape_cast %553 : vector<2x1xi1> to vector<2x1xi1>
      %568 = vector.broadcast %567 : vector<2x1xi1> to vector<2x32xi1>
      %569 = vector.broadcast %566 : f32 to vector<2x32xf32>
      %570 = arith.select %568, %550, %569 : vector<2x32xi1>, vector<2x32xf32>
      %571 = arith.maximumf %529, %570 : vector<2x32xf32>
      %572 = vector.extract_strided_slice %19 {offsets = [0, 13, 0], sizes = [2, 1, 128], strides = [1, 1, 1]} : vector<2x16x128xf32> to vector<2x1x128xf32>
      %573 = vector.shape_cast %572 : vector<2x1x128xf32> to vector<2x128xf32>
      %574 = arith.truncf %556 : vector<2x32xf32> to vector<2x32xbf16>
      %cst_89 = arith.constant dense<0.000000e+00> : vector<2x128xf32>
      %575 = tpu.matmul %574, %20, %cst_89 {dimension_numbers = #tpu.dot_dimension_numbers<[1], [0], [0], [1], [0, 0, 1, 1], [], []>} : vector<2x32xbf16>, vector<32x128xbf16>, vector<2x128xf32> -> vector<2x128xf32>
      %576 = arith.addf %573, %575 : vector<2x128xf32>
      %577 = vector.extract_strided_slice %576 {offsets = [0, 0], sizes = [2, 96], strides = [1, 1]} : vector<2x128xf32> to vector<2x96xf32>
      %578 = arith.negf %577 : vector<2x96xf32>
      %579 = math.exp %578 : vector<2x96xf32>
      %cst_90 = arith.constant 1.000000e+00 : f32
      %580 = vector.broadcast %cst_90 : f32 to vector<2x96xf32>
      %581 = arith.addf %580, %579 : vector<2x96xf32>
      %582 = arith.divf %580, %581 : vector<2x96xf32>
      %583 = vector.extract_strided_slice %582 {offsets = [0, 0], sizes = [2, 32], strides = [1, 1]} : vector<2x96xf32> to vector<2x32xf32>
      %584 = vector.extract_strided_slice %582 {offsets = [0, 32], sizes = [2, 32], strides = [1, 1]} : vector<2x96xf32> to vector<2x32xf32>
      %585 = vector.extract_strided_slice %582 {offsets = [0, 64], sizes = [2, 32], strides = [1, 1]} : vector<2x96xf32> to vector<2x32xf32>
      %586 = vector.extract_strided_slice %576 {offsets = [0, 96], sizes = [2, 32], strides = [1, 1]} : vector<2x128xf32> to vector<2x32xf32>
      %587 = math.tanh %586 : vector<2x32xf32>
      %588 = arith.mulf %584, %559 : vector<2x32xf32>
      %589 = arith.mulf %583, %587 : vector<2x32xf32>
      %590 = arith.addf %588, %589 : vector<2x32xf32>
      %591 = math.tanh %590 : vector<2x32xf32>
      %592 = arith.mulf %585, %591 : vector<2x32xf32>
      %c13_i32 = arith.constant 13 : i32
      %593 = arith.addi %4, %c13_i32 : i32
      %594 = vector.broadcast %593 : i32 to vector<2x1xi32>
      %595 = arith.cmpi slt, %594, %21 : vector<2x1xi32>
      %596 = vector.shape_cast %595 : vector<2x1xi1> to vector<2x1xi1>
      %597 = vector.broadcast %596 : vector<2x1xi1> to vector<2x32xi1>
      %598 = arith.select %597, %592, %556 : vector<2x32xi1>, vector<2x32xf32>
      %599 = vector.shape_cast %595 : vector<2x1xi1> to vector<2x1xi1>
      %600 = vector.broadcast %599 : vector<2x1xi1> to vector<2x32xi1>
      %601 = arith.select %600, %590, %559 : vector<2x32xi1>, vector<2x32xf32>
      %cst_91 = arith.constant 0.000000e+00 : f32
      %602 = vector.shape_cast %595 : vector<2x1xi1> to vector<2x1xi1>
      %603 = vector.broadcast %602 : vector<2x1xi1> to vector<2x32xi1>
      %604 = vector.broadcast %cst_91 : f32 to vector<2x32xf32>
      %605 = arith.select %603, %592, %604 : vector<2x32xi1>, vector<2x32xf32>
      %606 = arith.addf %564, %605 : vector<2x32xf32>
      %607 = arith.cmpi slt, %593, %3 : i32
      %cst_92 = arith.constant 0.000000e+00 : f32
      %cst_93 = arith.constant 0xFF800000 : f32
      %608 = arith.select %607, %cst_92, %cst_93 : f32
      %609 = vector.shape_cast %595 : vector<2x1xi1> to vector<2x1xi1>
      %610 = vector.broadcast %609 : vector<2x1xi1> to vector<2x32xi1>
      %611 = vector.broadcast %608 : f32 to vector<2x32xf32>
      %612 = arith.select %610, %592, %611 : vector<2x32xi1>, vector<2x32xf32>
      %613 = arith.maximumf %571, %612 : vector<2x32xf32>
      %614 = vector.extract_strided_slice %19 {offsets = [0, 14, 0], sizes = [2, 1, 128], strides = [1, 1, 1]} : vector<2x16x128xf32> to vector<2x1x128xf32>
      %615 = vector.shape_cast %614 : vector<2x1x128xf32> to vector<2x128xf32>
      %616 = arith.truncf %598 : vector<2x32xf32> to vector<2x32xbf16>
      %cst_94 = arith.constant dense<0.000000e+00> : vector<2x128xf32>
      %617 = tpu.matmul %616, %20, %cst_94 {dimension_numbers = #tpu.dot_dimension_numbers<[1], [0], [0], [1], [0, 0, 1, 1], [], []>} : vector<2x32xbf16>, vector<32x128xbf16>, vector<2x128xf32> -> vector<2x128xf32>
      %618 = arith.addf %615, %617 : vector<2x128xf32>
      %619 = vector.extract_strided_slice %618 {offsets = [0, 0], sizes = [2, 96], strides = [1, 1]} : vector<2x128xf32> to vector<2x96xf32>
      %620 = arith.negf %619 : vector<2x96xf32>
      %621 = math.exp %620 : vector<2x96xf32>
      %cst_95 = arith.constant 1.000000e+00 : f32
      %622 = vector.broadcast %cst_95 : f32 to vector<2x96xf32>
      %623 = arith.addf %622, %621 : vector<2x96xf32>
      %624 = arith.divf %622, %623 : vector<2x96xf32>
      %625 = vector.extract_strided_slice %624 {offsets = [0, 0], sizes = [2, 32], strides = [1, 1]} : vector<2x96xf32> to vector<2x32xf32>
      %626 = vector.extract_strided_slice %624 {offsets = [0, 32], sizes = [2, 32], strides = [1, 1]} : vector<2x96xf32> to vector<2x32xf32>
      %627 = vector.extract_strided_slice %624 {offsets = [0, 64], sizes = [2, 32], strides = [1, 1]} : vector<2x96xf32> to vector<2x32xf32>
      %628 = vector.extract_strided_slice %618 {offsets = [0, 96], sizes = [2, 32], strides = [1, 1]} : vector<2x128xf32> to vector<2x32xf32>
      %629 = math.tanh %628 : vector<2x32xf32>
      %630 = arith.mulf %626, %601 : vector<2x32xf32>
      %631 = arith.mulf %625, %629 : vector<2x32xf32>
      %632 = arith.addf %630, %631 : vector<2x32xf32>
      %633 = math.tanh %632 : vector<2x32xf32>
      %634 = arith.mulf %627, %633 : vector<2x32xf32>
      %c14_i32 = arith.constant 14 : i32
      %635 = arith.addi %4, %c14_i32 : i32
      %636 = vector.broadcast %635 : i32 to vector<2x1xi32>
      %637 = arith.cmpi slt, %636, %21 : vector<2x1xi32>
      %638 = vector.shape_cast %637 : vector<2x1xi1> to vector<2x1xi1>
      %639 = vector.broadcast %638 : vector<2x1xi1> to vector<2x32xi1>
      %640 = arith.select %639, %634, %598 : vector<2x32xi1>, vector<2x32xf32>
      %641 = vector.shape_cast %637 : vector<2x1xi1> to vector<2x1xi1>
      %642 = vector.broadcast %641 : vector<2x1xi1> to vector<2x32xi1>
      %643 = arith.select %642, %632, %601 : vector<2x32xi1>, vector<2x32xf32>
      %cst_96 = arith.constant 0.000000e+00 : f32
      %644 = vector.shape_cast %637 : vector<2x1xi1> to vector<2x1xi1>
      %645 = vector.broadcast %644 : vector<2x1xi1> to vector<2x32xi1>
      %646 = vector.broadcast %cst_96 : f32 to vector<2x32xf32>
      %647 = arith.select %645, %634, %646 : vector<2x32xi1>, vector<2x32xf32>
      %648 = arith.addf %606, %647 : vector<2x32xf32>
      %649 = arith.cmpi slt, %635, %3 : i32
      %cst_97 = arith.constant 0.000000e+00 : f32
      %cst_98 = arith.constant 0xFF800000 : f32
      %650 = arith.select %649, %cst_97, %cst_98 : f32
      %651 = vector.shape_cast %637 : vector<2x1xi1> to vector<2x1xi1>
      %652 = vector.broadcast %651 : vector<2x1xi1> to vector<2x32xi1>
      %653 = vector.broadcast %650 : f32 to vector<2x32xf32>
      %654 = arith.select %652, %634, %653 : vector<2x32xi1>, vector<2x32xf32>
      %655 = arith.maximumf %613, %654 : vector<2x32xf32>
      %656 = vector.extract_strided_slice %19 {offsets = [0, 15, 0], sizes = [2, 1, 128], strides = [1, 1, 1]} : vector<2x16x128xf32> to vector<2x1x128xf32>
      %657 = vector.shape_cast %656 : vector<2x1x128xf32> to vector<2x128xf32>
      %658 = arith.truncf %640 : vector<2x32xf32> to vector<2x32xbf16>
      %cst_99 = arith.constant dense<0.000000e+00> : vector<2x128xf32>
      %659 = tpu.matmul %658, %20, %cst_99 {dimension_numbers = #tpu.dot_dimension_numbers<[1], [0], [0], [1], [0, 0, 1, 1], [], []>} : vector<2x32xbf16>, vector<32x128xbf16>, vector<2x128xf32> -> vector<2x128xf32>
      %660 = arith.addf %657, %659 : vector<2x128xf32>
      %661 = vector.extract_strided_slice %660 {offsets = [0, 0], sizes = [2, 96], strides = [1, 1]} : vector<2x128xf32> to vector<2x96xf32>
      %662 = arith.negf %661 : vector<2x96xf32>
      %663 = math.exp %662 : vector<2x96xf32>
      %cst_100 = arith.constant 1.000000e+00 : f32
      %664 = vector.broadcast %cst_100 : f32 to vector<2x96xf32>
      %665 = arith.addf %664, %663 : vector<2x96xf32>
      %666 = arith.divf %664, %665 : vector<2x96xf32>
      %667 = vector.extract_strided_slice %666 {offsets = [0, 0], sizes = [2, 32], strides = [1, 1]} : vector<2x96xf32> to vector<2x32xf32>
      %668 = vector.extract_strided_slice %666 {offsets = [0, 32], sizes = [2, 32], strides = [1, 1]} : vector<2x96xf32> to vector<2x32xf32>
      %669 = vector.extract_strided_slice %666 {offsets = [0, 64], sizes = [2, 32], strides = [1, 1]} : vector<2x96xf32> to vector<2x32xf32>
      %670 = vector.extract_strided_slice %660 {offsets = [0, 96], sizes = [2, 32], strides = [1, 1]} : vector<2x128xf32> to vector<2x32xf32>
      %671 = math.tanh %670 : vector<2x32xf32>
      %672 = arith.mulf %668, %643 : vector<2x32xf32>
      %673 = arith.mulf %667, %671 : vector<2x32xf32>
      %674 = arith.addf %672, %673 : vector<2x32xf32>
      %675 = math.tanh %674 : vector<2x32xf32>
      %676 = arith.mulf %669, %675 : vector<2x32xf32>
      %c15_i32 = arith.constant 15 : i32
      %677 = arith.addi %4, %c15_i32 : i32
      %678 = vector.broadcast %677 : i32 to vector<2x1xi32>
      %679 = arith.cmpi slt, %678, %21 : vector<2x1xi32>
      %680 = vector.shape_cast %679 : vector<2x1xi1> to vector<2x1xi1>
      %681 = vector.broadcast %680 : vector<2x1xi1> to vector<2x32xi1>
      %682 = arith.select %681, %676, %640 : vector<2x32xi1>, vector<2x32xf32>
      %683 = vector.shape_cast %679 : vector<2x1xi1> to vector<2x1xi1>
      %684 = vector.broadcast %683 : vector<2x1xi1> to vector<2x32xi1>
      %685 = arith.select %684, %674, %643 : vector<2x32xi1>, vector<2x32xf32>
      %cst_101 = arith.constant 0.000000e+00 : f32
      %686 = vector.shape_cast %679 : vector<2x1xi1> to vector<2x1xi1>
      %687 = vector.broadcast %686 : vector<2x1xi1> to vector<2x32xi1>
      %688 = vector.broadcast %cst_101 : f32 to vector<2x32xf32>
      %689 = arith.select %687, %676, %688 : vector<2x32xi1>, vector<2x32xf32>
      %690 = arith.addf %648, %689 : vector<2x32xf32>
      %691 = arith.cmpi slt, %677, %3 : i32
      %cst_102 = arith.constant 0.000000e+00 : f32
      %cst_103 = arith.constant 0xFF800000 : f32
      %692 = arith.select %691, %cst_102, %cst_103 : f32
      %693 = vector.shape_cast %679 : vector<2x1xi1> to vector<2x1xi1>
      %694 = vector.broadcast %693 : vector<2x1xi1> to vector<2x32xi1>
      %695 = vector.broadcast %692 : f32 to vector<2x32xf32>
      %696 = arith.select %694, %676, %695 : vector<2x32xi1>, vector<2x32xf32>
      %697 = arith.maximumf %655, %696 : vector<2x32xf32>
      %c0_104 = arith.constant 0 : index
      %c0_105 = arith.constant 0 : index
      %698 = vector.load %arg11[%c0_104, %c0_105] : memref<2x32xf32, #tpu.memory_space<vmem>>, vector<2x32xf32>
      tpu.vector_store %arg11[%c0_104, %c0_105], %682 {strides = array<i32>} : memref<2x32xf32, #tpu.memory_space<vmem>>, vector<2x32xf32>,
      %c0_106 = arith.constant 0 : index
      %c0_107 = arith.constant 0 : index
      %699 = vector.load %arg12[%c0_106, %c0_107] : memref<2x32xf32, #tpu.memory_space<vmem>>, vector<2x32xf32>
      tpu.vector_store %arg12[%c0_106, %c0_107], %685 {strides = array<i32>} : memref<2x32xf32, #tpu.memory_space<vmem>>, vector<2x32xf32>,
      %c0_108 = arith.constant 0 : index
      %c0_109 = arith.constant 0 : index
      %700 = vector.load %arg13[%c0_108, %c0_109] : memref<2x32xf32, #tpu.memory_space<vmem>>, vector<2x32xf32>
      tpu.vector_store %arg13[%c0_108, %c0_109], %690 {strides = array<i32>} : memref<2x32xf32, #tpu.memory_space<vmem>>, vector<2x32xf32>,
      %c0_110 = arith.constant 0 : index
      %c0_111 = arith.constant 0 : index
      %701 = vector.load %arg14[%c0_110, %c0_111] : memref<2x32xf32, #tpu.memory_space<vmem>>, vector<2x32xf32>
      tpu.vector_store %arg14[%c0_110, %c0_111], %697 {strides = array<i32>} : memref<2x32xf32, #tpu.memory_space<vmem>>, vector<2x32xf32>,
    } else {
    }
    %c1_i32 = arith.constant 1 : i32
    %8 = arith.cmpi eq, %arg0, %c1_i32 : i32
    %9 = arith.extui %8 : i1 to i32
    %c0_i32_2 = arith.constant 0 : i32
    %10 = arith.cmpi ne, %9, %c0_i32_2 : i32
    scf.if %10 {
      %c1_i32_3 = arith.constant 1 : i32
      %11 = arith.maxsi %3, %c1_i32_3 : i32
      %12 = arith.sitofp %11 : i32 to f32
      %c0_4 = arith.constant 0 : index
      %c0_5 = arith.constant 0 : index
      %13 = vector.load %arg13[%c0_4, %c0_5] : memref<2x32xf32, #tpu.memory_space<vmem>>, vector<2x32xf32>
      %cst = arith.constant 1.000000e+00 : f32
      %14 = arith.divf %cst, %12 : f32
      %15 = vector.broadcast %14 : f32 to vector<2x32xf32>
      %16 = arith.mulf %13, %15 : vector<2x32xf32>
      %c0_6 = arith.constant 0 : index
      %c0_7 = arith.constant 0 : index
      %17 = vector.load %arg7[%c0_6, %c0_7] : memref<32x2xf32, #tpu.memory_space<vmem>>, vector<32x2xf32>
      %cst_8 = arith.constant dense<0.000000e+00> : vector<2x2xf32>
      %18 = tpu.matmul %16, %17, %cst_8 {dimension_numbers = #tpu.dot_dimension_numbers<[1], [0], [0], [1], [0, 0, 1, 1], [], []>} : vector<2x32xf32>, vector<32x2xf32>, vector<2x2xf32> -> vector<2x2xf32>
      %c0_9 = arith.constant 0 : index
      %c0_10 = arith.constant 0 : index
      %19 = vector.load %arg14[%c0_9, %c0_10] : memref<2x32xf32, #tpu.memory_space<vmem>>, vector<2x32xf32>
      %c0_11 = arith.constant 0 : index
      %c0_12 = arith.constant 0 : index
      %20 = vector.load %arg8[%c0_11, %c0_12] : memref<32x2xf32, #tpu.memory_space<vmem>>, vector<32x2xf32>
      %cst_13 = arith.constant dense<0.000000e+00> : vector<2x2xf32>
      %21 = tpu.matmul %19, %20, %cst_13 {dimension_numbers = #tpu.dot_dimension_numbers<[1], [0], [0], [1], [0, 0, 1, 1], [], []>} : vector<2x32xf32>, vector<32x2xf32>, vector<2x2xf32> -> vector<2x2xf32>
      %22 = arith.addf %18, %21 : vector<2x2xf32>
      %c0_14 = arith.constant 0 : index
      %c0_15 = arith.constant 0 : index
      %23 = vector.load %arg9[%c0_14, %c0_15] : memref<1x2xf32, #tpu.memory_space<vmem>>, vector<1x2xf32>
      %24 = vector.broadcast %23 : vector<1x2xf32> to vector<2x2xf32>
      %25 = arith.addf %22, %24 : vector<2x2xf32>
      %c0_16 = arith.constant 0 : index
      %c0_17 = arith.constant 0 : index
      %26 = vector.load %arg10[%c0_16, %c0_17] : memref<2x2xf32, #tpu.memory_space<vmem>>, vector<2x2xf32>
      tpu.vector_store %arg10[%c0_16, %c0_17], %25 {strides = array<i32>} : memref<2x2xf32, #tpu.memory_space<vmem>>, vector<2x2xf32>,
    } else {
    }
    return
  }
  func.func @transform_0(%arg0: i32, %arg1: memref<1xi32, #tpu.memory_space<smem>>) -> (i32, i32) {
    %c0_i32 = arith.constant 0 : i32
    %c0_i32_0 = arith.constant 0 : i32
    %c0_i32_1 = arith.constant 0 : i32
    return %c0_i32, %c0_i32_0 : i32, i32
  }
  func.func @transform_1(%arg0: i32, %arg1: memref<1xi32, #tpu.memory_space<smem>>) -> (i32, i32, i32) {
    %c0_i32 = arith.constant 0 : i32
    %c0_i32_0 = arith.constant 0 : i32
    %c0_i32_1 = arith.constant 0 : i32
    return %c0_i32, %arg0, %c0_i32_0 : i32, i32, i32
  }
  func.func @transform_2(%arg0: i32, %arg1: memref<1xi32, #tpu.memory_space<smem>>) -> (i32, i32) {
    %c0_i32 = arith.constant 0 : i32
    %c0_i32_0 = arith.constant 0 : i32
    %c0_i32_1 = arith.constant 0 : i32
    return %c0_i32, %c0_i32_0 : i32, i32
  }
  func.func @transform_3(%arg0: i32, %arg1: memref<1xi32, #tpu.memory_space<smem>>) -> (i32, i32) {
    %c0_i32 = arith.constant 0 : i32
    %c0_i32_0 = arith.constant 0 : i32
    %c0_i32_1 = arith.constant 0 : i32
    return %c0_i32, %c0_i32_0 : i32, i32
  }
  func.func @transform_4(%arg0: i32, %arg1: memref<1xi32, #tpu.memory_space<smem>>) -> (i32, i32) {
    %c0_i32 = arith.constant 0 : i32
    %c0_i32_0 = arith.constant 0 : i32
    %c0_i32_1 = arith.constant 0 : i32
    return %c0_i32, %c0_i32_0 : i32, i32
  }
  func.func @transform_5(%arg0: i32, %arg1: memref<1xi32, #tpu.memory_space<smem>>) -> (i32, i32) {
    %c0_i32 = arith.constant 0 : i32
    %c0_i32_0 = arith.constant 0 : i32
    %c0_i32_1 = arith.constant 0 : i32
    return %c0_i32, %c0_i32_0 : i32, i32
  }
  func.func @transform_6(%arg0: i32, %arg1: memref<1xi32, #tpu.memory_space<smem>>) -> (i32, i32) {
    %c0_i32 = arith.constant 0 : i32
    %c0_i32_0 = arith.constant 0 : i32
    %c0_i32_1 = arith.constant 0 : i32
    return %c0_i32, %c0_i32_0 : i32, i32
  }
  func.func @transform_7(%arg0: i32, %arg1: memref<1xi32, #tpu.memory_space<smem>>) -> (i32, i32) {
    %c0_i32 = arith.constant 0 : i32
    %c0_i32_0 = arith.constant 0 : i32
    %c0_i32_1 = arith.constant 0 : i32
    return %c0_i32, %c0_i32_0 : i32, i32
  }
  func.func @transform_8(%arg0: i32, %arg1: memref<1xi32, #tpu.memory_space<smem>>) -> (i32, i32) {
    %c0_i32 = arith.constant 0 : i32
    %c0_i32_0 = arith.constant 0 : i32
    %c0_i32_1 = arith.constant 0 : i32
    return %c0_i32, %c0_i32_0 : i32, i32
  }
}

</mosaic_0001>

<llo_original>
// kernel: tpu_custom_call.1
$region0: #{tpu_custom_call.1}
  #allocation0 [shape = 'u32[]', space=smem, size = 0x4, offset = 0x4, fixed_abs, tag = 'smem constant byte address 0x4 - core index']
  #allocation1 [shape = 'u32[144,128]{1,0:T(1,128)}', space=vmem, size = 0x12000, scoped, tag = 'internal scratch']
  #allocation2 [shape = 'f32[2,32]{1,0:T(2,128)}', space=vmem, size = 0x400, scoped, tag = 'scratch operand']
  #allocation3 [shape = 'f32[2,32]{1,0:T(2,128)}', space=vmem, size = 0x400, scoped, tag = 'scratch operand']
  #allocation4 [shape = 'f32[2,32]{1,0:T(2,128)}', space=vmem, size = 0x400, scoped, tag = 'scratch operand']
  #allocation5 [shape = 'f32[2,32]{1,0:T(2,128)}', space=vmem, size = 0x400, scoped, tag = 'scratch operand']
  #allocation6 [shape = 's32[1]{0}', space=sflag, size = 0x4, scoped, tag = 'scoped memory for tpu_custom_call.1']
  #allocation7 [shape = 's32[1]{0:T(128)S(6)}', space=smem, size = 0x200, scoped, tag = 'prefetched SMEM operand 0']
  #allocation12 [shape = 's32[]', space=sflag, size = 0x4, offset = 0, fixed_abs, tag = 'sflag constant byte address 0x0 - dummy sync flag']
  %s0 = inlined_call_operand.<no memory space> [shape: s32[1], index: 0, kind: input, shape index: {}]
  %s1 = inlined_call_operand.vmem [shape: s32[2,1], index: 1, kind: input, shape index: {}]
  %s2 = inlined_call_operand.hbm [shape: bf16[2,32,128], index: 2, kind: input, shape index: {}]
  %s3 = inlined_call_operand.vmem [shape: bf16[128,128], index: 3, kind: input, shape index: {}]
  %s4 = inlined_call_operand.vmem [shape: bf16[32,128], index: 4, kind: input, shape index: {}]
  %s5 = inlined_call_operand.vmem [shape: f32[1,128], index: 5, kind: input, shape index: {}]
  %s6 = inlined_call_operand.vmem [shape: f32[32,2], index: 6, kind: input, shape index: {}]
  %s7 = inlined_call_operand.vmem [shape: f32[32,2], index: 7, kind: input, shape index: {}]
  %s8 = inlined_call_operand.vmem [shape: f32[1,2], index: 8, kind: input, shape index: {}]
  %s9 = inlined_call_operand.hbm [shape: f32[2,2], index: 9, kind: output, shape index: {}]
  %s10 = sld [smem:[#allocation0]]
  $region81: #{tpu_custom_call.1} parent=0
    _
  %s12 = ssub.s32 1, %s10
  %s13 = scalar_select 0, %s12, %s10
  %14 = sst [smem:[#allocation7]] %s0
  $region1: #{tpu_custom_call.1} parent=0
    #allocation8 [shape = 'u8[16384]{0}', space=vmem, size = 0x4000, scoped, tag = 'input window, operand 2']
    #allocation9 [shape = 's32[2]{0}', space=sflag, size = 0x8, scoped, tag = 'scoped memory for tpu_custom_call.1']
    #allocation10 [shape = 's32[2]{0}', space=sflag, size = 0x8, scoped, tag = 'scoped memory for tpu_custom_call.1']
    #allocation11 [shape = 'u8[1024]{0}', space=vmem, size = 0x400, scoped, tag = 'output window, operand 0, single buffered']
    %15 = vsyncpa [#allocation9], 0
    %s16 = scalar_lea.sflag [#allocation9], 1
    %17 = vsyncpa %s16, 0
    %18 = vsyncpa [#allocation10], 0
    loop: start=0, step=1, limit=4
    $region2: #{tpu_custom_call.1} parent=1 // loop_pre_header
      _
    $region3: #{tpu_custom_call.1} parent=1 // loop_header
      %s20 = sphi 0, %s24
      %p21 = scmp.ge.s32.totalorder %s20, 4
      %s28 = sphi 0, %s28
      %s30 = sphi 0, %s28
      %s31 = sphi 0, %s30
      %s45 = sphi 0, %s31
      %s51 = sphi 0, %s53
      %s54 = sphi 0, %s51
      %s55 = sphi 0, %s54
      %s71 = sphi 0, %s55
      %s75 = sphi 0, %s75
      %s77 = sphi 0, %s75
      %s78 = sphi 0, %s77
      %s92 = sphi 0, %s78
      %s96 = sphi 0, %s96
      %s98 = sphi 0, %s96
      %s99 = sphi 0, %s98
      %s113 = sphi 0, %s99
      %s117 = sphi 0, %s117
      %s119 = sphi 0, %s117
      %s120 = sphi 0, %s119
      %s134 = sphi 0, %s120
      %s138 = sphi 0, %s138
      %s140 = sphi 0, %s138
      %s141 = sphi 0, %s140
      %s155 = sphi 0, %s141
      %s159 = sphi 0, %s159
      %s161 = sphi 0, %s159
      %s162 = sphi 0, %s161
      %s176 = sphi 0, %s162
      %s180 = sphi 0, %s180
      %s182 = sphi 0, %s180
      %s183 = sphi 0, %s182
      %s197 = sphi 0, %s183
      %s201 = sphi 0, %s201
      %s203 = sphi 0, %s201
      %s204 = sphi 0, %s203
      %s218 = sphi 0, %s204
    $region4: #{tpu_custom_call.1} parent=1 // loop_header_branch
      %23 = sbr.rel (%p21) target = $region8
    $region5: #{tpu_custom_call.1} parent=1 // loop_body
      %s25 = ssub.s32 %s20, 1
      %s26 = ssub.s32 %s20, 2
      %s27 = sadd.s32 %s20, 1
      %s29 = sadd.s32 %s28, 1
      %p32 = scmp.eq.s32.totalorder %s20, 1
      %p33 = scmp.ne.s32.totalorder %s28, %s30
      %p34 = scmp.eq.s32.totalorder %s20, 0
      %p35 = por %p33, %p34
      %p36 = scmp.ne.s32.totalorder %s28, %s30
      %p37 = scmp.eq.s32.totalorder %s25, 1
      %p38 = por %p36, %p37
      %p39 = scmp.ne.s32.totalorder %s30, %s31
      %p40 = scmp.eq.s32.totalorder %s25, 0
      %p41 = por %p39, %p40
      %p42 = scmp.ne.s32.totalorder %s30, %s31
      %p43 = scmp.eq.s32.totalorder %s26, 1
      %p44 = por %p42, %p43
      %p46 = scmp.ne.s32.totalorder %s31, %s45
      %p47 = scmp.eq.s32.totalorder %s26, 0
      %p48 = por %p46, %p47
      %s49 = ssub.s32 %s20, %s27
      %p50 = scmp.eq.s32.totalorder %s49, 0
      %s52 = sadd.s32 %s51, 1
      %s53 = scalar_select %p50, %s51, %s52
      %p56 = pneg %p50
      %p57 = scmp.eq.s32.totalorder %s20, 1
      %p58 = por %p56, %p57
      %p59 = scmp.ne.s32.totalorder %s51, %s54
      %p60 = scmp.eq.s32.totalorder %s20, 0
      %p61 = por %p59, %p60
      %p62 = scmp.ne.s32.totalorder %s51, %s54
      %p63 = scmp.eq.s32.totalorder %s25, 1
      %p64 = por %p62, %p63
      %p65 = scmp.ne.s32.totalorder %s54, %s55
      %p66 = scmp.eq.s32.totalorder %s25, 0
      %p67 = por %p65, %p66
      %p68 = scmp.ne.s32.totalorder %s54, %s55
      %p69 = scmp.eq.s32.totalorder %s26, 1
      %p70 = por %p68, %p69
      %p72 = scmp.ne.s32.totalorder %s55, %s71
      %p73 = scmp.eq.s32.totalorder %s26, 0
      %p74 = por %p72, %p73
      %s76 = sadd.s32 %s75, 1
      %p79 = scmp.eq.s32.totalorder %s20, 1
      %p80 = scmp.ne.s32.totalorder %s75, %s77
      %p81 = scmp.eq.s32.totalorder %s20, 0
      %p82 = por %p80, %p81
      %p83 = scmp.ne.s32.totalorder %s75, %s77
      %p84 = scmp.eq.s32.totalorder %s25, 1
      %p85 = por %p83, %p84
      %p86 = scmp.ne.s32.totalorder %s77, %s78
      %p87 = scmp.eq.s32.totalorder %s25, 0
      %p88 = por %p86, %p87
      %p89 = scmp.ne.s32.totalorder %s77, %s78
      %p90 = scmp.eq.s32.totalorder %s26, 1
      %p91 = por %p89, %p90
      %p93 = scmp.ne.s32.totalorder %s78, %s92
      %p94 = scmp.eq.s32.totalorder %s26, 0
      %p95 = por %p93, %p94
      %s97 = sadd.s32 %s96, 1
      %p100 = scmp.eq.s32.totalorder %s20, 1
      %p101 = scmp.ne.s32.totalorder %s96, %s98
      %p102 = scmp.eq.s32.totalorder %s20, 0
      %p103 = por %p101, %p102
      %p104 = scmp.ne.s32.totalorder %s96, %s98
      %p105 = scmp.eq.s32.totalorder %s25, 1
      %p106 = por %p104, %p105
      %p107 = scmp.ne.s32.totalorder %s98, %s99
      %p108 = scmp.eq.s32.totalorder %s25, 0
      %p109 = por %p107, %p108
      %p110 = scmp.ne.s32.totalorder %s98, %s99
      %p111 = scmp.eq.s32.totalorder %s26, 1
      %p112 = por %p110, %p111
      %p114 = scmp.ne.s32.totalorder %s99, %s113
      %p115 = scmp.eq.s32.totalorder %s26, 0
      %p116 = por %p114, %p115
      %s118 = sadd.s32 %s117, 1
      %p121 = scmp.eq.s32.totalorder %s20, 1
      %p122 = scmp.ne.s32.totalorder %s117, %s119
      %p123 = scmp.eq.s32.totalorder %s20, 0
      %p124 = por %p122, %p123
      %p125 = scmp.ne.s32.totalorder %s117, %s119
      %p126 = scmp.eq.s32.totalorder %s25, 1
      %p127 = por %p125, %p126
      %p128 = scmp.ne.s32.totalorder %s119, %s120
      %p129 = scmp.eq.s32.totalorder %s25, 0
      %p130 = por %p128, %p129
      %p131 = scmp.ne.s32.totalorder %s119, %s120
      %p132 = scmp.eq.s32.totalorder %s26, 1
      %p133 = por %p131, %p132
      %p135 = scmp.ne.s32.totalorder %s120, %s134
      %p136 = scmp.eq.s32.totalorder %s26, 0
      %p137 = por %p135, %p136
      %s139 = sadd.s32 %s138, 1
      %p142 = scmp.eq.s32.totalorder %s20, 1
      %p143 = scmp.ne.s32.totalorder %s138, %s140
      %p144 = scmp.eq.s32.totalorder %s20, 0
      %p145 = por %p143, %p144
      %p146 = scmp.ne.s32.totalorder %s138, %s140
      %p147 = scmp.eq.s32.totalorder %s25, 1
      %p148 = por %p146, %p147
      %p149 = scmp.ne.s32.totalorder %s140, %s141
      %p150 = scmp.eq.s32.totalorder %s25, 0
      %p151 = por %p149, %p150
      %p152 = scmp.ne.s32.totalorder %s140, %s141
      %p153 = scmp.eq.s32.totalorder %s26, 1
      %p154 = por %p152, %p153
      %p156 = scmp.ne.s32.totalorder %s141, %s155
      %p157 = scmp.eq.s32.totalorder %s26, 0
      %p158 = por %p156, %p157
      %s160 = sadd.s32 %s159, 1
      %p163 = scmp.eq.s32.totalorder %s20, 1
      %p164 = scmp.ne.s32.totalorder %s159, %s161
      %p165 = scmp.eq.s32.totalorder %s20, 0
      %p166 = por %p164, %p165
      %p167 = scmp.ne.s32.totalorder %s159, %s161
      %p168 = scmp.eq.s32.totalorder %s25, 1
      %p169 = por %p167, %p168
      %p170 = scmp.ne.s32.totalorder %s161, %s162
      %p171 = scmp.eq.s32.totalorder %s25, 0
      %p172 = por %p170, %p171
      %p173 = scmp.ne.s32.totalorder %s161, %s162
      %p174 = scmp.eq.s32.totalorder %s26, 1
      %p175 = por %p173, %p174
      %p177 = scmp.ne.s32.totalorder %s162, %s176
      %p178 = scmp.eq.s32.totalorder %s26, 0
      %p179 = por %p177, %p178
      %s181 = sadd.s32 %s180, 1
      %p184 = scmp.eq.s32.totalorder %s20, 1
      %p185 = scmp.ne.s32.totalorder %s180, %s182
      %p186 = scmp.eq.s32.totalorder %s20, 0
      %p187 = por %p185, %p186
      %p188 = scmp.ne.s32.totalorder %s180, %s182
      %p189 = scmp.eq.s32.totalorder %s25, 1
      %p190 = por %p188, %p189
      %p191 = scmp.ne.s32.totalorder %s182, %s183
      %p192 = scmp.eq.s32.totalorder %s25, 0
      %p193 = por %p191, %p192
      %p194 = scmp.ne.s32.totalorder %s182, %s183
      %p195 = scmp.eq.s32.totalorder %s26, 1
      %p196 = por %p194, %p195
      %p198 = scmp.ne.s32.totalorder %s183, %s197
      %p199 = scmp.eq.s32.totalorder %s26, 0
      %p200 = por %p198, %p199
      %s202 = sadd.s32 %s201, 1
      %p205 = scmp.eq.s32.totalorder %s20, 1
      %p206 = scmp.ne.s32.totalorder %s201, %s203
      %p207 = scmp.eq.s32.totalorder %s20, 0
      %p208 = por %p206, %p207
      %p209 = scmp.ne.s32.totalorder %s201, %s203
      %p210 = scmp.eq.s32.totalorder %s25, 1
      %p211 = por %p209, %p210
      %p212 = scmp.ne.s32.totalorder %s203, %s204
      %p213 = scmp.eq.s32.totalorder %s25, 0
      %p214 = por %p212, %p213
      %p215 = scmp.ne.s32.totalorder %s203, %s204
      %p216 = scmp.eq.s32.totalorder %s26, 1
      %p217 = por %p215, %p216
      %p219 = scmp.ne.s32.totalorder %s204, %s218
      %p220 = scmp.eq.s32.totalorder %s26, 0
      %p221 = por %p219, %p220
      %p222 = scmp.le.s32.totalorder 1, %s20
      %p223 = scmp.lt.s32.totalorder %s20, 3
      %p224 = pnand %p222, %p223
      %p225 = pneg %p224
      // Predicated region
      $region9: #{tpu_custom_call.1} parent=5 // pred_check
        _
      $region10: #{tpu_custom_call.1} parent=5 // pred_check_branch
        %227 = sbr.rel (%p224) target = $region12
      $region11: #{tpu_custom_call.1} parent=5 // pred_region
        %s228 = ssub.s32 %s20, 1
        // Predicated region
        $region13: #{tpu_custom_call.1} parent=11 // pred_check
          %p229 = pneg %p41
        $region14: #{tpu_custom_call.1} parent=11 // pred_check_branch
          %231 = sbr.rel (%p229) target = $region16
        $region15: #{tpu_custom_call.1} parent=11 // pred_region
          _
        $region16: #{tpu_custom_call.1} parent=11 // pred_fallthru
          _
        // Predicated region
        $region17: #{tpu_custom_call.1} parent=11 // pred_check
          %p232 = pneg %p88
        $region18: #{tpu_custom_call.1} parent=11 // pred_check_branch
          %234 = sbr.rel (%p232) target = $region20
        $region19: #{tpu_custom_call.1} parent=11 // pred_region
          _
        $region20: #{tpu_custom_call.1} parent=11 // pred_fallthru
          _
        // Predicated region
        $region21: #{tpu_custom_call.1} parent=11 // pred_check
          %p235 = pneg %p109
        $region22: #{tpu_custom_call.1} parent=11 // pred_check_branch
          %237 = sbr.rel (%p235) target = $region24
        $region23: #{tpu_custom_call.1} parent=11 // pred_region
          _
        $region24: #{tpu_custom_call.1} parent=11 // pred_fallthru
          _
        // Predicated region
        $region25: #{tpu_custom_call.1} parent=11 // pred_check
          %p238 = pneg %p130
        $region26: #{tpu_custom_call.1} parent=11 // pred_check_branch
          %240 = sbr.rel (%p238) target = $region28
        $region27: #{tpu_custom_call.1} parent=11 // pred_region
          _
        $region28: #{tpu_custom_call.1} parent=11 // pred_fallthru
          _
        // Predicated region
        $region29: #{tpu_custom_call.1} parent=11 // pred_check
          %p241 = pneg %p151
        $region30: #{tpu_custom_call.1} parent=11 // pred_check_branch
          %243 = sbr.rel (%p241) target = $region32
        $region31: #{tpu_custom_call.1} parent=11 // pred_region
          _
        $region32: #{tpu_custom_call.1} parent=11 // pred_fallthru
          _
        // Predicated region
        $region33: #{tpu_custom_call.1} parent=11 // pred_check
          %p244 = pneg %p172
        $region34: #{tpu_custom_call.1} parent=11 // pred_check_branch
          %246 = sbr.rel (%p244) target = $region36
        $region35: #{tpu_custom_call.1} parent=11 // pred_region
          _
        $region36: #{tpu_custom_call.1} parent=11 // pred_fallthru
          _
        // Predicated region
        $region37: #{tpu_custom_call.1} parent=11 // pred_check
          %p247 = pneg %p193
        $region38: #{tpu_custom_call.1} parent=11 // pred_check_branch
          %249 = sbr.rel (%p247) target = $region40
        $region39: #{tpu_custom_call.1} parent=11 // pred_region
          _
        $region40: #{tpu_custom_call.1} parent=11 // pred_fallthru
          _
      $region12: #{tpu_custom_call.1} parent=5 // pred_fallthru
        _
      %p250 = scmp.lt.s32.totalorder %s20, 2
      // Predicated region
      $region41: #{tpu_custom_call.1} parent=5 // pred_check
        %p251 = pneg %p250
      $region42: #{tpu_custom_call.1} parent=5 // pred_check_branch
        %253 = sbr.rel (%p251) target = $region44
      $region43: #{tpu_custom_call.1} parent=5 // pred_region
        // Predicated region
        $region45: #{tpu_custom_call.1} parent=43 // pred_check
          %p254 = pneg %p61
        $region46: #{tpu_custom_call.1} parent=43 // pred_check_branch
          %256 = sbr.rel (%p254) target = $region48
        $region47: #{tpu_custom_call.1} parent=43 // pred_region
          #allocation13 [shape = 'u32[6]{0}', space=smem, size = 0x18, scoped, tag = 'DMA stride descriptor']
          %s257 = sand.u32 %s51, 1
          %s258 = scalar_lea.sflag [#allocation9], %s257
          %s259 = sand.u32 %s51, 1
          %s260 = smul.addr %s259, 16
          %s261 = scalar_lea.vmem [#allocation8], %s260
          %s262 = smul.u32 2, %s20
          %s264 = ssub.s32 256, 256
          %265 = vsyncadd %s258, %s264
          %s266 = smul.addr %s262, 64
          %s267 = scalar_lea.hbm %s2, %s266
          %s269 = sshll.u32 1, 14
          %s270 = sxor.u32 4294967295, %s269
          %s272 = sld [smem:[#allocation0]]
          %s273 = sadd.s32 2, %s272
          %s275 = sshll.u32 7, 26
          %s276 = sxor.u32 4294967295, %s275
          %s277 = sand.u32 0, %s276
          %s278 = sshll.u32 %s273, 26
          %s279 = sor.u32 %s277, %s278
          %s280 = sshll.u32 %s261, 4
          %s281 = int_to_ptr.vmem [resolvable:$true] %s280
          %287 = sst [smem:[#allocation13]] 256
          %s288 = scalar_lea.smem [#allocation13], 1
          %289 = sst [smem:[%s288]] 128
          %s290 = scalar_lea.smem [#allocation13], 2
          %291 = sst [smem:[%s290]] 2
          %s292 = scalar_lea.smem [#allocation13], 3
          %293 = sst [smem:[%s292]] 64
          %s294 = scalar_lea.smem [#allocation13], 4
          %295 = sst [smem:[%s294]] 64
          %s296 = scalar_lea.smem [#allocation13], 5
          %297 = sst [smem:[%s296]] 4
          %299 = dma.general %s267, 256, %s281, %s258, [#allocation12], [#allocation13], %s279, 0
        $region48: #{tpu_custom_call.1} parent=43 // pred_fallthru
          _
      $region44: #{tpu_custom_call.1} parent=5 // pred_fallthru
        _
      %p300 = scmp.le.s32.totalorder 1, %s20
      %p301 = scmp.lt.s32.totalorder %s20, 3
      %p302 = pnand %p300, %p301
      %p303 = pneg %p302
      // Predicated region
      $region49: #{tpu_custom_call.1} parent=5 // pred_check
        _
      $region50: #{tpu_custom_call.1} parent=5 // pred_check_branch
        %305 = sbr.rel (%p302) target = $region52
      $region51: #{tpu_custom_call.1} parent=5 // pred_region
        %s306 = ssub.s32 %s20, 1
        %s307 = sand.u32 %s54, 1
        %s308 = scalar_lea.sflag [#allocation9], %s307
        %s309 = sand.u32 %s54, 1
        %s310 = smul.addr %s309, 16
        %s311 = scalar_lea.vmem [#allocation8], %s310
        // Predicated region
        $region53: #{tpu_custom_call.1} parent=51 // pred_check
          %p312 = pneg %p67
        $region54: #{tpu_custom_call.1} parent=51 // pred_check_branch
          %314 = sbr.rel (%p312) target = $region56
        $region55: #{tpu_custom_call.1} parent=51 // pred_region
          %315 = dma.done %s308, 256
        $region56: #{tpu_custom_call.1} parent=51 // pred_fallthru
          _
        %p316 = pneg %p41
        %p317 = pneg %p38
        %s318 = sand.u32 %s54, 1
        %s319 = scalar_lea.sflag [#allocation9], %s318
        %s320 = sand.u32 %s54, 1
        %s321 = smul.addr %s320, 16
        %s322 = scalar_lea.vmem [#allocation8], %s321
        %p323 = pneg %p67
        %p324 = pneg %p64
        %p325 = pneg %p88
        %p326 = pneg %p85
        %p327 = pneg %p109
        %p328 = pneg %p106
        %p329 = pneg %p130
        %p330 = pneg %p127
        %p331 = pneg %p151
        %p332 = pneg %p148
        %p333 = pneg %p172
        %p334 = pneg %p169
        %p335 = pneg %p193
        %p336 = pneg %p190
        %p337 = pneg %p214
        %p338 = pneg %p211
        %s339 = smul.u32 2, %s25
        %p341 = scmp.eq.s32.totalorder %s25, 0
        // Predicated region
        $region57: #{tpu_custom_call.1} parent=51 // pred_check
          %p342 = pneg %p341
        $region58: #{tpu_custom_call.1} parent=51 // pred_check_branch
          %344 = sbr.rel (%p342) target = $region60
        $region59: #{tpu_custom_call.1} parent=51 // pred_region
          %vm345 = vcmask 254976
          %346 = vst.msk [vmem:[#allocation2] sm:$0x3] %vm345, 0.0
          %347 = vst.msk [vmem:[#allocation3] sm:$0x3] %vm345, 0.0
          %348 = vst.msk [vmem:[#allocation4] sm:$0x3] %vm345, 0.0
          %349 = vst.msk [vmem:[#allocation5] sm:$0x3] %vm345, -inf
        $region60: #{tpu_custom_call.1} parent=51 // pred_fallthru
          _
        %s350 = sld [smem:[#allocation7]]
        %s351 = smul.u32 %s25, 16
        %p352 = scmp.lt.s32.totalorder %s351, %s350
        // Predicated region
        $region61: #{tpu_custom_call.1} parent=51 // pred_check
          %p353 = pneg %p352
        $region62: #{tpu_custom_call.1} parent=51 // pred_check_branch
          %355 = sbr.rel (%p353) target = $region64
        $region63: #{tpu_custom_call.1} parent=51 // pred_region
          %v356 = vld [vmem:[%s311] sm:$0xf]
          %v357 = vld [vmem:[%s311 + $0x4] sm:$0xf]
          %v358 = vld [vmem:[%s311 + $0x8] sm:$0xf]
          %v359 = vld [vmem:[%s311 + $0xc] sm:$0xf]
          %v360 = vld [vmem:[%s3] sm:$0xf]
          %v361 = vld [vmem:[%s3 + $0x4] sm:$0xf]
          %v362 = vld [vmem:[%s3 + $0x8] sm:$0xf]
          %v363 = vld [vmem:[%s3 + $0xc] sm:$0xf]
          %v364 = vld [vmem:[%s3 + $0x10] sm:$0xf]
          %v365 = vld [vmem:[%s3 + $0x14] sm:$0xf]
          %v366 = vld [vmem:[%s3 + $0x18] sm:$0xf]
          %v367 = vld [vmem:[%s3 + $0x1c] sm:$0xf]
          %v368 = vld [vmem:[%s3 + $0x20] sm:$0xf]
          %v369 = vld [vmem:[%s3 + $0x24] sm:$0xf]
          %v370 = vld [vmem:[%s3 + $0x28] sm:$0xf]
          %v371 = vld [vmem:[%s3 + $0x2c] sm:$0xf]
          %v372 = vld [vmem:[%s3 + $0x30] sm:$0xf]
          %v373 = vld [vmem:[%s3 + $0x34] sm:$0xf]
          %v374 = vld [vmem:[%s3 + $0x38] sm:$0xf]
          %v375 = vld [vmem:[%s3 + $0x3c] sm:$0xf]
          %v380 = vunpack.c.l.b16 %v356
          %v381 = vunpack.c.l.b16 %v357
          %v382 = vunpack.c.l.b16 %v358
          %v383 = vunpack.c.l.b16 %v359
          %v384 = vpack.c.b16 %v381, %v380
          %v385 = vpack.c.b16 %v383, %v382
          %v404 = vunpack.c.l.b16 %v360
          %v405 = vunpack.c.l.b16 %v361
          %v406 = vunpack.c.l.b16 %v362
          %v407 = vunpack.c.l.b16 %v363
          %v408 = vunpack.c.l.b16 %v364
          %v409 = vunpack.c.l.b16 %v365
          %v410 = vunpack.c.l.b16 %v366
          %v411 = vunpack.c.l.b16 %v367
          %v412 = vunpack.c.l.b16 %v368
          %v413 = vunpack.c.l.b16 %v369
          %v414 = vunpack.c.l.b16 %v370
          %v415 = vunpack.c.l.b16 %v371
          %v416 = vunpack.c.l.b16 %v372
          %v417 = vunpack.c.l.b16 %v373
          %v418 = vunpack.c.l.b16 %v374
          %v419 = vunpack.c.l.b16 %v375
          %v420 = vpack.c.b16 %v405, %v404
          %v421 = vpack.c.b16 %v407, %v406
          %v422 = vpack.c.b16 %v409, %v408
          %v423 = vpack.c.b16 %v411, %v410
          %v424 = vpack.c.b16 %v413, %v412
          %v425 = vpack.c.b16 %v415, %v414
          %v426 = vpack.c.b16 %v417, %v416
          %v427 = vpack.c.b16 %v419, %v418
          %436 = vmatprep.subr.bf16.mxu0 0
          %437 = vmatpush1.bf16.msra.mxu0 %v420
          %438 = vmatprep.subr.bf16.mxu0 0
          %439 = vmatpush1.bf16.msra.mxu0 %v421
          %440 = vmatprep.subr.bf16.mxu0 0
          %441 = vmatpush1.bf16.msra.mxu0 %v422
          %442 = vmatprep.subr.bf16.mxu0 0
          %443 = vmatpush1.bf16.msra.mxu0 %v423
          %444 = vmatprep.subr.bf16.mxu0 0
          %445 = vmatpush1.bf16.msra.mxu0 %v424
          %446 = vmatprep.subr.bf16.mxu0 0
          %447 = vmatpush1.bf16.msra.mxu0 %v425
          %448 = vmatprep.subr.bf16.mxu0 0
          %449 = vmatpush1.bf16.msra.mxu0 %v426
          %450 = vmatprep.subr.bf16.mxu0 0
          %451 = vmatpush1.bf16.msra.mxu0 %v427
          %452 = vmatprep.subr.bf16.mxu0 0
          %453 = vmatpush1.bf16.msra.mxu0 0
          %454 = vmatprep.subr.bf16.mxu0 0
          %455 = vmatpush1.bf16.msra.mxu0 0
          %456 = vmatprep.subr.bf16.mxu0 0
          %457 = vmatpush1.bf16.msra.mxu0 0
          %458 = vmatprep.subr.bf16.mxu0 0
          %459 = vmatpush1.bf16.msra.mxu0 0
          %460 = vmatprep.subr.bf16.mxu0 0
          %461 = vmatpush1.bf16.msra.mxu0 0
          %462 = vmatprep.subr.bf16.mxu0 0
          %463 = vmatpush1.bf16.msra.mxu0 0
          %464 = vmatprep.subr.bf16.mxu0 0
          %465 = vmatpush1.bf16.msra.mxu0 0
          %466 = vmatprep.subr.bf16.mxu0 0
          %467 = vmatpush1.bf16.msra.mxu0 0
          %468 = vmatprep.mubr.bf16.mxu0 0
          %469 = vmatmul.mubr.bf16.gmra.mrb[0].mxu0 %v384
          %v470 = vpop.f32.mrb[0].mxu0
          %v471 = vadd.f32 0.0, %v470
          %v472 = vpop.f32.mrb[0].mxu0
          %v473 = vpop.f32.mrb[0].mxu0
          %v474 = vadd.f32 0.0, %v473
          %v475 = vpop.f32.mrb[0].mxu0
          %476 = vmatprep.mubr.bf16.mxu0 0
          %477 = vmatmul.mubr.bf16.gmra.mrb[0].mxu0 %v385
          %v478 = vpop.f32.mrb[0].mxu0
          %v479 = vadd.f32 0.0, %v478
          %v480 = vpop.f32.mrb[0].mxu0
          %v481 = vpop.f32.mrb[0].mxu0
          %v482 = vadd.f32 0.0, %v481
          %v483 = vpop.f32.mrb[0].mxu0
          %484 = vdwg.mxu0
          %v485 = vld [vmem:[%s5] sm:$0x1]
          %v487 = vlaneseq
          %v488 = vshrl.u32 %v487, 7
          %v489 = vsub.s32 0, %v488
          %v490 = vrot.slane %v485, %v489
          %v492 = vadd.f32 %v471, %v490
          %v493 = vadd.f32 %v474, %v490
          %v494 = vadd.f32 %v479, %v490
          %v495 = vadd.f32 %v482, %v490
          %v496 = vld [vmem:[%s4] sm:$0xf]
          %v497 = vld [vmem:[%s4 + $0x4] sm:$0xf]
          %v498 = vld [vmem:[%s4 + $0x8] sm:$0xf]
          %v499 = vld [vmem:[%s4 + $0xc] sm:$0xf]
          %v500 = vld [vmem:[%s1] sm:$0x3]
          %v501 = vld [vmem:[#allocation2] sm:$0x3]
          %v502 = vld [vmem:[#allocation3] sm:$0x3]
          %v503 = vld [vmem:[#allocation4] sm:$0x3]
          %v504 = vld [vmem:[#allocation5] sm:$0x3]
          %v505 = vpack.c.bf16 %v501, %v501
          %v510 = vunpack.c.l.b16 %v496
          %v511 = vunpack.c.l.b16 %v497
          %v512 = vunpack.c.l.b16 %v498
          %v513 = vunpack.c.l.b16 %v499
          %v514 = vpack.c.b16 %v511, %v510
          %v515 = vpack.c.b16 %v513, %v512
          %vm518 = vcmask 261120
          %v520 = vsel %vm518, %v505, 0
          %522 = vmatprep.subr.bf16.mxu0 0
          %523 = vmatpush1.bf16.msra.mxu0 %v514
          %524 = vmatprep.subr.bf16.mxu0 0
          %525 = vmatpush1.bf16.msra.mxu0 %v515
          %526 = vmatprep.subr.bf16.mxu0 0
          %527 = vmatpush1.bf16.msra.mxu0 0
          %528 = vmatprep.subr.bf16.mxu0 0
          %529 = vmatpush1.bf16.msra.mxu0 0
          %530 = vmatprep.subr.bf16.mxu0 0
          %531 = vmatpush1.bf16.msra.mxu0 0
          %532 = vmatprep.subr.bf16.mxu0 0
          %533 = vmatpush1.bf16.msra.mxu0 0
          %534 = vmatprep.subr.bf16.mxu0 0
          %535 = vmatpush1.bf16.msra.mxu0 0
          %536 = vmatprep.subr.bf16.mxu0 0
          %537 = vmatpush1.bf16.msra.mxu0 0
          %538 = vmatprep.subr.bf16.mxu0 0
          %539 = vmatpush1.bf16.msra.mxu0 0
          %540 = vmatprep.subr.bf16.mxu0 0
          %541 = vmatpush1.bf16.msra.mxu0 0
          %542 = vmatprep.subr.bf16.mxu0 0
          %543 = vmatpush1.bf16.msra.mxu0 0
          %544 = vmatprep.subr.bf16.mxu0 0
          %545 = vmatpush1.bf16.msra.mxu0 0
          %546 = vmatprep.subr.bf16.mxu0 0
          %547 = vmatpush1.bf16.msra.mxu0 0
          %548 = vmatprep.subr.bf16.mxu0 0
          %549 = vmatpush1.bf16.msra.mxu0 0
          %550 = vmatprep.subr.bf16.mxu0 0
          %551 = vmatpush1.bf16.msra.mxu0 0
          %552 = vmatprep.subr.bf16.mxu0 0
          %553 = vmatpush1.bf16.msra.mxu0 0
          %554 = vmatprep.mubr.bf16.mxu0 0
          %555 = vmatmul.mubr.bf16.gmra.mrb[0].mxu0 %v520
          %v556 = vpop.f32.mrb[0].mxu0
          %v557 = vadd.f32 0.0, %v556
          %v558 = vpop.f32.mrb[0].mxu0
          %v559 = vpop.f32.mrb[0].mxu0
          %v560 = vpop.f32.mrb[0].mxu0
          %561 = vdwg.mxu0
          %v563 = vrot.slane %v557, 1
          %v566 = vadd.f32 %v492, %v557
          %v567 = vadd.f32 %v494, %v563
          %v568 = vxor.u32 %v566, 2147483648
          %v569 = vxor.u32 %v567, 2147483648
          %v570 = vmul.f32 %v568, 1.442695
          %v571 = vpow.pop %v570
          %v572 = vmul.f32 %v569, 1.442695
          %v573 = vpow.pop %v572
          %v574 = vadd.f32 %v571, 1.0
          %v575 = vadd.f32 %v573, 1.0
          %v576 = vrcp.pop %v574
          %v577 = vmul.f32 1.0, %v576
          %v578 = vrcp.pop %v575
          %v579 = vmul.f32 1.0, %v578
          %v580 = vtanh.pop %v566
          %v581 = vtanh.pop %v567
          %v583 = vrot.slane %v502, 1
          %584 = vrot.lane.b32.xlu0 %v502, 32
          %v585 = vpop.permute.xlu0 %584
          %586 = vrot.lane.b32.xlu0 %v583, 32
          %v587 = vpop.permute.xlu0 %586
          %v590 = vmul.f32 %v577, %v585
          %v591 = vmul.f32 %v579, %v587
          %594 = vrot.lane.b32.xlu0 %v580, 32
          %v595 = vpop.permute.xlu0 %594
          %596 = vrot.lane.b32.xlu0 %v581, 32
          %v597 = vpop.permute.xlu0 %596
          %v600 = vmul.f32 %v577, %v595
          %v601 = vmul.f32 %v579, %v597
          %604 = vrot.lane.b32.xlu0 %v600, 32
          %v605 = vpop.permute.xlu0 %604
          %606 = vrot.lane.b32.xlu0 %v601, 32
          %v607 = vpop.permute.xlu0 %606
          %v610 = vadd.f32 %v590, %v605
          %v611 = vadd.f32 %v591, %v607
          %v612 = vtanh.pop %v610
          %v613 = vtanh.pop %v611
          %616 = vrot.lane.b32.xlu0 %v612, 32
          %v617 = vpop.permute.xlu0 %616
          %618 = vrot.lane.b32.xlu0 %v613, 32
          %v619 = vpop.permute.xlu0 %618
          %v622 = vmul.f32 %v577, %v617
          %v623 = vmul.f32 %v579, %v619
          %v624 = vstv %s351
          %vm625 = vcmp.lt.s32.totalorder %v624, %v500
          %v626 = vsel %vm625, 1, 0
          %627 = vset.pattern.permute.xlu0 0
          %628 = vperm.xlu0 %627, %v626
          %v629 = vpop.permute.xlu0 %628
          %vm630 = vcmp.eq.s32.totalorder %v629, 1
          %v633 = vrot.slane %v623, 7
          %vm634 = vcmask 1041409
          %v635 = vsel %vm634, %v633, %v622
          %636 = vrot.lane.b32.xlu0 %v635, 64
          %v637 = vpop.permute.xlu0 %636
          %v639 = vsel %vm630, %v637, %v501
          %v642 = vrot.slane %v611, 7
          %v643 = vsel %vm634, %v642, %v610
          %644 = vrot.lane.b32.xlu0 %v643, 96
          %v645 = vpop.permute.xlu0 %644
          %v647 = vsel %vm630, %v645, %v502
          %v648 = vsel %vm630, %v637, 0.0
          %v649 = vadd.f32 %v503, %v648
          %v650 = vmax.f32 %v504, %v648
          %v651 = vpack.c.bf16 %v639, %v639
          %v653 = vsel %vm518, %v651, 0
          %655 = vmatprep.subr.bf16.mxu0 0
          %656 = vmatpush1.bf16.msra.mxu0 %v514
          %657 = vmatprep.subr.bf16.mxu0 0
          %658 = vmatpush1.bf16.msra.mxu0 %v515
          %659 = vmatprep.subr.bf16.mxu0 0
          %660 = vmatpush1.bf16.msra.mxu0 0
          %661 = vmatprep.subr.bf16.mxu0 0
          %662 = vmatpush1.bf16.msra.mxu0 0
          %663 = vmatprep.subr.bf16.mxu0 0
          %664 = vmatpush1.bf16.msra.mxu0 0
          %665 = vmatprep.subr.bf16.mxu0 0
          %666 = vmatpush1.bf16.msra.mxu0 0
          %667 = vmatprep.subr.bf16.mxu0 0
          %668 = vmatpush1.bf16.msra.mxu0 0
          %669 = vmatprep.subr.bf16.mxu0 0
          %670 = vmatpush1.bf16.msra.mxu0 0
          %671 = vmatprep.subr.bf16.mxu0 0
          %672 = vmatpush1.bf16.msra.mxu0 0
          %673 = vmatprep.subr.bf16.mxu0 0
          %674 = vmatpush1.bf16.msra.mxu0 0
          %675 = vmatprep.subr.bf16.mxu0 0
          %676 = vmatpush1.bf16.msra.mxu0 0
          %677 = vmatprep.subr.bf16.mxu0 0
          %678 = vmatpush1.bf16.msra.mxu0 0
          %679 = vmatprep.subr.bf16.mxu0 0
          %680 = vmatpush1.bf16.msra.mxu0 0
          %681 = vmatprep.subr.bf16.mxu0 0
          %682 = vmatpush1.bf16.msra.mxu0 0
          %683 = vmatprep.subr.bf16.mxu0 0
          %684 = vmatpush1.bf16.msra.mxu0 0
          %685 = vmatprep.subr.bf16.mxu0 0
          %686 = vmatpush1.bf16.msra.mxu0 0
          %687 = vmatprep.mubr.bf16.mxu0 0
          %688 = vmatmul.mubr.bf16.gmra.mrb[0].mxu0 %v653
          %v689 = vpop.f32.mrb[0].mxu0
          %v690 = vadd.f32 0.0, %v689
          %v691 = vpop.f32.mrb[0].mxu0
          %v692 = vpop.f32.mrb[0].mxu0
          %v693 = vpop.f32.mrb[0].mxu0
          %694 = vdwg.mxu0
          %v696 = vrot.slane %v690, 7
          %v699 = vadd.f32 %v492, %v696
          %v700 = vadd.f32 %v494, %v690
          %v701 = vxor.u32 %v699, 2147483648
          %v702 = vxor.u32 %v700, 2147483648
          %v703 = vmul.f32 %v701, 1.442695
          %v704 = vpow.pop %v703
          %v705 = vmul.f32 %v702, 1.442695
          %v706 = vpow.pop %v705
          %v707 = vadd.f32 %v704, 1.0
          %v708 = vadd.f32 %v706, 1.0
          %v709 = vrcp.pop %v707
          %v710 = vmul.f32 1.0, %v709
          %v711 = vrcp.pop %v708
          %v712 = vmul.f32 1.0, %v711
          %v713 = vtanh.pop %v699
          %v714 = vtanh.pop %v700
          %v716 = vrot.slane %v647, 7
          %717 = vrot.lane.b32.xlu0 %v716, 32
          %v718 = vpop.permute.xlu0 %717
          %719 = vrot.lane.b32.xlu0 %v647, 32
          %v720 = vpop.permute.xlu0 %719
          %v723 = vmul.f32 %v710, %v718
          %v724 = vmul.f32 %v712, %v720
          %727 = vrot.lane.b32.xlu0 %v713, 32
          %v728 = vpop.permute.xlu0 %727
          %729 = vrot.lane.b32.xlu0 %v714, 32
          %v730 = vpop.permute.xlu0 %729
          %v733 = vmul.f32 %v710, %v728
          %v734 = vmul.f32 %v712, %v730
          %737 = vrot.lane.b32.xlu0 %v733, 32
          %v738 = vpop.permute.xlu0 %737
          %739 = vrot.lane.b32.xlu0 %v734, 32
          %v740 = vpop.permute.xlu0 %739
          %v743 = vadd.f32 %v723, %v738
          %v744 = vadd.f32 %v724, %v740
          %v745 = vtanh.pop %v743
          %v746 = vtanh.pop %v744
          %749 = vrot.lane.b32.xlu0 %v745, 32
          %v750 = vpop.permute.xlu0 %749
          %751 = vrot.lane.b32.xlu0 %v746, 32
          %v752 = vpop.permute.xlu0 %751
          %v755 = vmul.f32 %v710, %v750
          %v756 = vmul.f32 %v712, %v752
          %s757 = sadd.s32 %s351, 1
          %v758 = vstv %s757
          %vm759 = vcmp.lt.s32.totalorder %v758, %v500
          %v760 = vsel %vm759, 1, 0
          %761 = vset.pattern.permute.xlu0 0
          %762 = vperm.xlu0 %761, %v760
          %v763 = vpop.permute.xlu0 %762
          %vm764 = vcmp.eq.s32.totalorder %v763, 1
          %v767 = vrot.slane %v755, 1
          %v768 = vsel %vm634, %v756, %v767
          %769 = vrot.lane.b32.xlu0 %v768, 64
          %v770 = vpop.permute.xlu0 %769
          %v772 = vsel %vm764, %v770, %v639
          %v775 = vrot.slane %v743, 1
          %v776 = vsel %vm634, %v744, %v775
          %777 = vrot.lane.b32.xlu0 %v776, 96
          %v778 = vpop.permute.xlu0 %777
          %v780 = vsel %vm764, %v778, %v647
          %v781 = vsel %vm764, %v770, 0.0
          %v782 = vadd.f32 %v649, %v781
          %p783 = scmp.lt.s32.totalorder %s757, %s350
          %s784 = scalar_select %p783, 0.0, -inf
          %v785 = vstv %s784
          %v786 = vsel %vm764, %v770, %v785
          %v787 = vmax.f32 %v650, %v786
          %v788 = vpack.c.bf16 %v772, %v772
          %v790 = vsel %vm518, %v788, 0
          %792 = vmatprep.subr.bf16.mxu0 0
          %793 = vmatpush1.bf16.msra.mxu0 %v514
          %794 = vmatprep.subr.bf16.mxu0 0
          %795 = vmatpush1.bf16.msra.mxu0 %v515
          %796 = vmatprep.subr.bf16.mxu0 0
          %797 = vmatpush1.bf16.msra.mxu0 0
          %798 = vmatprep.subr.bf16.mxu0 0
          %799 = vmatpush1.bf16.msra.mxu0 0
          %800 = vmatprep.subr.bf16.mxu0 0
          %801 = vmatpush1.bf16.msra.mxu0 0
          %802 = vmatprep.subr.bf16.mxu0 0
          %803 = vmatpush1.bf16.msra.mxu0 0
          %804 = vmatprep.subr.bf16.mxu0 0
          %805 = vmatpush1.bf16.msra.mxu0 0
          %806 = vmatprep.subr.bf16.mxu0 0
          %807 = vmatpush1.bf16.msra.mxu0 0
          %808 = vmatprep.subr.bf16.mxu0 0
          %809 = vmatpush1.bf16.msra.mxu0 0
          %810 = vmatprep.subr.bf16.mxu0 0
          %811 = vmatpush1.bf16.msra.mxu0 0
          %812 = vmatprep.subr.bf16.mxu0 0
          %813 = vmatpush1.bf16.msra.mxu0 0
          %814 = vmatprep.subr.bf16.mxu0 0
          %815 = vmatpush1.bf16.msra.mxu0 0
          %816 = vmatprep.subr.bf16.mxu0 0
          %817 = vmatpush1.bf16.msra.mxu0 0
          %818 = vmatprep.subr.bf16.mxu0 0
          %819 = vmatpush1.bf16.msra.mxu0 0
          %820 = vmatprep.subr.bf16.mxu0 0
          %821 = vmatpush1.bf16.msra.mxu0 0
          %822 = vmatprep.subr.bf16.mxu0 0
          %823 = vmatpush1.bf16.msra.mxu0 0
          %824 = vmatprep.mubr.bf16.mxu0 0
          %825 = vmatmul.mubr.bf16.gmra.mrb[0].mxu0 %v790
          %v826 = vpop.f32.mrb[0].mxu0
          %v827 = vadd.f32 0.0, %v826
          %v828 = vpop.f32.mrb[0].mxu0
          %v829 = vpop.f32.mrb[0].mxu0
          %v830 = vpop.f32.mrb[0].mxu0
          %831 = vdwg.mxu0
          %v833 = vrot.slane %v827, 6
          %v834 = vrot.slane %v827, 7
          %v837 = vadd.f32 %v492, %v833
          %v838 = vadd.f32 %v494, %v834
          %v839 = vxor.u32 %v837, 2147483648
          %v840 = vxor.u32 %v838, 2147483648
          %v841 = vmul.f32 %v839, 1.442695
          %v842 = vpow.pop %v841
          %v843 = vmul.f32 %v840, 1.442695
          %v844 = vpow.pop %v843
          %v845 = vadd.f32 %v842, 1.0
          %v846 = vadd.f32 %v844, 1.0
          %v847 = vrcp.pop %v845
          %v848 = vmul.f32 1.0, %v847
          %v849 = vrcp.pop %v846
          %v850 = vmul.f32 1.0, %v849
          %v851 = vtanh.pop %v837
          %v852 = vtanh.pop %v838
          %v854 = vrot.slane %v780, 6
          %v855 = vrot.slane %v780, 7
          %856 = vrot.lane.b32.xlu0 %v854, 32
          %v857 = vpop.permute.xlu0 %856
          %858 = vrot.lane.b32.xlu0 %v855, 32
          %v859 = vpop.permute.xlu0 %858
          %v862 = vmul.f32 %v848, %v857
          %v863 = vmul.f32 %v850, %v859
          %866 = vrot.lane.b32.xlu0 %v851, 32
          %v867 = vpop.permute.xlu0 %866
          %868 = vrot.lane.b32.xlu0 %v852, 32
          %v869 = vpop.permute.xlu0 %868
          %v872 = vmul.f32 %v848, %v867
          %v873 = vmul.f32 %v850, %v869
          %876 = vrot.lane.b32.xlu0 %v872, 32
          %v877 = vpop.permute.xlu0 %876
          %878 = vrot.lane.b32.xlu0 %v873, 32
          %v879 = vpop.permute.xlu0 %878
          %v882 = vadd.f32 %v862, %v877
          %v883 = vadd.f32 %v863, %v879
          %v884 = vtanh.pop %v882
          %v885 = vtanh.pop %v883
          %888 = vrot.lane.b32.xlu0 %v884, 32
          %v889 = vpop.permute.xlu0 %888
          %890 = vrot.lane.b32.xlu0 %v885, 32
          %v891 = vpop.permute.xlu0 %890
          %v894 = vmul.f32 %v848, %v889
          %v895 = vmul.f32 %v850, %v891
          %s896 = sadd.s32 %s351, 2
          %v897 = vstv %s896
          %vm898 = vcmp.lt.s32.totalorder %v897, %v500
          %v899 = vsel %vm898, 1, 0
          %900 = vset.pattern.permute.xlu0 0
          %901 = vperm.xlu0 %900, %v899
          %v902 = vpop.permute.xlu0 %901
          %vm903 = vcmp.eq.s32.totalorder %v902, 1
          %v906 = vrot.slane %v894, 2
          %v907 = vrot.slane %v895, 1
          %v908 = vsel %vm634, %v907, %v906
          %909 = vrot.lane.b32.xlu0 %v908, 64
          %v910 = vpop.permute.xlu0 %909
          %v912 = vsel %vm903, %v910, %v772
          %v915 = vrot.slane %v882, 2
          %v916 = vrot.slane %v883, 1
          %v917 = vsel %vm634, %v916, %v915
          %918 = vrot.lane.b32.xlu0 %v917, 96
          %v919 = vpop.permute.xlu0 %918
          %v921 = vsel %vm903, %v919, %v780
          %v922 = vsel %vm903, %v910, 0.0
          %v923 = vadd.f32 %v782, %v922
          %p924 = scmp.lt.s32.totalorder %s896, %s350
          %s925 = scalar_select %p924, 0.0, -inf
          %v926 = vstv %s925
          %v927 = vsel %vm903, %v910, %v926
          %v928 = vmax.f32 %v787, %v927
          %v929 = vpack.c.bf16 %v912, %v912
          %v931 = vsel %vm518, %v929, 0
          %933 = vmatprep.subr.bf16.mxu0 0
          %934 = vmatpush1.bf16.msra.mxu0 %v514
          %935 = vmatprep.subr.bf16.mxu0 0
          %936 = vmatpush1.bf16.msra.mxu0 %v515
          %937 = vmatprep.subr.bf16.mxu0 0
          %938 = vmatpush1.bf16.msra.mxu0 0
          %939 = vmatprep.subr.bf16.mxu0 0
          %940 = vmatpush1.bf16.msra.mxu0 0
          %941 = vmatprep.subr.bf16.mxu0 0
          %942 = vmatpush1.bf16.msra.mxu0 0
          %943 = vmatprep.subr.bf16.mxu0 0
          %944 = vmatpush1.bf16.msra.mxu0 0
          %945 = vmatprep.subr.bf16.mxu0 0
          %946 = vmatpush1.bf16.msra.mxu0 0
          %947 = vmatprep.subr.bf16.mxu0 0
          %948 = vmatpush1.bf16.msra.mxu0 0
          %949 = vmatprep.subr.bf16.mxu0 0
          %950 = vmatpush1.bf16.msra.mxu0 0
          %951 = vmatprep.subr.bf16.mxu0 0
          %952 = vmatpush1.bf16.msra.mxu0 0
          %953 = vmatprep.subr.bf16.mxu0 0
          %954 = vmatpush1.bf16.msra.mxu0 0
          %955 = vmatprep.subr.bf16.mxu0 0
          %956 = vmatpush1.bf16.msra.mxu0 0
          %957 = vmatprep.subr.bf16.mxu0 0
          %958 = vmatpush1.bf16.msra.mxu0 0
          %959 = vmatprep.subr.bf16.mxu0 0
          %960 = vmatpush1.bf16.msra.mxu0 0
          %961 = vmatprep.subr.bf16.mxu0 0
          %962 = vmatpush1.bf16.msra.mxu0 0
          %963 = vmatprep.subr.bf16.mxu0 0
          %964 = vmatpush1.bf16.msra.mxu0 0
          %965 = vmatprep.mubr.bf16.mxu0 0
          %966 = vmatmul.mubr.bf16.gmra.mrb[0].mxu0 %v931
          %v967 = vpop.f32.mrb[0].mxu0
          %v968 = vadd.f32 0.0, %v967
          %v969 = vpop.f32.mrb[0].mxu0
          %v970 = vpop.f32.mrb[0].mxu0
          %v971 = vpop.f32.mrb[0].mxu0
          %972 = vdwg.mxu0
          %v974 = vrot.slane %v968, 5
          %v975 = vrot.slane %v968, 6
          %v978 = vadd.f32 %v492, %v974
          %v979 = vadd.f32 %v494, %v975
          %v980 = vxor.u32 %v978, 2147483648
          %v981 = vxor.u32 %v979, 2147483648
          %v982 = vmul.f32 %v980, 1.442695
          %v983 = vpow.pop %v982
          %v984 = vmul.f32 %v981, 1.442695
          %v985 = vpow.pop %v984
          %v986 = vadd.f32 %v983, 1.0
          %v987 = vadd.f32 %v985, 1.0
          %v988 = vrcp.pop %v986
          %v989 = vmul.f32 1.0, %v988
          %v990 = vrcp.pop %v987
          %v991 = vmul.f32 1.0, %v990
          %v992 = vtanh.pop %v978
          %v993 = vtanh.pop %v979
          %v995 = vrot.slane %v921, 5
          %v996 = vrot.slane %v921, 6
          %997 = vrot.lane.b32.xlu0 %v995, 32
          %v998 = vpop.permute.xlu0 %997
          %999 = vrot.lane.b32.xlu0 %v996, 32
          %v1000 = vpop.permute.xlu0 %999
          %v1003 = vmul.f32 %v989, %v998
          %v1004 = vmul.f32 %v991, %v1000
          %1007 = vrot.lane.b32.xlu0 %v992, 32
          %v1008 = vpop.permute.xlu0 %1007
          %1009 = vrot.lane.b32.xlu0 %v993, 32
          %v1010 = vpop.permute.xlu0 %1009
          %v1013 = vmul.f32 %v989, %v1008
          %v1014 = vmul.f32 %v991, %v1010
          %1017 = vrot.lane.b32.xlu0 %v1013, 32
          %v1018 = vpop.permute.xlu0 %1017
          %1019 = vrot.lane.b32.xlu0 %v1014, 32
          %v1020 = vpop.permute.xlu0 %1019
          %v1023 = vadd.f32 %v1003, %v1018
          %v1024 = vadd.f32 %v1004, %v1020
          %v1025 = vtanh.pop %v1023
          %v1026 = vtanh.pop %v1024
          %1029 = vrot.lane.b32.xlu0 %v1025, 32
          %v1030 = vpop.permute.xlu0 %1029
          %1031 = vrot.lane.b32.xlu0 %v1026, 32
          %v1032 = vpop.permute.xlu0 %1031
          %v1035 = vmul.f32 %v989, %v1030
          %v1036 = vmul.f32 %v991, %v1032
          %s1037 = sadd.s32 %s351, 3
          %v1038 = vstv %s1037
          %vm1039 = vcmp.lt.s32.totalorder %v1038, %v500
          %v1040 = vsel %vm1039, 1, 0
          %1041 = vset.pattern.permute.xlu0 0
          %1042 = vperm.xlu0 %1041, %v1040
          %v1043 = vpop.permute.xlu0 %1042
          %vm1044 = vcmp.eq.s32.totalorder %v1043, 1
          %v1047 = vrot.slane %v1035, 3
          %v1048 = vrot.slane %v1036, 2
          %v1049 = vsel %vm634, %v1048, %v1047
          %1050 = vrot.lane.b32.xlu0 %v1049, 64
          %v1051 = vpop.permute.xlu0 %1050
          %v1053 = vsel %vm1044, %v1051, %v912
          %v1056 = vrot.slane %v1023, 3
          %v1057 = vrot.slane %v1024, 2
          %v1058 = vsel %vm634, %v1057, %v1056
          %1059 = vrot.lane.b32.xlu0 %v1058, 96
          %v1060 = vpop.permute.xlu0 %1059
          %v1062 = vsel %vm1044, %v1060, %v921
          %v1063 = vsel %vm1044, %v1051, 0.0
          %v1064 = vadd.f32 %v923, %v1063
          %p1065 = scmp.lt.s32.totalorder %s1037, %s350
          %s1066 = scalar_select %p1065, 0.0, -inf
          %v1067 = vstv %s1066
          %v1068 = vsel %vm1044, %v1051, %v1067
          %v1069 = vmax.f32 %v928, %v1068
          %v1070 = vpack.c.bf16 %v1053, %v1053
          %v1072 = vsel %vm518, %v1070, 0
          %1074 = vmatprep.subr.bf16.mxu0 0
          %1075 = vmatpush1.bf16.msra.mxu0 %v514
          %1076 = vmatprep.subr.bf16.mxu0 0
          %1077 = vmatpush1.bf16.msra.mxu0 %v515
          %1078 = vmatprep.subr.bf16.mxu0 0
          %1079 = vmatpush1.bf16.msra.mxu0 0
          %1080 = vmatprep.subr.bf16.mxu0 0
          %1081 = vmatpush1.bf16.msra.mxu0 0
          %1082 = vmatprep.subr.bf16.mxu0 0
          %1083 = vmatpush1.bf16.msra.mxu0 0
          %1084 = vmatprep.subr.bf16.mxu0 0
          %1085 = vmatpush1.bf16.msra.mxu0 0
          %1086 = vmatprep.subr.bf16.mxu0 0
          %1087 = vmatpush1.bf16.msra.mxu0 0
          %1088 = vmatprep.subr.bf16.mxu0 0
          %1089 = vmatpush1.bf16.msra.mxu0 0
          %1090 = vmatprep.subr.bf16.mxu0 0
          %1091 = vmatpush1.bf16.msra.mxu0 0
          %1092 = vmatprep.subr.bf16.mxu0 0
          %1093 = vmatpush1.bf16.msra.mxu0 0
          %1094 = vmatprep.subr.bf16.mxu0 0
          %1095 = vmatpush1.bf16.msra.mxu0 0
          %1096 = vmatprep.subr.bf16.mxu0 0
          %1097 = vmatpush1.bf16.msra.mxu0 0
          %1098 = vmatprep.subr.bf16.mxu0 0
          %1099 = vmatpush1.bf16.msra.mxu0 0
          %1100 = vmatprep.subr.bf16.mxu0 0
          %1101 = vmatpush1.bf16.msra.mxu0 0
          %1102 = vmatprep.subr.bf16.mxu0 0
          %1103 = vmatpush1.bf16.msra.mxu0 0
          %1104 = vmatprep.subr.bf16.mxu0 0
          %1105 = vmatpush1.bf16.msra.mxu0 0
          %1106 = vmatprep.mubr.bf16.mxu0 0
          %1107 = vmatmul.mubr.bf16.gmra.mrb[0].mxu0 %v1072
          %v1108 = vpop.f32.mrb[0].mxu0
          %v1109 = vadd.f32 0.0, %v1108
          %v1110 = vpop.f32.mrb[0].mxu0
          %v1111 = vpop.f32.mrb[0].mxu0
          %v1112 = vpop.f32.mrb[0].mxu0
          %1113 = vdwg.mxu0
          %v1115 = vrot.slane %v1109, 4
          %v1116 = vrot.slane %v1109, 5
          %v1119 = vadd.f32 %v492, %v1115
          %v1120 = vadd.f32 %v494, %v1116
          %v1121 = vxor.u32 %v1119, 2147483648
          %v1122 = vxor.u32 %v1120, 2147483648
          %v1123 = vmul.f32 %v1121, 1.442695
          %v1124 = vpow.pop %v1123
          %v1125 = vmul.f32 %v1122, 1.442695
          %v1126 = vpow.pop %v1125
          %v1127 = vadd.f32 %v1124, 1.0
          %v1128 = vadd.f32 %v1126, 1.0
          %v1129 = vrcp.pop %v1127
          %v1130 = vmul.f32 1.0, %v1129
          %v1131 = vrcp.pop %v1128
          %v1132 = vmul.f32 1.0, %v1131
          %v1133 = vtanh.pop %v1119
          %v1134 = vtanh.pop %v1120
          %v1136 = vrot.slane %v1062, 4
          %v1137 = vrot.slane %v1062, 5
          %1138 = vrot.lane.b32.xlu0 %v1136, 32
          %v1139 = vpop.permute.xlu0 %1138
          %1140 = vrot.lane.b32.xlu0 %v1137, 32
          %v1141 = vpop.permute.xlu0 %1140
          %v1144 = vmul.f32 %v1130, %v1139
          %v1145 = vmul.f32 %v1132, %v1141
          %1148 = vrot.lane.b32.xlu0 %v1133, 32
          %v1149 = vpop.permute.xlu0 %1148
          %1150 = vrot.lane.b32.xlu0 %v1134, 32
          %v1151 = vpop.permute.xlu0 %1150
          %v1154 = vmul.f32 %v1130, %v1149
          %v1155 = vmul.f32 %v1132, %v1151
          %1158 = vrot.lane.b32.xlu0 %v1154, 32
          %v1159 = vpop.permute.xlu0 %1158
          %1160 = vrot.lane.b32.xlu0 %v1155, 32
          %v1161 = vpop.permute.xlu0 %1160
          %v1164 = vadd.f32 %v1144, %v1159
          %v1165 = vadd.f32 %v1145, %v1161
          %v1166 = vtanh.pop %v1164
          %v1167 = vtanh.pop %v1165
          %1170 = vrot.lane.b32.xlu0 %v1166, 32
          %v1171 = vpop.permute.xlu0 %1170
          %1172 = vrot.lane.b32.xlu0 %v1167, 32
          %v1173 = vpop.permute.xlu0 %1172
          %v1176 = vmul.f32 %v1130, %v1171
          %v1177 = vmul.f32 %v1132, %v1173
          %s1178 = sadd.s32 %s351, 4
          %v1179 = vstv %s1178
          %vm1180 = vcmp.lt.s32.totalorder %v1179, %v500
          %v1181 = vsel %vm1180, 1, 0
          %1182 = vset.pattern.permute.xlu0 0
          %1183 = vperm.xlu0 %1182, %v1181
          %v1184 = vpop.permute.xlu0 %1183
          %vm1185 = vcmp.eq.s32.totalorder %v1184, 1
          %v1188 = vrot.slane %v1176, 4
          %v1189 = vrot.slane %v1177, 3
          %v1190 = vsel %vm634, %v1189, %v1188
          %1191 = vrot.lane.b32.xlu0 %v1190, 64
          %v1192 = vpop.permute.xlu0 %1191
          %v1194 = vsel %vm1185, %v1192, %v1053
          %v1197 = vrot.slane %v1164, 4
          %v1198 = vrot.slane %v1165, 3
          %v1199 = vsel %vm634, %v1198, %v1197
          %1200 = vrot.lane.b32.xlu0 %v1199, 96
          %v1201 = vpop.permute.xlu0 %1200
          %v1203 = vsel %vm1185, %v1201, %v1062
          %v1204 = vsel %vm1185, %v1192, 0.0
          %v1205 = vadd.f32 %v1064, %v1204
          %p1206 = scmp.lt.s32.totalorder %s1178, %s350
          %s1207 = scalar_select %p1206, 0.0, -inf
          %v1208 = vstv %s1207
          %v1209 = vsel %vm1185, %v1192, %v1208
          %v1210 = vmax.f32 %v1069, %v1209
          %v1211 = vpack.c.bf16 %v1194, %v1194
          %v1213 = vsel %vm518, %v1211, 0
          %1215 = vmatprep.subr.bf16.mxu0 0
          %1216 = vmatpush1.bf16.msra.mxu0 %v514
          %1217 = vmatprep.subr.bf16.mxu0 0
          %1218 = vmatpush1.bf16.msra.mxu0 %v515
          %1219 = vmatprep.subr.bf16.mxu0 0
          %1220 = vmatpush1.bf16.msra.mxu0 0
          %1221 = vmatprep.subr.bf16.mxu0 0
          %1222 = vmatpush1.bf16.msra.mxu0 0
          %1223 = vmatprep.subr.bf16.mxu0 0
          %1224 = vmatpush1.bf16.msra.mxu0 0
          %1225 = vmatprep.subr.bf16.mxu0 0
          %1226 = vmatpush1.bf16.msra.mxu0 0
          %1227 = vmatprep.subr.bf16.mxu0 0
          %1228 = vmatpush1.bf16.msra.mxu0 0
          %1229 = vmatprep.subr.bf16.mxu0 0
          %1230 = vmatpush1.bf16.msra.mxu0 0
          %1231 = vmatprep.subr.bf16.mxu0 0
          %1232 = vmatpush1.bf16.msra.mxu0 0
          %1233 = vmatprep.subr.bf16.mxu0 0
          %1234 = vmatpush1.bf16.msra.mxu0 0
          %1235 = vmatprep.subr.bf16.mxu0 0
          %1236 = vmatpush1.bf16.msra.mxu0 0
          %1237 = vmatprep.subr.bf16.mxu0 0
          %1238 = vmatpush1.bf16.msra.mxu0 0
          %1239 = vmatprep.subr.bf16.mxu0 0
          %1240 = vmatpush1.bf16.msra.mxu0 0
          %1241 = vmatprep.subr.bf16.mxu0 0
          %1242 = vmatpush1.bf16.msra.mxu0 0
          %1243 = vmatprep.subr.bf16.mxu0 0
          %1244 = vmatpush1.bf16.msra.mxu0 0
          %1245 = vmatprep.subr.bf16.mxu0 0
          %1246 = vmatpush1.bf16.msra.mxu0 0
          %1247 = vmatprep.mubr.bf16.mxu0 0
          %1248 = vmatmul.mubr.bf16.gmra.mrb[0].mxu0 %v1213
          %v1249 = vpop.f32.mrb[0].mxu0
          %v1250 = vadd.f32 0.0, %v1249
          %v1251 = vpop.f32.mrb[0].mxu0
          %v1252 = vpop.f32.mrb[0].mxu0
          %v1253 = vpop.f32.mrb[0].mxu0
          %1254 = vdwg.mxu0
          %v1256 = vrot.slane %v1250, 3
          %v1257 = vrot.slane %v1250, 4
          %v1260 = vadd.f32 %v492, %v1256
          %v1261 = vadd.f32 %v494, %v1257
          %v1262 = vxor.u32 %v1260, 2147483648
          %v1263 = vxor.u32 %v1261, 2147483648
          %v1264 = vmul.f32 %v1262, 1.442695
          %v1265 = vpow.pop %v1264
          %v1266 = vmul.f32 %v1263, 1.442695
          %v1267 = vpow.pop %v1266
          %v1268 = vadd.f32 %v1265, 1.0
          %v1269 = vadd.f32 %v1267, 1.0
          %v1270 = vrcp.pop %v1268
          %v1271 = vmul.f32 1.0, %v1270
          %v1272 = vrcp.pop %v1269
          %v1273 = vmul.f32 1.0, %v1272
          %v1274 = vtanh.pop %v1260
          %v1275 = vtanh.pop %v1261
          %v1277 = vrot.slane %v1203, 3
          %v1278 = vrot.slane %v1203, 4
          %1279 = vrot.lane.b32.xlu0 %v1277, 32
          %v1280 = vpop.permute.xlu0 %1279
          %1281 = vrot.lane.b32.xlu0 %v1278, 32
          %v1282 = vpop.permute.xlu0 %1281
          %v1285 = vmul.f32 %v1271, %v1280
          %v1286 = vmul.f32 %v1273, %v1282
          %1289 = vrot.lane.b32.xlu0 %v1274, 32
          %v1290 = vpop.permute.xlu0 %1289
          %1291 = vrot.lane.b32.xlu0 %v1275, 32
          %v1292 = vpop.permute.xlu0 %1291
          %v1295 = vmul.f32 %v1271, %v1290
          %v1296 = vmul.f32 %v1273, %v1292
          %1299 = vrot.lane.b32.xlu0 %v1295, 32
          %v1300 = vpop.permute.xlu0 %1299
          %1301 = vrot.lane.b32.xlu0 %v1296, 32
          %v1302 = vpop.permute.xlu0 %1301
          %v1305 = vadd.f32 %v1285, %v1300
          %v1306 = vadd.f32 %v1286, %v1302
          %v1307 = vtanh.pop %v1305
          %v1308 = vtanh.pop %v1306
          %1311 = vrot.lane.b32.xlu0 %v1307, 32
          %v1312 = vpop.permute.xlu0 %1311
          %1313 = vrot.lane.b32.xlu0 %v1308, 32
          %v1314 = vpop.permute.xlu0 %1313
          %v1317 = vmul.f32 %v1271, %v1312
          %v1318 = vmul.f32 %v1273, %v1314
          %s1319 = sadd.s32 %s351, 5
          %v1320 = vstv %s1319
          %vm1321 = vcmp.lt.s32.totalorder %v1320, %v500
          %v1322 = vsel %vm1321, 1, 0
          %1323 = vset.pattern.permute.xlu0 0
          %1324 = vperm.xlu0 %1323, %v1322
          %v1325 = vpop.permute.xlu0 %1324
          %vm1326 = vcmp.eq.s32.totalorder %v1325, 1
          %v1329 = vrot.slane %v1317, 5
          %v1330 = vrot.slane %v1318, 4
          %v1331 = vsel %vm634, %v1330, %v1329
          %1332 = vrot.lane.b32.xlu0 %v1331, 64
          %v1333 = vpop.permute.xlu0 %1332
          %v1335 = vsel %vm1326, %v1333, %v1194
          %v1338 = vrot.slane %v1305, 5
          %v1339 = vrot.slane %v1306, 4
          %v1340 = vsel %vm634, %v1339, %v1338
          %1341 = vrot.lane.b32.xlu0 %v1340, 96
          %v1342 = vpop.permute.xlu0 %1341
          %v1344 = vsel %vm1326, %v1342, %v1203
          %v1345 = vsel %vm1326, %v1333, 0.0
          %v1346 = vadd.f32 %v1205, %v1345
          %p1347 = scmp.lt.s32.totalorder %s1319, %s350
          %s1348 = scalar_select %p1347, 0.0, -inf
          %v1349 = vstv %s1348
          %v1350 = vsel %vm1326, %v1333, %v1349
          %v1351 = vmax.f32 %v1210, %v1350
          %v1352 = vpack.c.bf16 %v1335, %v1335
          %v1354 = vsel %vm518, %v1352, 0
          %1356 = vmatprep.subr.bf16.mxu0 0
          %1357 = vmatpush1.bf16.msra.mxu0 %v514
          %1358 = vmatprep.subr.bf16.mxu0 0
          %1359 = vmatpush1.bf16.msra.mxu0 %v515
          %1360 = vmatprep.subr.bf16.mxu0 0
          %1361 = vmatpush1.bf16.msra.mxu0 0
          %1362 = vmatprep.subr.bf16.mxu0 0
          %1363 = vmatpush1.bf16.msra.mxu0 0
          %1364 = vmatprep.subr.bf16.mxu0 0
          %1365 = vmatpush1.bf16.msra.mxu0 0
          %1366 = vmatprep.subr.bf16.mxu0 0
          %1367 = vmatpush1.bf16.msra.mxu0 0
          %1368 = vmatprep.subr.bf16.mxu0 0
          %1369 = vmatpush1.bf16.msra.mxu0 0
          %1370 = vmatprep.subr.bf16.mxu0 0
          %1371 = vmatpush1.bf16.msra.mxu0 0
          %1372 = vmatprep.subr.bf16.mxu0 0
          %1373 = vmatpush1.bf16.msra.mxu0 0
          %1374 = vmatprep.subr.bf16.mxu0 0
          %1375 = vmatpush1.bf16.msra.mxu0 0
          %1376 = vmatprep.subr.bf16.mxu0 0
          %1377 = vmatpush1.bf16.msra.mxu0 0
          %1378 = vmatprep.subr.bf16.mxu0 0
          %1379 = vmatpush1.bf16.msra.mxu0 0
          %1380 = vmatprep.subr.bf16.mxu0 0
          %1381 = vmatpush1.bf16.msra.mxu0 0
          %1382 = vmatprep.subr.bf16.mxu0 0
          %1383 = vmatpush1.bf16.msra.mxu0 0
          %1384 = vmatprep.subr.bf16.mxu0 0
          %1385 = vmatpush1.bf16.msra.mxu0 0
          %1386 = vmatprep.subr.bf16.mxu0 0
          %1387 = vmatpush1.bf16.msra.mxu0 0
          %1388 = vmatprep.mubr.bf16.mxu0 0
          %1389 = vmatmul.mubr.bf16.gmra.mrb[0].mxu0 %v1354
          %v1390 = vpop.f32.mrb[0].mxu0
          %v1391 = vadd.f32 0.0, %v1390
          %v1392 = vpop.f32.mrb[0].mxu0
          %v1393 = vpop.f32.mrb[0].mxu0
          %v1394 = vpop.f32.mrb[0].mxu0
          %1395 = vdwg.mxu0
          %v1397 = vrot.slane %v1391, 2
          %v1398 = vrot.slane %v1391, 3
          %v1401 = vadd.f32 %v492, %v1397
          %v1402 = vadd.f32 %v494, %v1398
          %v1403 = vxor.u32 %v1401, 2147483648
          %v1404 = vxor.u32 %v1402, 2147483648
          %v1405 = vmul.f32 %v1403, 1.442695
          %v1406 = vpow.pop %v1405
          %v1407 = vmul.f32 %v1404, 1.442695
          %v1408 = vpow.pop %v1407
          %v1409 = vadd.f32 %v1406, 1.0
          %v1410 = vadd.f32 %v1408, 1.0
          %v1411 = vrcp.pop %v1409
          %v1412 = vmul.f32 1.0, %v1411
          %v1413 = vrcp.pop %v1410
          %v1414 = vmul.f32 1.0, %v1413
          %v1415 = vtanh.pop %v1401
          %v1416 = vtanh.pop %v1402
          %v1418 = vrot.slane %v1344, 2
          %v1419 = vrot.slane %v1344, 3
          %1420 = vrot.lane.b32.xlu0 %v1418, 32
          %v1421 = vpop.permute.xlu0 %1420
          %1422 = vrot.lane.b32.xlu0 %v1419, 32
          %v1423 = vpop.permute.xlu0 %1422
          %v1426 = vmul.f32 %v1412, %v1421
          %v1427 = vmul.f32 %v1414, %v1423
          %1430 = vrot.lane.b32.xlu0 %v1415, 32
          %v1431 = vpop.permute.xlu0 %1430
          %1432 = vrot.lane.b32.xlu0 %v1416, 32
          %v1433 = vpop.permute.xlu0 %1432
          %v1436 = vmul.f32 %v1412, %v1431
          %v1437 = vmul.f32 %v1414, %v1433
          %1440 = vrot.lane.b32.xlu0 %v1436, 32
          %v1441 = vpop.permute.xlu0 %1440
          %1442 = vrot.lane.b32.xlu0 %v1437, 32
          %v1443 = vpop.permute.xlu0 %1442
          %v1446 = vadd.f32 %v1426, %v1441
          %v1447 = vadd.f32 %v1427, %v1443
          %v1448 = vtanh.pop %v1446
          %v1449 = vtanh.pop %v1447
          %1452 = vrot.lane.b32.xlu0 %v1448, 32
          %v1453 = vpop.permute.xlu0 %1452
          %1454 = vrot.lane.b32.xlu0 %v1449, 32
          %v1455 = vpop.permute.xlu0 %1454
          %v1458 = vmul.f32 %v1412, %v1453
          %v1459 = vmul.f32 %v1414, %v1455
          %s1460 = sadd.s32 %s351, 6
          %v1461 = vstv %s1460
          %vm1462 = vcmp.lt.s32.totalorder %v1461, %v500
          %v1463 = vsel %vm1462, 1, 0
          %1464 = vset.pattern.permute.xlu0 0
          %1465 = vperm.xlu0 %1464, %v1463
          %v1466 = vpop.permute.xlu0 %1465
          %vm1467 = vcmp.eq.s32.totalorder %v1466, 1
          %v1470 = vrot.slane %v1458, 6
          %v1471 = vrot.slane %v1459, 5
          %v1472 = vsel %vm634, %v1471, %v1470
          %1473 = vrot.lane.b32.xlu0 %v1472, 64
          %v1474 = vpop.permute.xlu0 %1473
          %v1476 = vsel %vm1467, %v1474, %v1335
          %v1479 = vrot.slane %v1446, 6
          %v1480 = vrot.slane %v1447, 5
          %v1481 = vsel %vm634, %v1480, %v1479
          %1482 = vrot.lane.b32.xlu0 %v1481, 96
          %v1483 = vpop.permute.xlu0 %1482
          %v1485 = vsel %vm1467, %v1483, %v1344
          %v1486 = vsel %vm1467, %v1474, 0.0
          %v1487 = vadd.f32 %v1346, %v1486
          %p1488 = scmp.lt.s32.totalorder %s1460, %s350
          %s1489 = scalar_select %p1488, 0.0, -inf
          %v1490 = vstv %s1489
          %v1491 = vsel %vm1467, %v1474, %v1490
          %v1492 = vmax.f32 %v1351, %v1491
          %v1493 = vpack.c.bf16 %v1476, %v1476
          %v1495 = vsel %vm518, %v1493, 0
          %1497 = vmatprep.subr.bf16.mxu0 0
          %1498 = vmatpush1.bf16.msra.mxu0 %v514
          %1499 = vmatprep.subr.bf16.mxu0 0
          %1500 = vmatpush1.bf16.msra.mxu0 %v515
          %1501 = vmatprep.subr.bf16.mxu0 0
          %1502 = vmatpush1.bf16.msra.mxu0 0
          %1503 = vmatprep.subr.bf16.mxu0 0
          %1504 = vmatpush1.bf16.msra.mxu0 0
          %1505 = vmatprep.subr.bf16.mxu0 0
          %1506 = vmatpush1.bf16.msra.mxu0 0
          %1507 = vmatprep.subr.bf16.mxu0 0
          %1508 = vmatpush1.bf16.msra.mxu0 0
          %1509 = vmatprep.subr.bf16.mxu0 0
          %1510 = vmatpush1.bf16.msra.mxu0 0
          %1511 = vmatprep.subr.bf16.mxu0 0
          %1512 = vmatpush1.bf16.msra.mxu0 0
          %1513 = vmatprep.subr.bf16.mxu0 0
          %1514 = vmatpush1.bf16.msra.mxu0 0
          %1515 = vmatprep.subr.bf16.mxu0 0
          %1516 = vmatpush1.bf16.msra.mxu0 0
          %1517 = vmatprep.subr.bf16.mxu0 0
          %1518 = vmatpush1.bf16.msra.mxu0 0
          %1519 = vmatprep.subr.bf16.mxu0 0
          %1520 = vmatpush1.bf16.msra.mxu0 0
          %1521 = vmatprep.subr.bf16.mxu0 0
          %1522 = vmatpush1.bf16.msra.mxu0 0
          %1523 = vmatprep.subr.bf16.mxu0 0
          %1524 = vmatpush1.bf16.msra.mxu0 0
          %1525 = vmatprep.subr.bf16.mxu0 0
          %1526 = vmatpush1.bf16.msra.mxu0 0
          %1527 = vmatprep.subr.bf16.mxu0 0
          %1528 = vmatpush1.bf16.msra.mxu0 0
          %1529 = vmatprep.mubr.bf16.mxu0 0
          %1530 = vmatmul.mubr.bf16.gmra.mrb[0].mxu0 %v1495
          %v1531 = vpop.f32.mrb[0].mxu0
          %v1532 = vadd.f32 0.0, %v1531
          %v1533 = vpop.f32.mrb[0].mxu0
          %v1534 = vpop.f32.mrb[0].mxu0
          %v1535 = vpop.f32.mrb[0].mxu0
          %1536 = vdwg.mxu0
          %v1538 = vrot.slane %v1532, 1
          %v1539 = vrot.slane %v1532, 2
          %v1542 = vadd.f32 %v492, %v1538
          %v1543 = vadd.f32 %v494, %v1539
          %v1544 = vxor.u32 %v1542, 2147483648
          %v1545 = vxor.u32 %v1543, 2147483648
          %v1546 = vmul.f32 %v1544, 1.442695
          %v1547 = vpow.pop %v1546
          %v1548 = vmul.f32 %v1545, 1.442695
          %v1549 = vpow.pop %v1548
          %v1550 = vadd.f32 %v1547, 1.0
          %v1551 = vadd.f32 %v1549, 1.0
          %v1552 = vrcp.pop %v1550
          %v1553 = vmul.f32 1.0, %v1552
          %v1554 = vrcp.pop %v1551
          %v1555 = vmul.f32 1.0, %v1554
          %v1556 = vtanh.pop %v1542
          %v1557 = vtanh.pop %v1543
          %v1559 = vrot.slane %v1485, 1
          %v1560 = vrot.slane %v1485, 2
          %1561 = vrot.lane.b32.xlu0 %v1559, 32
          %v1562 = vpop.permute.xlu0 %1561
          %1563 = vrot.lane.b32.xlu0 %v1560, 32
          %v1564 = vpop.permute.xlu0 %1563
          %v1567 = vmul.f32 %v1553, %v1562
          %v1568 = vmul.f32 %v1555, %v1564
          %1571 = vrot.lane.b32.xlu0 %v1556, 32
          %v1572 = vpop.permute.xlu0 %1571
          %1573 = vrot.lane.b32.xlu0 %v1557, 32
          %v1574 = vpop.permute.xlu0 %1573
          %v1577 = vmul.f32 %v1553, %v1572
          %v1578 = vmul.f32 %v1555, %v1574
          %1581 = vrot.lane.b32.xlu0 %v1577, 32
          %v1582 = vpop.permute.xlu0 %1581
          %1583 = vrot.lane.b32.xlu0 %v1578, 32
          %v1584 = vpop.permute.xlu0 %1583
          %v1587 = vadd.f32 %v1567, %v1582
          %v1588 = vadd.f32 %v1568, %v1584
          %v1589 = vtanh.pop %v1587
          %v1590 = vtanh.pop %v1588
          %1593 = vrot.lane.b32.xlu0 %v1589, 32
          %v1594 = vpop.permute.xlu0 %1593
          %1595 = vrot.lane.b32.xlu0 %v1590, 32
          %v1596 = vpop.permute.xlu0 %1595
          %v1599 = vmul.f32 %v1553, %v1594
          %v1600 = vmul.f32 %v1555, %v1596
          %s1601 = sadd.s32 %s351, 7
          %v1602 = vstv %s1601
          %vm1603 = vcmp.lt.s32.totalorder %v1602, %v500
          %v1604 = vsel %vm1603, 1, 0
          %1605 = vset.pattern.permute.xlu0 0
          %1606 = vperm.xlu0 %1605, %v1604
          %v1607 = vpop.permute.xlu0 %1606
          %vm1608 = vcmp.eq.s32.totalorder %v1607, 1
          %v1611 = vrot.slane %v1599, 7
          %v1612 = vrot.slane %v1600, 6
          %v1613 = vsel %vm634, %v1612, %v1611
          %1614 = vrot.lane.b32.xlu0 %v1613, 64
          %v1615 = vpop.permute.xlu0 %1614
          %v1617 = vsel %vm1608, %v1615, %v1476
          %v1620 = vrot.slane %v1587, 7
          %v1621 = vrot.slane %v1588, 6
          %v1622 = vsel %vm634, %v1621, %v1620
          %1623 = vrot.lane.b32.xlu0 %v1622, 96
          %v1624 = vpop.permute.xlu0 %1623
          %v1626 = vsel %vm1608, %v1624, %v1485
          %v1627 = vsel %vm1608, %v1615, 0.0
          %v1628 = vadd.f32 %v1487, %v1627
          %p1629 = scmp.lt.s32.totalorder %s1601, %s350
          %s1630 = scalar_select %p1629, 0.0, -inf
          %v1631 = vstv %s1630
          %v1632 = vsel %vm1608, %v1615, %v1631
          %v1633 = vmax.f32 %v1492, %v1632
          %v1634 = vpack.c.bf16 %v1617, %v1617
          %v1636 = vsel %vm518, %v1634, 0
          %1638 = vmatprep.subr.bf16.mxu0 0
          %1639 = vmatpush1.bf16.msra.mxu0 %v514
          %1640 = vmatprep.subr.bf16.mxu0 0
          %1641 = vmatpush1.bf16.msra.mxu0 %v515
          %1642 = vmatprep.subr.bf16.mxu0 0
          %1643 = vmatpush1.bf16.msra.mxu0 0
          %1644 = vmatprep.subr.bf16.mxu0 0
          %1645 = vmatpush1.bf16.msra.mxu0 0
          %1646 = vmatprep.subr.bf16.mxu0 0
          %1647 = vmatpush1.bf16.msra.mxu0 0
          %1648 = vmatprep.subr.bf16.mxu0 0
          %1649 = vmatpush1.bf16.msra.mxu0 0
          %1650 = vmatprep.subr.bf16.mxu0 0
          %1651 = vmatpush1.bf16.msra.mxu0 0
          %1652 = vmatprep.subr.bf16.mxu0 0
          %1653 = vmatpush1.bf16.msra.mxu0 0
          %1654 = vmatprep.subr.bf16.mxu0 0
          %1655 = vmatpush1.bf16.msra.mxu0 0
          %1656 = vmatprep.subr.bf16.mxu0 0
          %1657 = vmatpush1.bf16.msra.mxu0 0
          %1658 = vmatprep.subr.bf16.mxu0 0
          %1659 = vmatpush1.bf16.msra.mxu0 0
          %1660 = vmatprep.subr.bf16.mxu0 0
          %1661 = vmatpush1.bf16.msra.mxu0 0
          %1662 = vmatprep.subr.bf16.mxu0 0
          %1663 = vmatpush1.bf16.msra.mxu0 0
          %1664 = vmatprep.subr.bf16.mxu0 0
          %1665 = vmatpush1.bf16.msra.mxu0 0
          %1666 = vmatprep.subr.bf16.mxu0 0
          %1667 = vmatpush1.bf16.msra.mxu0 0
          %1668 = vmatprep.subr.bf16.mxu0 0
          %1669 = vmatpush1.bf16.msra.mxu0 0
          %1670 = vmatprep.mubr.bf16.mxu0 0
          %1671 = vmatmul.mubr.bf16.gmra.mrb[0].mxu0 %v1636
          %v1672 = vpop.f32.mrb[0].mxu0
          %v1673 = vadd.f32 0.0, %v1672
          %v1674 = vpop.f32.mrb[0].mxu0
          %v1675 = vpop.f32.mrb[0].mxu0
          %v1676 = vpop.f32.mrb[0].mxu0
          %1677 = vdwg.mxu0
          %v1679 = vrot.slane %v1673, 1
          %v1682 = vadd.f32 %v493, %v1673
          %v1683 = vadd.f32 %v495, %v1679
          %v1684 = vxor.u32 %v1682, 2147483648
          %v1685 = vxor.u32 %v1683, 2147483648
          %v1686 = vmul.f32 %v1684, 1.442695
          %v1687 = vpow.pop %v1686
          %v1688 = vmul.f32 %v1685, 1.442695
          %v1689 = vpow.pop %v1688
          %v1690 = vadd.f32 %v1687, 1.0
          %v1691 = vadd.f32 %v1689, 1.0
          %v1692 = vrcp.pop %v1690
          %v1693 = vmul.f32 1.0, %v1692
          %v1694 = vrcp.pop %v1691
          %v1695 = vmul.f32 1.0, %v1694
          %v1696 = vtanh.pop %v1682
          %v1697 = vtanh.pop %v1683
          %v1699 = vrot.slane %v1626, 1
          %1700 = vrot.lane.b32.xlu0 %v1626, 32
          %v1701 = vpop.permute.xlu0 %1700
          %1702 = vrot.lane.b32.xlu0 %v1699, 32
          %v1703 = vpop.permute.xlu0 %1702
          %v1706 = vmul.f32 %v1693, %v1701
          %v1707 = vmul.f32 %v1695, %v1703
          %1710 = vrot.lane.b32.xlu0 %v1696, 32
          %v1711 = vpop.permute.xlu0 %1710
          %1712 = vrot.lane.b32.xlu0 %v1697, 32
          %v1713 = vpop.permute.xlu0 %1712
          %v1716 = vmul.f32 %v1693, %v1711
          %v1717 = vmul.f32 %v1695, %v1713
          %1720 = vrot.lane.b32.xlu0 %v1716, 32
          %v1721 = vpop.permute.xlu0 %1720
          %1722 = vrot.lane.b32.xlu0 %v1717, 32
          %v1723 = vpop.permute.xlu0 %1722
          %v1726 = vadd.f32 %v1706, %v1721
          %v1727 = vadd.f32 %v1707, %v1723
          %v1728 = vtanh.pop %v1726
          %v1729 = vtanh.pop %v1727
          %1732 = vrot.lane.b32.xlu0 %v1728, 32
          %v1733 = vpop.permute.xlu0 %1732
          %1734 = vrot.lane.b32.xlu0 %v1729, 32
          %v1735 = vpop.permute.xlu0 %1734
          %v1738 = vmul.f32 %v1693, %v1733
          %v1739 = vmul.f32 %v1695, %v1735
          %s1740 = sadd.s32 %s351, 8
          %v1741 = vstv %s1740
          %vm1742 = vcmp.lt.s32.totalorder %v1741, %v500
          %v1743 = vsel %vm1742, 1, 0
          %1744 = vset.pattern.permute.xlu0 0
          %1745 = vperm.xlu0 %1744, %v1743
          %v1746 = vpop.permute.xlu0 %1745
          %vm1747 = vcmp.eq.s32.totalorder %v1746, 1
          %v1750 = vrot.slane %v1739, 7
          %v1751 = vsel %vm634, %v1750, %v1738
          %1752 = vrot.lane.b32.xlu0 %v1751, 64
          %v1753 = vpop.permute.xlu0 %1752
          %v1755 = vsel %vm1747, %v1753, %v1617
          %v1758 = vrot.slane %v1727, 7
          %v1759 = vsel %vm634, %v1758, %v1726
          %1760 = vrot.lane.b32.xlu0 %v1759, 96
          %v1761 = vpop.permute.xlu0 %1760
          %v1763 = vsel %vm1747, %v1761, %v1626
          %v1764 = vsel %vm1747, %v1753, 0.0
          %v1765 = vadd.f32 %v1628, %v1764
          %p1766 = scmp.lt.s32.totalorder %s1740, %s350
          %s1767 = scalar_select %p1766, 0.0, -inf
          %v1768 = vstv %s1767
          %v1769 = vsel %vm1747, %v1753, %v1768
          %v1770 = vmax.f32 %v1633, %v1769
          %v1771 = vpack.c.bf16 %v1755, %v1755
          %v1773 = vsel %vm518, %v1771, 0
          %1775 = vmatprep.subr.bf16.mxu0 0
          %1776 = vmatpush1.bf16.msra.mxu0 %v514
          %1777 = vmatprep.subr.bf16.mxu0 0
          %1778 = vmatpush1.bf16.msra.mxu0 %v515
          %1779 = vmatprep.subr.bf16.mxu0 0
          %1780 = vmatpush1.bf16.msra.mxu0 0
          %1781 = vmatprep.subr.bf16.mxu0 0
          %1782 = vmatpush1.bf16.msra.mxu0 0
          %1783 = vmatprep.subr.bf16.mxu0 0
          %1784 = vmatpush1.bf16.msra.mxu0 0
          %1785 = vmatprep.subr.bf16.mxu0 0
          %1786 = vmatpush1.bf16.msra.mxu0 0
          %1787 = vmatprep.subr.bf16.mxu0 0
          %1788 = vmatpush1.bf16.msra.mxu0 0
          %1789 = vmatprep.subr.bf16.mxu0 0
          %1790 = vmatpush1.bf16.msra.mxu0 0
          %1791 = vmatprep.subr.bf16.mxu0 0
          %1792 = vmatpush1.bf16.msra.mxu0 0
          %1793 = vmatprep.subr.bf16.mxu0 0
          %1794 = vmatpush1.bf16.msra.mxu0 0
          %1795 = vmatprep.subr.bf16.mxu0 0
          %1796 = vmatpush1.bf16.msra.mxu0 0
          %1797 = vmatprep.subr.bf16.mxu0 0
          %1798 = vmatpush1.bf16.msra.mxu0 0
          %1799 = vmatprep.subr.bf16.mxu0 0
          %1800 = vmatpush1.bf16.msra.mxu0 0
          %1801 = vmatprep.subr.bf16.mxu0 0
          %1802 = vmatpush1.bf16.msra.mxu0 0
          %1803 = vmatprep.subr.bf16.mxu0 0
          %1804 = vmatpush1.bf16.msra.mxu0 0
          %1805 = vmatprep.subr.bf16.mxu0 0
          %1806 = vmatpush1.bf16.msra.mxu0 0
          %1807 = vmatprep.mubr.bf16.mxu0 0
          %1808 = vmatmul.mubr.bf16.gmra.mrb[0].mxu0 %v1773
          %v1809 = vpop.f32.mrb[0].mxu0
          %v1810 = vadd.f32 0.0, %v1809
          %v1811 = vpop.f32.mrb[0].mxu0
          %v1812 = vpop.f32.mrb[0].mxu0
          %v1813 = vpop.f32.mrb[0].mxu0
          %1814 = vdwg.mxu0
          %v1816 = vrot.slane %v1810, 7
          %v1819 = vadd.f32 %v493, %v1816
          %v1820 = vadd.f32 %v495, %v1810
          %v1821 = vxor.u32 %v1819, 2147483648
          %v1822 = vxor.u32 %v1820, 2147483648
          %v1823 = vmul.f32 %v1821, 1.442695
          %v1824 = vpow.pop %v1823
          %v1825 = vmul.f32 %v1822, 1.442695
          %v1826 = vpow.pop %v1825
          %v1827 = vadd.f32 %v1824, 1.0
          %v1828 = vadd.f32 %v1826, 1.0
          %v1829 = vrcp.pop %v1827
          %v1830 = vmul.f32 1.0, %v1829
          %v1831 = vrcp.pop %v1828
          %v1832 = vmul.f32 1.0, %v1831
          %v1833 = vtanh.pop %v1819
          %v1834 = vtanh.pop %v1820
          %v1836 = vrot.slane %v1763, 7
          %1837 = vrot.lane.b32.xlu0 %v1836, 32
          %v1838 = vpop.permute.xlu0 %1837
          %1839 = vrot.lane.b32.xlu0 %v1763, 32
          %v1840 = vpop.permute.xlu0 %1839
          %v1843 = vmul.f32 %v1830, %v1838
          %v1844 = vmul.f32 %v1832, %v1840
          %1847 = vrot.lane.b32.xlu0 %v1833, 32
          %v1848 = vpop.permute.xlu0 %1847
          %1849 = vrot.lane.b32.xlu0 %v1834, 32
          %v1850 = vpop.permute.xlu0 %1849
          %v1853 = vmul.f32 %v1830, %v1848
          %v1854 = vmul.f32 %v1832, %v1850
          %1857 = vrot.lane.b32.xlu0 %v1853, 32
          %v1858 = vpop.permute.xlu0 %1857
          %1859 = vrot.lane.b32.xlu0 %v1854, 32
          %v1860 = vpop.permute.xlu0 %1859
          %v1863 = vadd.f32 %v1843, %v1858
          %v1864 = vadd.f32 %v1844, %v1860
          %v1865 = vtanh.pop %v1863
          %v1866 = vtanh.pop %v1864
          %1869 = vrot.lane.b32.xlu0 %v1865, 32
          %v1870 = vpop.permute.xlu0 %1869
          %1871 = vrot.lane.b32.xlu0 %v1866, 32
          %v1872 = vpop.permute.xlu0 %1871
          %v1875 = vmul.f32 %v1830, %v1870
          %v1876 = vmul.f32 %v1832, %v1872
          %s1877 = sadd.s32 %s351, 9
          %v1878 = vstv %s1877
          %vm1879 = vcmp.lt.s32.totalorder %v1878, %v500
          %v1880 = vsel %vm1879, 1, 0
          %1881 = vset.pattern.permute.xlu0 0
          %1882 = vperm.xlu0 %1881, %v1880
          %v1883 = vpop.permute.xlu0 %1882
          %vm1884 = vcmp.eq.s32.totalorder %v1883, 1
          %v1887 = vrot.slane %v1875, 1
          %v1888 = vsel %vm634, %v1876, %v1887
          %1889 = vrot.lane.b32.xlu0 %v1888, 64
          %v1890 = vpop.permute.xlu0 %1889
          %v1892 = vsel %vm1884, %v1890, %v1755
          %v1895 = vrot.slane %v1863, 1
          %v1896 = vsel %vm634, %v1864, %v1895
          %1897 = vrot.lane.b32.xlu0 %v1896, 96
          %v1898 = vpop.permute.xlu0 %1897
          %v1900 = vsel %vm1884, %v1898, %v1763
          %v1901 = vsel %vm1884, %v1890, 0.0
          %v1902 = vadd.f32 %v1765, %v1901
          %p1903 = scmp.lt.s32.totalorder %s1877, %s350
          %s1904 = scalar_select %p1903, 0.0, -inf
          %v1905 = vstv %s1904
          %v1906 = vsel %vm1884, %v1890, %v1905
          %v1907 = vmax.f32 %v1770, %v1906
          %v1908 = vpack.c.bf16 %v1892, %v1892
          %v1910 = vsel %vm518, %v1908, 0
          %1912 = vmatprep.subr.bf16.mxu0 0
          %1913 = vmatpush1.bf16.msra.mxu0 %v514
          %1914 = vmatprep.subr.bf16.mxu0 0
          %1915 = vmatpush1.bf16.msra.mxu0 %v515
          %1916 = vmatprep.subr.bf16.mxu0 0
          %1917 = vmatpush1.bf16.msra.mxu0 0
          %1918 = vmatprep.subr.bf16.mxu0 0
          %1919 = vmatpush1.bf16.msra.mxu0 0
          %1920 = vmatprep.subr.bf16.mxu0 0
          %1921 = vmatpush1.bf16.msra.mxu0 0
          %1922 = vmatprep.subr.bf16.mxu0 0
          %1923 = vmatpush1.bf16.msra.mxu0 0
          %1924 = vmatprep.subr.bf16.mxu0 0
          %1925 = vmatpush1.bf16.msra.mxu0 0
          %1926 = vmatprep.subr.bf16.mxu0 0
          %1927 = vmatpush1.bf16.msra.mxu0 0
          %1928 = vmatprep.subr.bf16.mxu0 0
          %1929 = vmatpush1.bf16.msra.mxu0 0
          %1930 = vmatprep.subr.bf16.mxu0 0
          %1931 = vmatpush1.bf16.msra.mxu0 0
          %1932 = vmatprep.subr.bf16.mxu0 0
          %1933 = vmatpush1.bf16.msra.mxu0 0
          %1934 = vmatprep.subr.bf16.mxu0 0
          %1935 = vmatpush1.bf16.msra.mxu0 0
          %1936 = vmatprep.subr.bf16.mxu0 0
          %1937 = vmatpush1.bf16.msra.mxu0 0
          %1938 = vmatprep.subr.bf16.mxu0 0
          %1939 = vmatpush1.bf16.msra.mxu0 0
          %1940 = vmatprep.subr.bf16.mxu0 0
          %1941 = vmatpush1.bf16.msra.mxu0 0
          %1942 = vmatprep.subr.bf16.mxu0 0
          %1943 = vmatpush1.bf16.msra.mxu0 0
          %1944 = vmatprep.mubr.bf16.mxu0 0
          %1945 = vmatmul.mubr.bf16.gmra.mrb[0].mxu0 %v1910
          %v1946 = vpop.f32.mrb[0].mxu0
          %v1947 = vadd.f32 0.0, %v1946
          %v1948 = vpop.f32.mrb[0].mxu0
          %v1949 = vpop.f32.mrb[0].mxu0
          %v1950 = vpop.f32.mrb[0].mxu0
          %1951 = vdwg.mxu0
          %v1953 = vrot.slane %v1947, 6
          %v1954 = vrot.slane %v1947, 7
          %v1957 = vadd.f32 %v493, %v1953
          %v1958 = vadd.f32 %v495, %v1954
          %v1959 = vxor.u32 %v1957, 2147483648
          %v1960 = vxor.u32 %v1958, 2147483648
          %v1961 = vmul.f32 %v1959, 1.442695
          %v1962 = vpow.pop %v1961
          %v1963 = vmul.f32 %v1960, 1.442695
          %v1964 = vpow.pop %v1963
          %v1965 = vadd.f32 %v1962, 1.0
          %v1966 = vadd.f32 %v1964, 1.0
          %v1967 = vrcp.pop %v1965
          %v1968 = vmul.f32 1.0, %v1967
          %v1969 = vrcp.pop %v1966
          %v1970 = vmul.f32 1.0, %v1969
          %v1971 = vtanh.pop %v1957
          %v1972 = vtanh.pop %v1958
          %v1974 = vrot.slane %v1900, 6
          %v1975 = vrot.slane %v1900, 7
          %1976 = vrot.lane.b32.xlu0 %v1974, 32
          %v1977 = vpop.permute.xlu0 %1976
          %1978 = vrot.lane.b32.xlu0 %v1975, 32
          %v1979 = vpop.permute.xlu0 %1978
          %v1982 = vmul.f32 %v1968, %v1977
          %v1983 = vmul.f32 %v1970, %v1979
          %1986 = vrot.lane.b32.xlu0 %v1971, 32
          %v1987 = vpop.permute.xlu0 %1986
          %1988 = vrot.lane.b32.xlu0 %v1972, 32
          %v1989 = vpop.permute.xlu0 %1988
          %v1992 = vmul.f32 %v1968, %v1987
          %v1993 = vmul.f32 %v1970, %v1989
          %1996 = vrot.lane.b32.xlu0 %v1992, 32
          %v1997 = vpop.permute.xlu0 %1996
          %1998 = vrot.lane.b32.xlu0 %v1993, 32
          %v1999 = vpop.permute.xlu0 %1998
          %v2002 = vadd.f32 %v1982, %v1997
          %v2003 = vadd.f32 %v1983, %v1999
          %v2004 = vtanh.pop %v2002
          %v2005 = vtanh.pop %v2003
          %2008 = vrot.lane.b32.xlu0 %v2004, 32
          %v2009 = vpop.permute.xlu0 %2008
          %2010 = vrot.lane.b32.xlu0 %v2005, 32
          %v2011 = vpop.permute.xlu0 %2010
          %v2014 = vmul.f32 %v1968, %v2009
          %v2015 = vmul.f32 %v1970, %v2011
          %s2016 = sadd.s32 %s351, 10
          %v2017 = vstv %s2016
          %vm2018 = vcmp.lt.s32.totalorder %v2017, %v500
          %v2019 = vsel %vm2018, 1, 0
          %2020 = vset.pattern.permute.xlu0 0
          %2021 = vperm.xlu0 %2020, %v2019
          %v2022 = vpop.permute.xlu0 %2021
          %vm2023 = vcmp.eq.s32.totalorder %v2022, 1
          %v2026 = vrot.slane %v2014, 2
          %v2027 = vrot.slane %v2015, 1
          %v2028 = vsel %vm634, %v2027, %v2026
          %2029 = vrot.lane.b32.xlu0 %v2028, 64
          %v2030 = vpop.permute.xlu0 %2029
          %v2032 = vsel %vm2023, %v2030, %v1892
          %v2035 = vrot.slane %v2002, 2
          %v2036 = vrot.slane %v2003, 1
          %v2037 = vsel %vm634, %v2036, %v2035
          %2038 = vrot.lane.b32.xlu0 %v2037, 96
          %v2039 = vpop.permute.xlu0 %2038
          %v2041 = vsel %vm2023, %v2039, %v1900
          %v2042 = vsel %vm2023, %v2030, 0.0
          %v2043 = vadd.f32 %v1902, %v2042
          %p2044 = scmp.lt.s32.totalorder %s2016, %s350
          %s2045 = scalar_select %p2044, 0.0, -inf
          %v2046 = vstv %s2045
          %v2047 = vsel %vm2023, %v2030, %v2046
          %v2048 = vmax.f32 %v1907, %v2047
          %v2049 = vpack.c.bf16 %v2032, %v2032
          %v2051 = vsel %vm518, %v2049, 0
          %2053 = vmatprep.subr.bf16.mxu0 0
          %2054 = vmatpush1.bf16.msra.mxu0 %v514
          %2055 = vmatprep.subr.bf16.mxu0 0
          %2056 = vmatpush1.bf16.msra.mxu0 %v515
          %2057 = vmatprep.subr.bf16.mxu0 0
          %2058 = vmatpush1.bf16.msra.mxu0 0
          %2059 = vmatprep.subr.bf16.mxu0 0
          %2060 = vmatpush1.bf16.msra.mxu0 0
          %2061 = vmatprep.subr.bf16.mxu0 0
          %2062 = vmatpush1.bf16.msra.mxu0 0
          %2063 = vmatprep.subr.bf16.mxu0 0
          %2064 = vmatpush1.bf16.msra.mxu0 0
          %2065 = vmatprep.subr.bf16.mxu0 0
          %2066 = vmatpush1.bf16.msra.mxu0 0
          %2067 = vmatprep.subr.bf16.mxu0 0
          %2068 = vmatpush1.bf16.msra.mxu0 0
          %2069 = vmatprep.subr.bf16.mxu0 0
          %2070 = vmatpush1.bf16.msra.mxu0 0
          %2071 = vmatprep.subr.bf16.mxu0 0
          %2072 = vmatpush1.bf16.msra.mxu0 0
          %2073 = vmatprep.subr.bf16.mxu0 0
          %2074 = vmatpush1.bf16.msra.mxu0 0
          %2075 = vmatprep.subr.bf16.mxu0 0
          %2076 = vmatpush1.bf16.msra.mxu0 0
          %2077 = vmatprep.subr.bf16.mxu0 0
          %2078 = vmatpush1.bf16.msra.mxu0 0
          %2079 = vmatprep.subr.bf16.mxu0 0
          %2080 = vmatpush1.bf16.msra.mxu0 0
          %2081 = vmatprep.subr.bf16.mxu0 0
          %2082 = vmatpush1.bf16.msra.mxu0 0
          %2083 = vmatprep.subr.bf16.mxu0 0
          %2084 = vmatpush1.bf16.msra.mxu0 0
          %2085 = vmatprep.mubr.bf16.mxu0 0
          %2086 = vmatmul.mubr.bf16.gmra.mrb[0].mxu0 %v2051
          %v2087 = vpop.f32.mrb[0].mxu0
          %v2088 = vadd.f32 0.0, %v2087
          %v2089 = vpop.f32.mrb[0].mxu0
          %v2090 = vpop.f32.mrb[0].mxu0
          %v2091 = vpop.f32.mrb[0].mxu0
          %2092 = vdwg.mxu0
          %v2094 = vrot.slane %v2088, 5
          %v2095 = vrot.slane %v2088, 6
          %v2098 = vadd.f32 %v493, %v2094
          %v2099 = vadd.f32 %v495, %v2095
          %v2100 = vxor.u32 %v2098, 2147483648
          %v2101 = vxor.u32 %v2099, 2147483648
          %v2102 = vmul.f32 %v2100, 1.442695
          %v2103 = vpow.pop %v2102
          %v2104 = vmul.f32 %v2101, 1.442695
          %v2105 = vpow.pop %v2104
          %v2106 = vadd.f32 %v2103, 1.0
          %v2107 = vadd.f32 %v2105, 1.0
          %v2108 = vrcp.pop %v2106
          %v2109 = vmul.f32 1.0, %v2108
          %v2110 = vrcp.pop %v2107
          %v2111 = vmul.f32 1.0, %v2110
          %v2112 = vtanh.pop %v2098
          %v2113 = vtanh.pop %v2099
          %v2115 = vrot.slane %v2041, 5
          %v2116 = vrot.slane %v2041, 6
          %2117 = vrot.lane.b32.xlu0 %v2115, 32
          %v2118 = vpop.permute.xlu0 %2117
          %2119 = vrot.lane.b32.xlu0 %v2116, 32
          %v2120 = vpop.permute.xlu0 %2119
          %v2123 = vmul.f32 %v2109, %v2118
          %v2124 = vmul.f32 %v2111, %v2120
          %2127 = vrot.lane.b32.xlu0 %v2112, 32
          %v2128 = vpop.permute.xlu0 %2127
          %2129 = vrot.lane.b32.xlu0 %v2113, 32
          %v2130 = vpop.permute.xlu0 %2129
          %v2133 = vmul.f32 %v2109, %v2128
          %v2134 = vmul.f32 %v2111, %v2130
          %2137 = vrot.lane.b32.xlu0 %v2133, 32
          %v2138 = vpop.permute.xlu0 %2137
          %2139 = vrot.lane.b32.xlu0 %v2134, 32
          %v2140 = vpop.permute.xlu0 %2139
          %v2143 = vadd.f32 %v2123, %v2138
          %v2144 = vadd.f32 %v2124, %v2140
          %v2145 = vtanh.pop %v2143
          %v2146 = vtanh.pop %v2144
          %2149 = vrot.lane.b32.xlu0 %v2145, 32
          %v2150 = vpop.permute.xlu0 %2149
          %2151 = vrot.lane.b32.xlu0 %v2146, 32
          %v2152 = vpop.permute.xlu0 %2151
          %v2155 = vmul.f32 %v2109, %v2150
          %v2156 = vmul.f32 %v2111, %v2152
          %s2157 = sadd.s32 %s351, 11
          %v2158 = vstv %s2157
          %vm2159 = vcmp.lt.s32.totalorder %v2158, %v500
          %v2160 = vsel %vm2159, 1, 0
          %2161 = vset.pattern.permute.xlu0 0
          %2162 = vperm.xlu0 %2161, %v2160
          %v2163 = vpop.permute.xlu0 %2162
          %vm2164 = vcmp.eq.s32.totalorder %v2163, 1
          %v2167 = vrot.slane %v2155, 3
          %v2168 = vrot.slane %v2156, 2
          %v2169 = vsel %vm634, %v2168, %v2167
          %2170 = vrot.lane.b32.xlu0 %v2169, 64
          %v2171 = vpop.permute.xlu0 %2170
          %v2173 = vsel %vm2164, %v2171, %v2032
          %v2176 = vrot.slane %v2143, 3
          %v2177 = vrot.slane %v2144, 2
          %v2178 = vsel %vm634, %v2177, %v2176
          %2179 = vrot.lane.b32.xlu0 %v2178, 96
          %v2180 = vpop.permute.xlu0 %2179
          %v2182 = vsel %vm2164, %v2180, %v2041
          %v2183 = vsel %vm2164, %v2171, 0.0
          %v2184 = vadd.f32 %v2043, %v2183
          %p2185 = scmp.lt.s32.totalorder %s2157, %s350
          %s2186 = scalar_select %p2185, 0.0, -inf
          %v2187 = vstv %s2186
          %v2188 = vsel %vm2164, %v2171, %v2187
          %v2189 = vmax.f32 %v2048, %v2188
          %v2190 = vpack.c.bf16 %v2173, %v2173
          %v2192 = vsel %vm518, %v2190, 0
          %2194 = vmatprep.subr.bf16.mxu0 0
          %2195 = vmatpush1.bf16.msra.mxu0 %v514
          %2196 = vmatprep.subr.bf16.mxu0 0
          %2197 = vmatpush1.bf16.msra.mxu0 %v515
          %2198 = vmatprep.subr.bf16.mxu0 0
          %2199 = vmatpush1.bf16.msra.mxu0 0
          %2200 = vmatprep.subr.bf16.mxu0 0
          %2201 = vmatpush1.bf16.msra.mxu0 0
          %2202 = vmatprep.subr.bf16.mxu0 0
          %2203 = vmatpush1.bf16.msra.mxu0 0
          %2204 = vmatprep.subr.bf16.mxu0 0
          %2205 = vmatpush1.bf16.msra.mxu0 0
          %2206 = vmatprep.subr.bf16.mxu0 0
          %2207 = vmatpush1.bf16.msra.mxu0 0
          %2208 = vmatprep.subr.bf16.mxu0 0
          %2209 = vmatpush1.bf16.msra.mxu0 0
          %2210 = vmatprep.subr.bf16.mxu0 0
          %2211 = vmatpush1.bf16.msra.mxu0 0
          %2212 = vmatprep.subr.bf16.mxu0 0
          %2213 = vmatpush1.bf16.msra.mxu0 0
          %2214 = vmatprep.subr.bf16.mxu0 0
          %2215 = vmatpush1.bf16.msra.mxu0 0
          %2216 = vmatprep.subr.bf16.mxu0 0
          %2217 = vmatpush1.bf16.msra.mxu0 0
          %2218 = vmatprep.subr.bf16.mxu0 0
          %2219 = vmatpush1.bf16.msra.mxu0 0
          %2220 = vmatprep.subr.bf16.mxu0 0
          %2221 = vmatpush1.bf16.msra.mxu0 0
          %2222 = vmatprep.subr.bf16.mxu0 0
          %2223 = vmatpush1.bf16.msra.mxu0 0
          %2224 = vmatprep.subr.bf16.mxu0 0
          %2225 = vmatpush1.bf16.msra.mxu0 0
          %2226 = vmatprep.mubr.bf16.mxu0 0
          %2227 = vmatmul.mubr.bf16.gmra.mrb[0].mxu0 %v2192
          %v2228 = vpop.f32.mrb[0].mxu0
          %v2229 = vadd.f32 0.0, %v2228
          %v2230 = vpop.f32.mrb[0].mxu0
          %v2231 = vpop.f32.mrb[0].mxu0
          %v2232 = vpop.f32.mrb[0].mxu0
          %2233 = vdwg.mxu0
          %v2235 = vrot.slane %v2229, 4
          %v2236 = vrot.slane %v2229, 5
          %v2239 = vadd.f32 %v493, %v2235
          %v2240 = vadd.f32 %v495, %v2236
          %v2241 = vxor.u32 %v2239, 2147483648
          %v2242 = vxor.u32 %v2240, 2147483648
          %v2243 = vmul.f32 %v2241, 1.442695
          %v2244 = vpow.pop %v2243
          %v2245 = vmul.f32 %v2242, 1.442695
          %v2246 = vpow.pop %v2245
          %v2247 = vadd.f32 %v2244, 1.0
          %v2248 = vadd.f32 %v2246, 1.0
          %v2249 = vrcp.pop %v2247
          %v2250 = vmul.f32 1.0, %v2249
          %v2251 = vrcp.pop %v2248
          %v2252 = vmul.f32 1.0, %v2251
          %v2253 = vtanh.pop %v2239
          %v2254 = vtanh.pop %v2240
          %v2256 = vrot.slane %v2182, 4
          %v2257 = vrot.slane %v2182, 5
          %2258 = vrot.lane.b32.xlu0 %v2256, 32
          %v2259 = vpop.permute.xlu0 %2258
          %2260 = vrot.lane.b32.xlu0 %v2257, 32
          %v2261 = vpop.permute.xlu0 %2260
          %v2264 = vmul.f32 %v2250, %v2259
          %v2265 = vmul.f32 %v2252, %v2261
          %2268 = vrot.lane.b32.xlu0 %v2253, 32
          %v2269 = vpop.permute.xlu0 %2268
          %2270 = vrot.lane.b32.xlu0 %v2254, 32
          %v2271 = vpop.permute.xlu0 %2270
          %v2274 = vmul.f32 %v2250, %v2269
          %v2275 = vmul.f32 %v2252, %v2271
          %2278 = vrot.lane.b32.xlu0 %v2274, 32
          %v2279 = vpop.permute.xlu0 %2278
          %2280 = vrot.lane.b32.xlu0 %v2275, 32
          %v2281 = vpop.permute.xlu0 %2280
          %v2284 = vadd.f32 %v2264, %v2279
          %v2285 = vadd.f32 %v2265, %v2281
          %v2286 = vtanh.pop %v2284
          %v2287 = vtanh.pop %v2285
          %2290 = vrot.lane.b32.xlu0 %v2286, 32
          %v2291 = vpop.permute.xlu0 %2290
          %2292 = vrot.lane.b32.xlu0 %v2287, 32
          %v2293 = vpop.permute.xlu0 %2292
          %v2296 = vmul.f32 %v2250, %v2291
          %v2297 = vmul.f32 %v2252, %v2293
          %s2298 = sadd.s32 %s351, 12
          %v2299 = vstv %s2298
          %vm2300 = vcmp.lt.s32.totalorder %v2299, %v500
          %v2301 = vsel %vm2300, 1, 0
          %2302 = vset.pattern.permute.xlu0 0
          %2303 = vperm.xlu0 %2302, %v2301
          %v2304 = vpop.permute.xlu0 %2303
          %vm2305 = vcmp.eq.s32.totalorder %v2304, 1
          %v2308 = vrot.slane %v2296, 4
          %v2309 = vrot.slane %v2297, 3
          %v2310 = vsel %vm634, %v2309, %v2308
          %2311 = vrot.lane.b32.xlu0 %v2310, 64
          %v2312 = vpop.permute.xlu0 %2311
          %v2314 = vsel %vm2305, %v2312, %v2173
          %v2317 = vrot.slane %v2284, 4
          %v2318 = vrot.slane %v2285, 3
          %v2319 = vsel %vm634, %v2318, %v2317
          %2320 = vrot.lane.b32.xlu0 %v2319, 96
          %v2321 = vpop.permute.xlu0 %2320
          %v2323 = vsel %vm2305, %v2321, %v2182
          %v2324 = vsel %vm2305, %v2312, 0.0
          %v2325 = vadd.f32 %v2184, %v2324
          %p2326 = scmp.lt.s32.totalorder %s2298, %s350
          %s2327 = scalar_select %p2326, 0.0, -inf
          %v2328 = vstv %s2327
          %v2329 = vsel %vm2305, %v2312, %v2328
          %v2330 = vmax.f32 %v2189, %v2329
          %v2331 = vpack.c.bf16 %v2314, %v2314
          %v2333 = vsel %vm518, %v2331, 0
          %2335 = vmatprep.subr.bf16.mxu0 0
          %2336 = vmatpush1.bf16.msra.mxu0 %v514
          %2337 = vmatprep.subr.bf16.mxu0 0
          %2338 = vmatpush1.bf16.msra.mxu0 %v515
          %2339 = vmatprep.subr.bf16.mxu0 0
          %2340 = vmatpush1.bf16.msra.mxu0 0
          %2341 = vmatprep.subr.bf16.mxu0 0
          %2342 = vmatpush1.bf16.msra.mxu0 0
          %2343 = vmatprep.subr.bf16.mxu0 0
          %2344 = vmatpush1.bf16.msra.mxu0 0
          %2345 = vmatprep.subr.bf16.mxu0 0
          %2346 = vmatpush1.bf16.msra.mxu0 0
          %2347 = vmatprep.subr.bf16.mxu0 0
          %2348 = vmatpush1.bf16.msra.mxu0 0
          %2349 = vmatprep.subr.bf16.mxu0 0
          %2350 = vmatpush1.bf16.msra.mxu0 0
          %2351 = vmatprep.subr.bf16.mxu0 0
          %2352 = vmatpush1.bf16.msra.mxu0 0
          %2353 = vmatprep.subr.bf16.mxu0 0
          %2354 = vmatpush1.bf16.msra.mxu0 0
          %2355 = vmatprep.subr.bf16.mxu0 0
          %2356 = vmatpush1.bf16.msra.mxu0 0
          %2357 = vmatprep.subr.bf16.mxu0 0
          %2358 = vmatpush1.bf16.msra.mxu0 0
          %2359 = vmatprep.subr.bf16.mxu0 0
          %2360 = vmatpush1.bf16.msra.mxu0 0
          %2361 = vmatprep.subr.bf16.mxu0 0
          %2362 = vmatpush1.bf16.msra.mxu0 0
          %2363 = vmatprep.subr.bf16.mxu0 0
          %2364 = vmatpush1.bf16.msra.mxu0 0
          %2365 = vmatprep.subr.bf16.mxu0 0
          %2366 = vmatpush1.bf16.msra.mxu0 0
          %2367 = vmatprep.mubr.bf16.mxu0 0
          %2368 = vmatmul.mubr.bf16.gmra.mrb[0].mxu0 %v2333
          %v2369 = vpop.f32.mrb[0].mxu0
          %v2370 = vadd.f32 0.0, %v2369
          %v2371 = vpop.f32.mrb[0].mxu0
          %v2372 = vpop.f32.mrb[0].mxu0
          %v2373 = vpop.f32.mrb[0].mxu0
          %2374 = vdwg.mxu0
          %v2376 = vrot.slane %v2370, 3
          %v2377 = vrot.slane %v2370, 4
          %v2380 = vadd.f32 %v493, %v2376
          %v2381 = vadd.f32 %v495, %v2377
          %v2382 = vxor.u32 %v2380, 2147483648
          %v2383 = vxor.u32 %v2381, 2147483648
          %v2384 = vmul.f32 %v2382, 1.442695
          %v2385 = vpow.pop %v2384
          %v2386 = vmul.f32 %v2383, 1.442695
          %v2387 = vpow.pop %v2386
          %v2388 = vadd.f32 %v2385, 1.0
          %v2389 = vadd.f32 %v2387, 1.0
          %v2390 = vrcp.pop %v2388
          %v2391 = vmul.f32 1.0, %v2390
          %v2392 = vrcp.pop %v2389
          %v2393 = vmul.f32 1.0, %v2392
          %v2394 = vtanh.pop %v2380
          %v2395 = vtanh.pop %v2381
          %v2397 = vrot.slane %v2323, 3
          %v2398 = vrot.slane %v2323, 4
          %2399 = vrot.lane.b32.xlu0 %v2397, 32
          %v2400 = vpop.permute.xlu0 %2399
          %2401 = vrot.lane.b32.xlu0 %v2398, 32
          %v2402 = vpop.permute.xlu0 %2401
          %v2405 = vmul.f32 %v2391, %v2400
          %v2406 = vmul.f32 %v2393, %v2402
          %2409 = vrot.lane.b32.xlu0 %v2394, 32
          %v2410 = vpop.permute.xlu0 %2409
          %2411 = vrot.lane.b32.xlu0 %v2395, 32
          %v2412 = vpop.permute.xlu0 %2411
          %v2415 = vmul.f32 %v2391, %v2410
          %v2416 = vmul.f32 %v2393, %v2412
          %2419 = vrot.lane.b32.xlu0 %v2415, 32
          %v2420 = vpop.permute.xlu0 %2419
          %2421 = vrot.lane.b32.xlu0 %v2416, 32
          %v2422 = vpop.permute.xlu0 %2421
          %v2425 = vadd.f32 %v2405, %v2420
          %v2426 = vadd.f32 %v2406, %v2422
          %v2427 = vtanh.pop %v2425
          %v2428 = vtanh.pop %v2426
          %2431 = vrot.lane.b32.xlu0 %v2427, 32
          %v2432 = vpop.permute.xlu0 %2431
          %2433 = vrot.lane.b32.xlu0 %v2428, 32
          %v2434 = vpop.permute.xlu0 %2433
          %v2437 = vmul.f32 %v2391, %v2432
          %v2438 = vmul.f32 %v2393, %v2434
          %s2439 = sadd.s32 %s351, 13
          %v2440 = vstv %s2439
          %vm2441 = vcmp.lt.s32.totalorder %v2440, %v500
          %v2442 = vsel %vm2441, 1, 0
          %2443 = vset.pattern.permute.xlu0 0
          %2444 = vperm.xlu0 %2443, %v2442
          %v2445 = vpop.permute.xlu0 %2444
          %vm2446 = vcmp.eq.s32.totalorder %v2445, 1
          %v2449 = vrot.slane %v2437, 5
          %v2450 = vrot.slane %v2438, 4
          %v2451 = vsel %vm634, %v2450, %v2449
          %2452 = vrot.lane.b32.xlu0 %v2451, 64
          %v2453 = vpop.permute.xlu0 %2452
          %v2455 = vsel %vm2446, %v2453, %v2314
          %v2458 = vrot.slane %v2425, 5
          %v2459 = vrot.slane %v2426, 4
          %v2460 = vsel %vm634, %v2459, %v2458
          %2461 = vrot.lane.b32.xlu0 %v2460, 96
          %v2462 = vpop.permute.xlu0 %2461
          %v2464 = vsel %vm2446, %v2462, %v2323
          %v2465 = vsel %vm2446, %v2453, 0.0
          %v2466 = vadd.f32 %v2325, %v2465
          %p2467 = scmp.lt.s32.totalorder %s2439, %s350
          %s2468 = scalar_select %p2467, 0.0, -inf
          %v2469 = vstv %s2468
          %v2470 = vsel %vm2446, %v2453, %v2469
          %v2471 = vmax.f32 %v2330, %v2470
          %v2472 = vpack.c.bf16 %v2455, %v2455
          %v2474 = vsel %vm518, %v2472, 0
          %2476 = vmatprep.subr.bf16.mxu0 0
          %2477 = vmatpush1.bf16.msra.mxu0 %v514
          %2478 = vmatprep.subr.bf16.mxu0 0
          %2479 = vmatpush1.bf16.msra.mxu0 %v515
          %2480 = vmatprep.subr.bf16.mxu0 0
          %2481 = vmatpush1.bf16.msra.mxu0 0
          %2482 = vmatprep.subr.bf16.mxu0 0
          %2483 = vmatpush1.bf16.msra.mxu0 0
          %2484 = vmatprep.subr.bf16.mxu0 0
          %2485 = vmatpush1.bf16.msra.mxu0 0
          %2486 = vmatprep.subr.bf16.mxu0 0
          %2487 = vmatpush1.bf16.msra.mxu0 0
          %2488 = vmatprep.subr.bf16.mxu0 0
          %2489 = vmatpush1.bf16.msra.mxu0 0
          %2490 = vmatprep.subr.bf16.mxu0 0
          %2491 = vmatpush1.bf16.msra.mxu0 0
          %2492 = vmatprep.subr.bf16.mxu0 0
          %2493 = vmatpush1.bf16.msra.mxu0 0
          %2494 = vmatprep.subr.bf16.mxu0 0
          %2495 = vmatpush1.bf16.msra.mxu0 0
          %2496 = vmatprep.subr.bf16.mxu0 0
          %2497 = vmatpush1.bf16.msra.mxu0 0
          %2498 = vmatprep.subr.bf16.mxu0 0
          %2499 = vmatpush1.bf16.msra.mxu0 0
          %2500 = vmatprep.subr.bf16.mxu0 0
          %2501 = vmatpush1.bf16.msra.mxu0 0
          %2502 = vmatprep.subr.bf16.mxu0 0
          %2503 = vmatpush1.bf16.msra.mxu0 0
          %2504 = vmatprep.subr.bf16.mxu0 0
          %2505 = vmatpush1.bf16.msra.mxu0 0
          %2506 = vmatprep.subr.bf16.mxu0 0
          %2507 = vmatpush1.bf16.msra.mxu0 0
          %2508 = vmatprep.mubr.bf16.mxu0 0
          %2509 = vmatmul.mubr.bf16.gmra.mrb[0].mxu0 %v2474
          %v2510 = vpop.f32.mrb[0].mxu0
          %v2511 = vadd.f32 0.0, %v2510
          %v2512 = vpop.f32.mrb[0].mxu0
          %v2513 = vpop.f32.mrb[0].mxu0
          %v2514 = vpop.f32.mrb[0].mxu0
          %2515 = vdwg.mxu0
          %v2517 = vrot.slane %v2511, 2
          %v2518 = vrot.slane %v2511, 3
          %v2521 = vadd.f32 %v493, %v2517
          %v2522 = vadd.f32 %v495, %v2518
          %v2523 = vxor.u32 %v2521, 2147483648
          %v2524 = vxor.u32 %v2522, 2147483648
          %v2525 = vmul.f32 %v2523, 1.442695
          %v2526 = vpow.pop %v2525
          %v2527 = vmul.f32 %v2524, 1.442695
          %v2528 = vpow.pop %v2527
          %v2529 = vadd.f32 %v2526, 1.0
          %v2530 = vadd.f32 %v2528, 1.0
          %v2531 = vrcp.pop %v2529
          %v2532 = vmul.f32 1.0, %v2531
          %v2533 = vrcp.pop %v2530
          %v2534 = vmul.f32 1.0, %v2533
          %v2535 = vtanh.pop %v2521
          %v2536 = vtanh.pop %v2522
          %v2538 = vrot.slane %v2464, 2
          %v2539 = vrot.slane %v2464, 3
          %2540 = vrot.lane.b32.xlu0 %v2538, 32
          %v2541 = vpop.permute.xlu0 %2540
          %2542 = vrot.lane.b32.xlu0 %v2539, 32
          %v2543 = vpop.permute.xlu0 %2542
          %v2546 = vmul.f32 %v2532, %v2541
          %v2547 = vmul.f32 %v2534, %v2543
          %2550 = vrot.lane.b32.xlu0 %v2535, 32
          %v2551 = vpop.permute.xlu0 %2550
          %2552 = vrot.lane.b32.xlu0 %v2536, 32
          %v2553 = vpop.permute.xlu0 %2552
          %v2556 = vmul.f32 %v2532, %v2551
          %v2557 = vmul.f32 %v2534, %v2553
          %2560 = vrot.lane.b32.xlu0 %v2556, 32
          %v2561 = vpop.permute.xlu0 %2560
          %2562 = vrot.lane.b32.xlu0 %v2557, 32
          %v2563 = vpop.permute.xlu0 %2562
          %v2566 = vadd.f32 %v2546, %v2561
          %v2567 = vadd.f32 %v2547, %v2563
          %v2568 = vtanh.pop %v2566
          %v2569 = vtanh.pop %v2567
          %2572 = vrot.lane.b32.xlu0 %v2568, 32
          %v2573 = vpop.permute.xlu0 %2572
          %2574 = vrot.lane.b32.xlu0 %v2569, 32
          %v2575 = vpop.permute.xlu0 %2574
          %v2578 = vmul.f32 %v2532, %v2573
          %v2579 = vmul.f32 %v2534, %v2575
          %s2580 = sadd.s32 %s351, 14
          %v2581 = vstv %s2580
          %vm2582 = vcmp.lt.s32.totalorder %v2581, %v500
          %v2583 = vsel %vm2582, 1, 0
          %2584 = vset.pattern.permute.xlu0 0
          %2585 = vperm.xlu0 %2584, %v2583
          %v2586 = vpop.permute.xlu0 %2585
          %vm2587 = vcmp.eq.s32.totalorder %v2586, 1
          %v2590 = vrot.slane %v2578, 6
          %v2591 = vrot.slane %v2579, 5
          %v2592 = vsel %vm634, %v2591, %v2590
          %2593 = vrot.lane.b32.xlu0 %v2592, 64
          %v2594 = vpop.permute.xlu0 %2593
          %v2596 = vsel %vm2587, %v2594, %v2455
          %v2599 = vrot.slane %v2566, 6
          %v2600 = vrot.slane %v2567, 5
          %v2601 = vsel %vm634, %v2600, %v2599
          %2602 = vrot.lane.b32.xlu0 %v2601, 96
          %v2603 = vpop.permute.xlu0 %2602
          %v2605 = vsel %vm2587, %v2603, %v2464
          %v2606 = vsel %vm2587, %v2594, 0.0
          %v2607 = vadd.f32 %v2466, %v2606
          %p2608 = scmp.lt.s32.totalorder %s2580, %s350
          %s2609 = scalar_select %p2608, 0.0, -inf
          %v2610 = vstv %s2609
          %v2611 = vsel %vm2587, %v2594, %v2610
          %v2612 = vmax.f32 %v2471, %v2611
          %v2613 = vpack.c.bf16 %v2596, %v2596
          %v2615 = vsel %vm518, %v2613, 0
          %2617 = vmatprep.subr.bf16.mxu0 0
          %2618 = vmatpush1.bf16.msra.mxu0 %v514
          %2619 = vmatprep.subr.bf16.mxu0 0
          %2620 = vmatpush1.bf16.msra.mxu0 %v515
          %2621 = vmatprep.subr.bf16.mxu0 0
          %2622 = vmatpush1.bf16.msra.mxu0 0
          %2623 = vmatprep.subr.bf16.mxu0 0
          %2624 = vmatpush1.bf16.msra.mxu0 0
          %2625 = vmatprep.subr.bf16.mxu0 0
          %2626 = vmatpush1.bf16.msra.mxu0 0
          %2627 = vmatprep.subr.bf16.mxu0 0
          %2628 = vmatpush1.bf16.msra.mxu0 0
          %2629 = vmatprep.subr.bf16.mxu0 0
          %2630 = vmatpush1.bf16.msra.mxu0 0
          %2631 = vmatprep.subr.bf16.mxu0 0
          %2632 = vmatpush1.bf16.msra.mxu0 0
          %2633 = vmatprep.subr.bf16.mxu0 0
          %2634 = vmatpush1.bf16.msra.mxu0 0
          %2635 = vmatprep.subr.bf16.mxu0 0
          %2636 = vmatpush1.bf16.msra.mxu0 0
          %2637 = vmatprep.subr.bf16.mxu0 0
          %2638 = vmatpush1.bf16.msra.mxu0 0
          %2639 = vmatprep.subr.bf16.mxu0 0
          %2640 = vmatpush1.bf16.msra.mxu0 0
          %2641 = vmatprep.subr.bf16.mxu0 0
          %2642 = vmatpush1.bf16.msra.mxu0 0
          %2643 = vmatprep.subr.bf16.mxu0 0
          %2644 = vmatpush1.bf16.msra.mxu0 0
          %2645 = vmatprep.subr.bf16.mxu0 0
          %2646 = vmatpush1.bf16.msra.mxu0 0
          %2647 = vmatprep.subr.bf16.mxu0 0
          %2648 = vmatpush1.bf16.msra.mxu0 0
          %2649 = vmatprep.mubr.bf16.mxu0 0
          %2650 = vmatmul.mubr.bf16.gmra.mrb[0].mxu0 %v2615
          %v2651 = vpop.f32.mrb[0].mxu0
          %v2652 = vadd.f32 0.0, %v2651
          %v2653 = vpop.f32.mrb[0].mxu0
          %v2654 = vpop.f32.mrb[0].mxu0
          %v2655 = vpop.f32.mrb[0].mxu0
          %2656 = vdwg.mxu0
          %v2658 = vrot.slane %v2652, 1
          %v2659 = vrot.slane %v2652, 2
          %v2662 = vadd.f32 %v493, %v2658
          %v2663 = vadd.f32 %v495, %v2659
          %v2664 = vxor.u32 %v2662, 2147483648
          %v2665 = vxor.u32 %v2663, 2147483648
          %v2666 = vmul.f32 %v2664, 1.442695
          %v2667 = vpow.pop %v2666
          %v2668 = vmul.f32 %v2665, 1.442695
          %v2669 = vpow.pop %v2668
          %v2670 = vadd.f32 %v2667, 1.0
          %v2671 = vadd.f32 %v2669, 1.0
          %v2672 = vrcp.pop %v2670
          %v2673 = vmul.f32 1.0, %v2672
          %v2674 = vrcp.pop %v2671
          %v2675 = vmul.f32 1.0, %v2674
          %v2676 = vtanh.pop %v2662
          %v2677 = vtanh.pop %v2663
          %v2679 = vrot.slane %v2605, 1
          %v2680 = vrot.slane %v2605, 2
          %2681 = vrot.lane.b32.xlu0 %v2679, 32
          %v2682 = vpop.permute.xlu0 %2681
          %2683 = vrot.lane.b32.xlu0 %v2680, 32
          %v2684 = vpop.permute.xlu0 %2683
          %v2687 = vmul.f32 %v2673, %v2682
          %v2688 = vmul.f32 %v2675, %v2684
          %2691 = vrot.lane.b32.xlu0 %v2676, 32
          %v2692 = vpop.permute.xlu0 %2691
          %2693 = vrot.lane.b32.xlu0 %v2677, 32
          %v2694 = vpop.permute.xlu0 %2693
          %v2697 = vmul.f32 %v2673, %v2692
          %v2698 = vmul.f32 %v2675, %v2694
          %2701 = vrot.lane.b32.xlu0 %v2697, 32
          %v2702 = vpop.permute.xlu0 %2701
          %2703 = vrot.lane.b32.xlu0 %v2698, 32
          %v2704 = vpop.permute.xlu0 %2703
          %v2707 = vadd.f32 %v2687, %v2702
          %v2708 = vadd.f32 %v2688, %v2704
          %v2709 = vtanh.pop %v2707
          %v2710 = vtanh.pop %v2708
          %2713 = vrot.lane.b32.xlu0 %v2709, 32
          %v2714 = vpop.permute.xlu0 %2713
          %2715 = vrot.lane.b32.xlu0 %v2710, 32
          %v2716 = vpop.permute.xlu0 %2715
          %v2719 = vmul.f32 %v2673, %v2714
          %v2720 = vmul.f32 %v2675, %v2716
          %s2721 = sadd.s32 %s351, 15
          %v2722 = vstv %s2721
          %vm2723 = vcmp.lt.s32.totalorder %v2722, %v500
          %v2724 = vsel %vm2723, 1, 0
          %2725 = vset.pattern.permute.xlu0 0
          %2726 = vperm.xlu0 %2725, %v2724
          %v2727 = vpop.permute.xlu0 %2726
          %vm2728 = vcmp.eq.s32.totalorder %v2727, 1
          %v2731 = vrot.slane %v2719, 7
          %v2732 = vrot.slane %v2720, 6
          %v2733 = vsel %vm634, %v2732, %v2731
          %2734 = vrot.lane.b32.xlu0 %v2733, 64
          %v2735 = vpop.permute.xlu0 %2734
          %v2737 = vsel %vm2728, %v2735, %v2596
          %v2740 = vrot.slane %v2707, 7
          %v2741 = vrot.slane %v2708, 6
          %v2742 = vsel %vm634, %v2741, %v2740
          %2743 = vrot.lane.b32.xlu0 %v2742, 96
          %v2744 = vpop.permute.xlu0 %2743
          %v2746 = vsel %vm2728, %v2744, %v2605
          %v2747 = vsel %vm2728, %v2735, 0.0
          %v2748 = vadd.f32 %v2607, %v2747
          %p2749 = scmp.lt.s32.totalorder %s2721, %s350
          %s2750 = scalar_select %p2749, 0.0, -inf
          %v2751 = vstv %s2750
          %v2752 = vsel %vm2728, %v2735, %v2751
          %v2753 = vmax.f32 %v2612, %v2752
          %vm2754 = vcmask 254976
          %2755 = vst.msk [vmem:[#allocation2] sm:$0x3] %vm2754, %v2737
          %2756 = vst.msk [vmem:[#allocation3] sm:$0x3] %vm2754, %v2746
          %2757 = vst.msk [vmem:[#allocation4] sm:$0x3] %vm2754, %v2748
          %2758 = vst.msk [vmem:[#allocation5] sm:$0x3] %vm2754, %v2753
        $region64: #{tpu_custom_call.1} parent=51 // pred_fallthru
          _
        %p2759 = scmp.eq.s32.totalorder %s25, 1
        // Predicated region
        $region65: #{tpu_custom_call.1} parent=51 // pred_check
          %p2760 = pneg %p2759
        $region66: #{tpu_custom_call.1} parent=51 // pred_check_branch
          %2762 = sbr.rel (%p2760) target = $region68
        $region67: #{tpu_custom_call.1} parent=51 // pred_region
          %p2763 = scmp.gt.s32.totalorder %s350, 1
          %s2764 = scalar_select %p2763, %s350, 1
          %s2765 = scvt.s32.f32 %s2764
          %v2766 = vld [vmem:[#allocation4] sm:$0x3]
          %v2767 = vstv %s2765
          %v2768 = vrcp.pop %v2767
          %s2769 = vtos %v2768
          %v2770 = vstv %s2769
          %v2771 = vmul.f32 %v2766, %v2770
          %v2772 = vld [vmem:[%s6] sm:$0xff]
          %v2773 = vld [vmem:[%s6 + $0x8] sm:$0xff]
          %v2774 = vld [vmem:[%s6 + $0x10] sm:$0xff]
          %v2775 = vld [vmem:[%s6 + $0x18] sm:$0xff]
          %v2776 = vld [vmem:[#allocation5] sm:$0x3]
          %v2777 = vld [vmem:[%s7] sm:$0xff]
          %v2778 = vld [vmem:[%s7 + $0x8] sm:$0xff]
          %v2779 = vld [vmem:[%s7 + $0x10] sm:$0xff]
          %v2780 = vld [vmem:[%s7 + $0x18] sm:$0xff]
          %vm2781 = vcmask 261120
          %v2783 = vsel %vm2781, %v2776, 0
          %2785 = vmatprep.subr.mxu0 0.0
          %2786 = vmatpush1.msra.mxu0 %v2777
          %2787 = vmatprep.subr.mxu0 0.0
          %2788 = vmatpush1.msra.mxu0 %v2778
          %2789 = vmatprep.subr.mxu0 0.0
          %2790 = vmatpush1.msra.mxu0 %v2779
          %2791 = vmatprep.subr.mxu0 0.0
          %2792 = vmatpush1.msra.mxu0 %v2780
          %2793 = vmatprep.subr.mxu0 0.0
          %2794 = vmatpush1.msra.mxu0 0.0
          %2795 = vmatprep.subr.mxu0 0.0
          %2796 = vmatpush1.msra.mxu0 0.0
          %2797 = vmatprep.subr.mxu0 0.0
          %2798 = vmatpush1.msra.mxu0 0.0
          %2799 = vmatprep.subr.mxu0 0.0
          %2800 = vmatpush1.msra.mxu0 0.0
          %2801 = vmatprep.subr.mxu0 0.0
          %2802 = vmatpush1.msra.mxu0 0.0
          %2803 = vmatprep.subr.mxu0 0.0
          %2804 = vmatpush1.msra.mxu0 0.0
          %2805 = vmatprep.subr.mxu0 0.0
          %2806 = vmatpush1.msra.mxu0 0.0
          %2807 = vmatprep.subr.mxu0 0.0
          %2808 = vmatpush1.msra.mxu0 0.0
          %2809 = vmatprep.subr.mxu0 0.0
          %2810 = vmatpush1.msra.mxu0 0.0
          %2811 = vmatprep.subr.mxu0 0.0
          %2812 = vmatpush1.msra.mxu0 0.0
          %2813 = vmatprep.subr.mxu0 0.0
          %2814 = vmatpush1.msra.mxu0 0.0
          %2815 = vmatprep.subr.mxu0 0.0
          %2816 = vmatpush1.msra.mxu0 0.0
          %2817 = vmatprep.subr.mxu0 0.0
          %2818 = vmatpush1.msra.mxu0 0.0
          %2819 = vmatprep.subr.mxu0 0.0
          %2820 = vmatpush1.msra.mxu0 0.0
          %2821 = vmatprep.subr.mxu0 0.0
          %2822 = vmatpush1.msra.mxu0 0.0
          %2823 = vmatprep.subr.mxu0 0.0
          %2824 = vmatpush1.msra.mxu0 0.0
          %2825 = vmatprep.subr.mxu0 0.0
          %2826 = vmatpush1.msra.mxu0 0.0
          %2827 = vmatprep.subr.mxu0 0.0
          %2828 = vmatpush1.msra.mxu0 0.0
          %2829 = vmatprep.subr.mxu0 0.0
          %2830 = vmatpush1.msra.mxu0 0.0
          %2831 = vmatprep.subr.mxu0 0.0
          %2832 = vmatpush1.msra.mxu0 0.0
          %2833 = vmatprep.subr.mxu0 0.0
          %2834 = vmatpush1.msra.mxu0 0.0
          %2835 = vmatprep.subr.mxu0 0.0
          %2836 = vmatpush1.msra.mxu0 0.0
          %2837 = vmatprep.subr.mxu0 0.0
          %2838 = vmatpush1.msra.mxu0 0.0
          %2839 = vmatprep.subr.mxu0 0.0
          %2840 = vmatpush1.msra.mxu0 0.0
          %2841 = vmatprep.subr.mxu0 0.0
          %2842 = vmatpush1.msra.mxu0 0.0
          %2843 = vmatprep.subr.mxu0 0.0
          %2844 = vmatpush1.msra.mxu0 0.0
          %2845 = vmatprep.subr.mxu0 0.0
          %2846 = vmatpush1.msra.mxu0 0.0
          %2847 = vmatprep.subr.mxu0 0.0
          %2848 = vmatpush1.msra.mxu0 0.0
          %2849 = vmatprep.mubr.f32.mxu0 0.0
          %2850 = vmatmul.mubr.f32.gmra.mrb[0].mxu0 %v2783
          %v2851 = vpop.f32.mrb[0].mxu0
          %v2852 = vadd.f32 0.0, %v2851
          %v2853 = vpop.f32.mrb[0].mxu0
          %2854 = vdwg.mxu0
          %v2856 = vsel %vm2781, %v2771, 0
          %2858 = vmatprep.subr.mxu0 0.0
          %2859 = vmatpush1.msra.mxu0 %v2772
          %2860 = vmatprep.subr.mxu0 0.0
          %2861 = vmatpush1.msra.mxu0 %v2773
          %2862 = vmatprep.subr.mxu0 0.0
          %2863 = vmatpush1.msra.mxu0 %v2774
          %2864 = vmatprep.subr.mxu0 0.0
          %2865 = vmatpush1.msra.mxu0 %v2775
          %2866 = vmatprep.subr.mxu0 0.0
          %2867 = vmatpush1.msra.mxu0 0.0
          %2868 = vmatprep.subr.mxu0 0.0
          %2869 = vmatpush1.msra.mxu0 0.0
          %2870 = vmatprep.subr.mxu0 0.0
          %2871 = vmatpush1.msra.mxu0 0.0
          %2872 = vmatprep.subr.mxu0 0.0
          %2873 = vmatpush1.msra.mxu0 0.0
          %2874 = vmatprep.subr.mxu0 0.0
          %2875 = vmatpush1.msra.mxu0 0.0
          %2876 = vmatprep.subr.mxu0 0.0
          %2877 = vmatpush1.msra.mxu0 0.0
          %2878 = vmatprep.subr.mxu0 0.0
          %2879 = vmatpush1.msra.mxu0 0.0
          %2880 = vmatprep.subr.mxu0 0.0
          %2881 = vmatpush1.msra.mxu0 0.0
          %2882 = vmatprep.subr.mxu0 0.0
          %2883 = vmatpush1.msra.mxu0 0.0
          %2884 = vmatprep.subr.mxu0 0.0
          %2885 = vmatpush1.msra.mxu0 0.0
          %2886 = vmatprep.subr.mxu0 0.0
          %2887 = vmatpush1.msra.mxu0 0.0
          %2888 = vmatprep.subr.mxu0 0.0
          %2889 = vmatpush1.msra.mxu0 0.0
          %2890 = vmatprep.subr.mxu0 0.0
          %2891 = vmatpush1.msra.mxu0 0.0
          %2892 = vmatprep.subr.mxu0 0.0
          %2893 = vmatpush1.msra.mxu0 0.0
          %2894 = vmatprep.subr.mxu0 0.0
          %2895 = vmatpush1.msra.mxu0 0.0
          %2896 = vmatprep.subr.mxu0 0.0
          %2897 = vmatpush1.msra.mxu0 0.0
          %2898 = vmatprep.subr.mxu0 0.0
          %2899 = vmatpush1.msra.mxu0 0.0
          %2900 = vmatprep.subr.mxu0 0.0
          %2901 = vmatpush1.msra.mxu0 0.0
          %2902 = vmatprep.subr.mxu0 0.0
          %2903 = vmatpush1.msra.mxu0 0.0
          %2904 = vmatprep.subr.mxu0 0.0
          %2905 = vmatpush1.msra.mxu0 0.0
          %2906 = vmatprep.subr.mxu0 0.0
          %2907 = vmatpush1.msra.mxu0 0.0
          %2908 = vmatprep.subr.mxu0 0.0
          %2909 = vmatpush1.msra.mxu0 0.0
          %2910 = vmatprep.subr.mxu0 0.0
          %2911 = vmatpush1.msra.mxu0 0.0
          %2912 = vmatprep.subr.mxu0 0.0
          %2913 = vmatpush1.msra.mxu0 0.0
          %2914 = vmatprep.subr.mxu0 0.0
          %2915 = vmatpush1.msra.mxu0 0.0
          %2916 = vmatprep.subr.mxu0 0.0
          %2917 = vmatpush1.msra.mxu0 0.0
          %2918 = vmatprep.subr.mxu0 0.0
          %2919 = vmatpush1.msra.mxu0 0.0
          %2920 = vmatprep.subr.mxu0 0.0
          %2921 = vmatpush1.msra.mxu0 0.0
          %2922 = vmatprep.mubr.f32.mxu0 0.0
          %2923 = vmatmul.mubr.f32.gmra.mrb[0].mxu0 %v2856
          %v2924 = vpop.f32.mrb[0].mxu0
          %v2925 = vadd.f32 %v2852, %v2924
          %v2926 = vpop.f32.mrb[0].mxu0
          %2927 = vdwg.mxu0
          %v2928 = vld [vmem:[%s8] sm:$0x1]
          %v2930 = vlaneseq
          %v2931 = vshrl.u32 %v2930, 7
          %v2932 = vsub.s32 0, %v2931
          %v2933 = vrot.slane %v2928, %v2932
          %v2935 = vadd.f32 %v2925, %v2933
          %vm2936 = vcmask 9216
          %2937 = vst.msk [vmem:[#allocation11] sm:$0x3] %vm2936, %v2935
        $region68: #{tpu_custom_call.1} parent=51 // pred_fallthru
          _
        // Predicated region
        $region69: #{tpu_custom_call.1} parent=51 // pred_check
          %p2938 = pneg %p211
        $region70: #{tpu_custom_call.1} parent=51 // pred_check_branch
          %2940 = sbr.rel (%p2938) target = $region72
        $region71: #{tpu_custom_call.1} parent=51 // pred_region
          %s2942 = ssub.s32 32, 32
          %2943 = vsyncadd [#allocation10], %s2942
          %s2945 = sshll.u32 [#allocation11], 4
          %s2946 = int_to_ptr.vmem [resolvable:$true] %s2945
          %2948 = dma.vmem_to_hbm [thread:$0]  %s2946, 32, %s9, [#allocation10]
        $region72: #{tpu_custom_call.1} parent=51 // pred_fallthru
          _
        // Predicated region
        $region73: #{tpu_custom_call.1} parent=51 // pred_check
          %p2949 = pneg %p211
        $region74: #{tpu_custom_call.1} parent=51 // pred_check_branch
          %2951 = sbr.rel (%p2949) target = $region76
        $region75: #{tpu_custom_call.1} parent=51 // pred_region
          %2952 = dma.done [#allocation10], 32
        $region76: #{tpu_custom_call.1} parent=51 // pred_fallthru
          _
      $region52: #{tpu_custom_call.1} parent=5 // pred_fallthru
        _
      %p2953 = scmp.le.s32.totalorder 2, %s20
      // Predicated region
      $region77: #{tpu_custom_call.1} parent=5 // pred_check
        %p2954 = pneg %p2953
      $region78: #{tpu_custom_call.1} parent=5 // pred_check_branch
        %2956 = sbr.rel (%p2954) target = $region80
      $region79: #{tpu_custom_call.1} parent=5 // pred_region
        %s2957 = ssub.s32 %s20, 2
      $region80: #{tpu_custom_call.1} parent=5 // pred_fallthru
        _
    $region6: #{tpu_custom_call.1} parent=1 // loop_footer
      %s24 = sadd.s32 1, %s20
    $region7: #{tpu_custom_call.1} parent=1 // loop_footer_branch
      %19 = sbr.rel target = $region3
    $region8: #{tpu_custom_call.1} parent=1 // loop_exit
      _
    %2958 = vsyncpa [#allocation9], 1
    %s2959 = scalar_lea.sflag [#allocation9], 1
    %2960 = vsyncpa %s2959, 1
    %2961 = vsyncpa [#allocation10], 1
    %s2962 = scalar_lea.sflag [#allocation10], 1
    %2963 = vsyncpa %s2962, 1

</llo_original>
